<compile_context>
chip_gen: v7x
topology: tpu7x:2x2x1
jax: 0.10.0
libtpu: 0.0.40
codegen_flags: <defaults>
</compile_context>

<pallas_src>
import functools

import jax
import jax.numpy as jnp
from jax.experimental import pallas as pl
from jax.experimental.pallas import tpu as pltpu

NEG_SLOPE = 0.2
BN_EPS = 1e-5


def _leaky(x):
    return jnp.where(x >= 0, x, NEG_SLOPE * x)


# ----------------------------------------------------------------------------- kernel
def transform_net_kernel(x_ref, w1t_ref, b1_ref, w2_ref, b2_ref, w3_ref, b3_ref,
                         wl1_ref, bl1_ref, wl2_ref, bl2_ref, wt_ref, bt_ref,
                         out_ref, gmax_ref, *, tn, k):
    n_idx = pl.program_id(1)

    # ---- per-tile edge-feature stack: conv1 -> conv2 -> max over K -> conv3 ----
    x = x_ref[0]                                                # (6, tn*k) f32, channels compact

    # conv1 (6 -> 64): canonical matmul against the pre-transposed tiny weight,
    # then one well-shaped f32 transpose to row-major (rows = points*neighbors).
    h = jnp.dot(w1t_ref[...], x, preferred_element_type=jnp.float32)   # (64, tn*k)
    h = _leaky(h.T + b1_ref[...])                                       # (tn*k, 64)

    # conv2 (64 -> 128): bf16 MXU, f32 accumulation, f32 epilogue.
    h = _leaky(jnp.dot(h.astype(jnp.bfloat16), w2_ref[...],
                       preferred_element_type=jnp.float32) + b2_ref[...])   # (tn*k, 128)

    # max over the K neighbors (K is innermost in the flattened row axis).
    h = jnp.max(h.reshape(tn, k, 128), axis=1)                              # (tn, 128)

    # conv3 (128 -> 1024).
    h = _leaky(jnp.dot(h.astype(jnp.bfloat16), w3_ref[...],
                       preferred_element_type=jnp.float32) + b3_ref[...])   # (tn, 1024)

    # ---- running max over points, carried across the "arbitrary" grid axis ----
    @pl.when(n_idx == 0)
    def _():
        gmax_ref[...] = jnp.full(gmax_ref.shape, -jnp.inf, gmax_ref.dtype)

    gmax_ref[...] = jnp.maximum(gmax_ref[...], jnp.max(h, axis=0, keepdims=True))

    # ---- head (linear1 -> linear2 -> transform), once per batch element --------
    @pl.when(n_idx == pl.num_programs(1) - 1)
    def _():
        g = gmax_ref[...]                                                   # (1, 1024)
        g = _leaky(jnp.dot(g.astype(jnp.bfloat16), wl1_ref[...],
                           preferred_element_type=jnp.float32) + bl1_ref[...])   # (1, 512)
        g = _leaky(jnp.dot(g.astype(jnp.bfloat16), wl2_ref[...],
                           preferred_element_type=jnp.float32) + bl2_ref[...])   # (1, 256)
        out_ref[0] = jnp.dot(g, wt_ref[...],
                             preferred_element_type=jnp.float32) + bt_ref[...]   # (1, 9)


# ----------------------------------------------------------------------------- params
def init_params(key):
    """Fresh PyTorch-style init: convs/linears bias-free, BN fresh, transform w=0 b=I."""
    ks = jax.random.split(key, 5)

    def uniform_fan_in(k, shape, fan_in):
        bound = 1.0 / float(fan_in) ** 0.5
        return jax.random.uniform(k, shape, jnp.float32, -bound, bound)

    def bn(c):
        return dict(gamma=jnp.ones((c,), jnp.float32), beta=jnp.zeros((c,), jnp.float32),
                    mean=jnp.zeros((c,), jnp.float32), var=jnp.ones((c,), jnp.float32))

    return dict(
        w1=uniform_fan_in(ks[0], (6, 64), 6), bn1=bn(64),
        w2=uniform_fan_in(ks[1], (64, 128), 64), bn2=bn(128),
        w3=uniform_fan_in(ks[2], (128, 1024), 128), bn3=bn(1024),
        wl1=uniform_fan_in(ks[3], (1024, 512), 1024), bn4=bn(512),
        wl2=uniform_fan_in(ks[4], (512, 256), 512), bn5=bn(256),
        wt=jnp.zeros((256, 9), jnp.float32),                      # init.constant_(weight, 0)
        bt=jnp.eye(3, dtype=jnp.float32).reshape(9),              # init.eye_(bias.view(3,3))
    )


def prepare_params(p):
    """Fold eval-mode BN into each (bias-free) layer; cast big weights to bf16."""
    def fold(w, bn):
        scale = bn["gamma"] * jax.lax.rsqrt(bn["var"] + BN_EPS)
        return w * scale[None, :], (bn["beta"] - bn["mean"] * scale)[None, :]

    w1f, b1 = fold(p["w1"], p["bn1"])
    w2f, b2 = fold(p["w2"], p["bn2"])
    w3f, b3 = fold(p["w3"], p["bn3"])
    wl1f, bl1 = fold(p["wl1"], p["bn4"])
    wl2f, bl2 = fold(p["wl2"], p["bn5"])
    return dict(
        w1t=jnp.asarray(w1f.T, jnp.float32), b1=b1,               # (64, 6) stays f32 (tiny)
        w2=w2f.astype(jnp.bfloat16), b2=b2,
        w3=w3f.astype(jnp.bfloat16), b3=b3,
        wl1=wl1f.astype(jnp.bfloat16), bl1=bl1,
        wl2=wl2f.astype(jnp.bfloat16), bl2=bl2,
        wt=p["wt"], bt=p["bt"].reshape(1, 9),
    )


# ----------------------------------------------------------------------------- wrapper
def transform_net(x_nchw, prep, *, tn=None):
    B, C, N, K = x_nchw.shape
    assert C == 6
    if tn is None:
        tn = N
    assert N % tn == 0
    num_nt = N // tn
    blk = tn * K
    # Mosaic (8,128) rule: block's last dim must be a multiple of 128 or the full extent.
    assert blk % 128 == 0 or num_nt == 1, "pick tn so tn*K is a multiple of 128"

    x = x_nchw.reshape(B, C, N * K)        # free reshape; channels stay compact in HBM

    weights = (prep["w1t"], prep["b1"], prep["w2"], prep["b2"],
               prep["w3"], prep["b3"], prep["wl1"], prep["bl1"],
               prep["wl2"], prep["bl2"], prep["wt"], prep["bt"])

    def _full(shape):
        return pl.BlockSpec(shape, lambda b, n: (0,) * len(shape))

    flops = 2 * B * (N * K * (6 * 64 + 64 * 128) + N * 128 * 1024
                     + 1024 * 512 + 512 * 256 + 256 * 9)
    bytes_accessed = (int(x.size) * x.dtype.itemsize
                      + sum(int(w.size) * w.dtype.itemsize for w in weights)
                      + B * 9 * 4)

    kernel = functools.partial(transform_net_kernel, tn=tn, k=K)

    out = pl.pallas_call(
        kernel,
        out_shape=jax.ShapeDtypeStruct((B, 1, 9), jnp.float32),
        grid=(B, num_nt),
        in_specs=[pl.BlockSpec((1, C, blk), lambda b, n: (b, 0, n))]
                 + [_full(tuple(w.shape)) for w in weights],
        out_specs=pl.BlockSpec((1, 1, 9), lambda b, n: (b, 0, 0)),
        scratch_shapes=[pltpu.VMEM((1, 1024), jnp.float32)],
        compiler_params=pltpu.CompilerParams(
            dimension_semantics=("parallel", "arbitrary"),
            vmem_limit_bytes=48 * 1024 * 1024),
        cost_estimate=pl.CostEstimate(flops=flops, transcendentals=0,
                                      bytes_accessed=bytes_accessed),
    )(x, *weights)
    return out.reshape(B, 3, 3)


# ----------------------------------------------------------------------------- reference
def transform_net_ref(x_nchw, p):
    """Pure-JAX reference using the same folded params and bf16 cast points."""
    B, C, N, K = x_nchw.shape
    x = x_nchw.reshape(B, C, N * K)
    h = jnp.einsum("oc,bcm->bmo", p["w1t"], x)                                  # (B, M, 64)
    h = _leaky(h + p["b1"])
    h = _leaky(jnp.einsum("bmc,cd->bmd", h.astype(jnp.bfloat16), p["w2"],
                          preferred_element_type=jnp.float32) + p["b2"])        # (B, M, 128)
    h = jnp.max(h.reshape(B, N, K, 128), axis=2)                                # (B, N, 128)
    h = _leaky(jnp.einsum("bnc,cd->bnd", h.astype(jnp.bfloat16), p["w3"],
                          preferred_element_type=jnp.float32) + p["b3"])        # (B, N, 1024)
    g = jnp.max(h, axis=1)                                                      # (B, 1024)
    g = _leaky(jnp.dot(g.astype(jnp.bfloat16), p["wl1"],
                       preferred_element_type=jnp.float32) + p["bl1"])          # (B, 512)
    g = _leaky(jnp.dot(g.astype(jnp.bfloat16), p["wl2"],
                       preferred_element_type=jnp.float32) + p["bl2"])          # (B, 256)
    out = jnp.dot(g, p["wt"], preferred_element_type=jnp.float32) + p["bt"]     # (B, 9)
    return out.reshape(B, 3, 3)


def randomize_head_and_bn(p, key):
    """Non-trivial BN stats + random transform head so the folding is exercised."""
    ks = jax.random.split(key, 7)
    q = dict(p)
    q["wt"] = 0.1 * jax.random.normal(ks[0], (256, 9), jnp.float32)
    q["bt"] = 0.1 * jax.random.normal(ks[1], (9,), jnp.float32)
    for i, nm in enumerate(["bn1", "bn2", "bn3", "bn4", "bn5"]):
        c = p[nm]["gamma"].shape[0]
        k1, k2, k3, k4 = jax.random.split(ks[2 + i], 4)
        q[nm] = dict(
            gamma=1.0 + 0.1 * jax.random.normal(k1, (c,), jnp.float32),
            beta=0.1 * jax.random.normal(k2, (c,), jnp.float32),
            mean=0.1 * jax.random.normal(k3, (c,), jnp.float32),
            var=jnp.abs(1.0 + 0.1 * jax.random.normal(k4, (c,), jnp.float32)),
        )
    return q


if __name__ == "__main__":
    root = jax.random.PRNGKey(0)
    pkey, xkey, rkey = jax.random.split(root, 3)

    B, N, K, TN = 2, 32, 8, 16            # grid = (B=2 parallel, N/TN=2 arbitrary); tn*K = 128
    x = jax.random.normal(xkey, (B, 6, N, K), dtype=jnp.float32)

    # 1) Fresh-init module (transform.weight = 0, bias = I) -> output must be identity.
    raw = init_params(pkey)
    out = transform_net(x, prepare_params(raw), tn=TN)
    out = jax.block_until_ready(out)
    assert out.shape == (B, 3, 3)
    assert jnp.allclose(out, jnp.broadcast_to(jnp.eye(3, dtype=jnp.float32), (B, 3, 3)),
                        atol=1e-5)

    # 2) Random transform head + non-trivial BN stats -> match the pure-JAX reference.
    prep2 = prepare_params(randomize_head_and_bn(raw, rkey))
    out2 = jax.block_until_ready(transform_net(x, prep2, tn=TN))
    ref2 = jax.block_until_ready(transform_net_ref(x, prep2))
    assert jnp.allclose(out2, ref2, atol=2e-2, rtol=2e-2), \
        float(jnp.max(jnp.abs(out2 - ref2)))

    print("KERNEL_OK")
</pallas_src>

<mosaic_0001>
module attributes {stable_mosaic.version = 11 : i64} {
  func.func @transform_net_kernel(%arg0: i32, %arg1: i32, %arg2: memref<1x6x128xf32, #tpu.memory_space<vmem>>, %arg3: memref<64x6xf32, #tpu.memory_space<vmem>>, %arg4: memref<1x64xf32, #tpu.memory_space<vmem>>, %arg5: memref<64x128xbf16, #tpu.memory_space<vmem>>, %arg6: memref<1x128xf32, #tpu.memory_space<vmem>>, %arg7: memref<128x1024xbf16, #tpu.memory_space<vmem>>, %arg8: memref<1x1024xf32, #tpu.memory_space<vmem>>, %arg9: memref<1024x512xbf16, #tpu.memory_space<vmem>>, %arg10: memref<1x512xf32, #tpu.memory_space<vmem>>, %arg11: memref<512x256xbf16, #tpu.memory_space<vmem>>, %arg12: memref<1x256xf32, #tpu.memory_space<vmem>>, %arg13: memref<256x9xf32, #tpu.memory_space<vmem>>, %arg14: memref<1x9xf32, #tpu.memory_space<vmem>>, %arg15: memref<1x1x9xf32, #tpu.memory_space<vmem>>, %arg16: memref<1x1024xf32, #tpu.memory_space<vmem>>) attributes {dimension_semantics = [#tpu.dimension_semantics<parallel>, #tpu.dimension_semantics<arbitrary>], iteration_bounds = array<i64: 2, 2>, scalar_prefetch = 0 : i64, scratch_operands = 1 : i64, tpu.core_type = #tpu.core_type<tc>, window_params = [{transform_indices = @transform_0, window_bounds = array<i64: 1, 6, 128>}, {pipeline_mode = #tpu.pipeline_mode<synchronous>, transform_indices = @transform_1, window_bounds = array<i64: 64, 6>}, {pipeline_mode = #tpu.pipeline_mode<synchronous>, transform_indices = @transform_2, window_bounds = array<i64: 1, 64>}, {pipeline_mode = #tpu.pipeline_mode<synchronous>, transform_indices = @transform_3, window_bounds = array<i64: 64, 128>}, {pipeline_mode = #tpu.pipeline_mode<synchronous>, transform_indices = @transform_4, window_bounds = array<i64: 1, 128>}, {pipeline_mode = #tpu.pipeline_mode<synchronous>, transform_indices = @transform_5, window_bounds = array<i64: 128, 1024>}, {pipeline_mode = #tpu.pipeline_mode<synchronous>, transform_indices = @transform_6, window_bounds = array<i64: 1, 1024>}, {pipeline_mode = #tpu.pipeline_mode<synchronous>, transform_indices = @transform_7, window_bounds = array<i64: 1024, 512>}, {pipeline_mode = #tpu.pipeline_mode<synchronous>, transform_indices = @transform_8, window_bounds = array<i64: 1, 512>}, {pipeline_mode = #tpu.pipeline_mode<synchronous>, transform_indices = @transform_9, window_bounds = array<i64: 512, 256>}, {pipeline_mode = #tpu.pipeline_mode<synchronous>, transform_indices = @transform_10, window_bounds = array<i64: 1, 256>}, {pipeline_mode = #tpu.pipeline_mode<synchronous>, transform_indices = @transform_11, window_bounds = array<i64: 256, 9>}, {pipeline_mode = #tpu.pipeline_mode<synchronous>, transform_indices = @transform_12, window_bounds = array<i64: 1, 9>}, {transform_indices = @transform_13, window_bounds = array<i64: 1, 1, 9>}]} {
    %c0 = arith.constant 0 : index
    %c0_0 = arith.constant 0 : index
    %c0_1 = arith.constant 0 : index
    %0 = vector.load %arg2[%c0, %c0_0, %c0_1] : memref<1x6x128xf32, #tpu.memory_space<vmem>>, vector<1x6x128xf32>
    %1 = vector.shape_cast %0 : vector<1x6x128xf32> to vector<6x128xf32>
    %c0_2 = arith.constant 0 : index
    %c0_3 = arith.constant 0 : index
    %2 = vector.load %arg3[%c0_2, %c0_3] : memref<64x6xf32, #tpu.memory_space<vmem>>, vector<64x6xf32>
    %cst = arith.constant dense<0.000000e+00> : vector<64x128xf32>
    %3 = tpu.matmul %2, %1, %cst {dimension_numbers = #tpu.dot_dimension_numbers<[1], [0], [0], [1], [0, 0, 1, 1], [], []>} : vector<64x6xf32>, vector<6x128xf32>, vector<64x128xf32> -> vector<64x128xf32>
    %4 = tpu.transpose %3, [1, 0] : vector<64x128xf32> -> vector<128x64xf32>
    %c0_4 = arith.constant 0 : index
    %c0_5 = arith.constant 0 : index
    %5 = vector.load %arg4[%c0_4, %c0_5] : memref<1x64xf32, #tpu.memory_space<vmem>>, vector<1x64xf32>
    %6 = vector.broadcast %5 : vector<1x64xf32> to vector<128x64xf32>
    %7 = arith.addf %4, %6 : vector<128x64xf32>
    %cst_6 = arith.constant 0.000000e+00 : f32
    %8 = vector.broadcast %cst_6 : f32 to vector<128x64xf32>
    %9 = arith.cmpf oge, %7, %8 : vector<128x64xf32>
    %cst_7 = arith.constant 2.000000e-01 : f32
    %10 = vector.broadcast %cst_7 : f32 to vector<128x64xf32>
    %11 = arith.mulf %10, %7 : vector<128x64xf32>
    %12 = arith.select %9, %7, %11 : vector<128x64xi1>, vector<128x64xf32>
    %13 = arith.truncf %12 : vector<128x64xf32> to vector<128x64xbf16>
    %c0_8 = arith.constant 0 : index
    %c0_9 = arith.constant 0 : index
    %14 = vector.load %arg5[%c0_8, %c0_9] : memref<64x128xbf16, #tpu.memory_space<vmem>>, vector<64x128xbf16>
    %cst_10 = arith.constant dense<0.000000e+00> : vector<128x128xf32>
    %15 = tpu.matmul %13, %14, %cst_10 {dimension_numbers = #tpu.dot_dimension_numbers<[1], [0], [0], [1], [0, 0, 1, 1], [], []>} : vector<128x64xbf16>, vector<64x128xbf16>, vector<128x128xf32> -> vector<128x128xf32>
    %c0_11 = arith.constant 0 : index
    %c0_12 = arith.constant 0 : index
    %16 = vector.load %arg6[%c0_11, %c0_12] : memref<1x128xf32, #tpu.memory_space<vmem>>, vector<1x128xf32>
    %17 = vector.broadcast %16 : vector<1x128xf32> to vector<128x128xf32>
    %18 = arith.addf %15, %17 : vector<128x128xf32>
    %cst_13 = arith.constant 0.000000e+00 : f32
    %19 = vector.broadcast %cst_13 : f32 to vector<128x128xf32>
    %20 = arith.cmpf oge, %18, %19 : vector<128x128xf32>
    %cst_14 = arith.constant 2.000000e-01 : f32
    %21 = vector.broadcast %cst_14 : f32 to vector<128x128xf32>
    %22 = arith.mulf %21, %18 : vector<128x128xf32>
    %23 = arith.select %20, %18, %22 : vector<128x128xi1>, vector<128x128xf32>
    %24 = vector.shape_cast %23 : vector<128x128xf32> to vector<16x8x128xf32>
    %cst_15 = arith.constant dense<0xFF800000> : vector<16x128xf32>
    %25 = vector.multi_reduction <maximumf>, %24, %cst_15 [1] : vector<16x8x128xf32> to vector<16x128xf32>
    %26 = arith.truncf %25 : vector<16x128xf32> to vector<16x128xbf16>
    %c0_16 = arith.constant 0 : index
    %c0_17 = arith.constant 0 : index
    %27 = vector.load %arg7[%c0_16, %c0_17] : memref<128x1024xbf16, #tpu.memory_space<vmem>>, vector<128x1024xbf16>
    %cst_18 = arith.constant dense<0.000000e+00> : vector<16x1024xf32>
    %28 = tpu.matmul %26, %27, %cst_18 {dimension_numbers = #tpu.dot_dimension_numbers<[1], [0], [0], [1], [0, 0, 1, 1], [], []>} : vector<16x128xbf16>, vector<128x1024xbf16>, vector<16x1024xf32> -> vector<16x1024xf32>
    %c0_19 = arith.constant 0 : index
    %c0_20 = arith.constant 0 : index
    %29 = vector.load %arg8[%c0_19, %c0_20] : memref<1x1024xf32, #tpu.memory_space<vmem>>, vector<1x1024xf32>
    %30 = vector.broadcast %29 : vector<1x1024xf32> to vector<16x1024xf32>
    %31 = arith.addf %28, %30 : vector<16x1024xf32>
    %cst_21 = arith.constant 0.000000e+00 : f32
    %32 = vector.broadcast %cst_21 : f32 to vector<16x1024xf32>
    %33 = arith.cmpf oge, %31, %32 : vector<16x1024xf32>
    %cst_22 = arith.constant 2.000000e-01 : f32
    %34 = vector.broadcast %cst_22 : f32 to vector<16x1024xf32>
    %35 = arith.mulf %34, %31 : vector<16x1024xf32>
    %36 = arith.select %33, %31, %35 : vector<16x1024xi1>, vector<16x1024xf32>
    %c0_i32 = arith.constant 0 : i32
    %37 = arith.cmpi eq, %arg1, %c0_i32 : i32
    %38 = arith.extui %37 : i1 to i32
    %c0_i32_23 = arith.constant 0 : i32
    %39 = arith.cmpi ne, %38, %c0_i32_23 : i32
    scf.if %39 {
      %cst_30 = arith.constant 0xFF800000 : f32
      %48 = vector.broadcast %cst_30 : f32 to vector<1x1024xf32>
      %c0_31 = arith.constant 0 : index
      %c0_32 = arith.constant 0 : index
      %49 = vector.load %arg16[%c0_31, %c0_32] : memref<1x1024xf32, #tpu.memory_space<vmem>>, vector<1x1024xf32>
      tpu.vector_store %arg16[%c0_31, %c0_32], %48 {strides = array<i32>} : memref<1x1024xf32, #tpu.memory_space<vmem>>, vector<1x1024xf32>,
    } else {
    }
    %c0_24 = arith.constant 0 : index
    %c0_25 = arith.constant 0 : index
    %40 = vector.load %arg16[%c0_24, %c0_25] : memref<1x1024xf32, #tpu.memory_space<vmem>>, vector<1x1024xf32>
    %cst_26 = arith.constant dense<0xFF800000> : vector<1024xf32>
    %41 = vector.multi_reduction <maximumf>, %36, %cst_26 [0] : vector<16x1024xf32> to vector<1024xf32>
    %42 = vector.shape_cast %41 : vector<1024xf32> to vector<1x1024xf32>
    %43 = arith.maximumf %40, %42 : vector<1x1024xf32>
    %c0_27 = arith.constant 0 : index
    %c0_28 = arith.constant 0 : index
    %44 = vector.load %arg16[%c0_27, %c0_28] : memref<1x1024xf32, #tpu.memory_space<vmem>>, vector<1x1024xf32>
    tpu.vector_store %arg16[%c0_27, %c0_28], %43 {strides = array<i32>} : memref<1x1024xf32, #tpu.memory_space<vmem>>, vector<1x1024xf32>,
    %c1_i32 = arith.constant 1 : i32
    %45 = arith.cmpi eq, %arg1, %c1_i32 : i32
    %46 = arith.extui %45 : i1 to i32
    %c0_i32_29 = arith.constant 0 : i32
    %47 = arith.cmpi ne, %46, %c0_i32_29 : i32
    scf.if %47 {
      %c0_30 = arith.constant 0 : index
      %c0_31 = arith.constant 0 : index
      %48 = vector.load %arg16[%c0_30, %c0_31] : memref<1x1024xf32, #tpu.memory_space<vmem>>, vector<1x1024xf32>
      %49 = arith.truncf %48 : vector<1x1024xf32> to vector<1x1024xbf16>
      %c0_32 = arith.constant 0 : index
      %c0_33 = arith.constant 0 : index
      %50 = vector.load %arg9[%c0_32, %c0_33] : memref<1024x512xbf16, #tpu.memory_space<vmem>>, vector<1024x512xbf16>
      %cst_34 = arith.constant dense<0.000000e+00> : vector<1x512xf32>
      %51 = tpu.matmul %49, %50, %cst_34 {dimension_numbers = #tpu.dot_dimension_numbers<[1], [0], [0], [1], [0, 0, 1, 1], [], []>} : vector<1x1024xbf16>, vector<1024x512xbf16>, vector<1x512xf32> -> vector<1x512xf32>
      %c0_35 = arith.constant 0 : index
      %c0_36 = arith.constant 0 : index
      %52 = vector.load %arg10[%c0_35, %c0_36] : memref<1x512xf32, #tpu.memory_space<vmem>>, vector<1x512xf32>
      %53 = arith.addf %51, %52 : vector<1x512xf32>
      %cst_37 = arith.constant 0.000000e+00 : f32
      %54 = vector.broadcast %cst_37 : f32 to vector<1x512xf32>
      %55 = arith.cmpf oge, %53, %54 : vector<1x512xf32>
      %cst_38 = arith.constant 2.000000e-01 : f32
      %56 = vector.broadcast %cst_38 : f32 to vector<1x512xf32>
      %57 = arith.mulf %56, %53 : vector<1x512xf32>
      %58 = arith.select %55, %53, %57 : vector<1x512xi1>, vector<1x512xf32>
      %59 = arith.truncf %58 : vector<1x512xf32> to vector<1x512xbf16>
      %c0_39 = arith.constant 0 : index
      %c0_40 = arith.constant 0 : index
      %60 = vector.load %arg11[%c0_39, %c0_40] : memref<512x256xbf16, #tpu.memory_space<vmem>>, vector<512x256xbf16>
      %cst_41 = arith.constant dense<0.000000e+00> : vector<1x256xf32>
      %61 = tpu.matmul %59, %60, %cst_41 {dimension_numbers = #tpu.dot_dimension_numbers<[1], [0], [0], [1], [0, 0, 1, 1], [], []>} : vector<1x512xbf16>, vector<512x256xbf16>, vector<1x256xf32> -> vector<1x256xf32>
      %c0_42 = arith.constant 0 : index
      %c0_43 = arith.constant 0 : index
      %62 = vector.load %arg12[%c0_42, %c0_43] : memref<1x256xf32, #tpu.memory_space<vmem>>, vector<1x256xf32>
      %63 = arith.addf %61, %62 : vector<1x256xf32>
      %cst_44 = arith.constant 0.000000e+00 : f32
      %64 = vector.broadcast %cst_44 : f32 to vector<1x256xf32>
      %65 = arith.cmpf oge, %63, %64 : vector<1x256xf32>
      %cst_45 = arith.constant 2.000000e-01 : f32
      %66 = vector.broadcast %cst_45 : f32 to vector<1x256xf32>
      %67 = arith.mulf %66, %63 : vector<1x256xf32>
      %68 = arith.select %65, %63, %67 : vector<1x256xi1>, vector<1x256xf32>
      %c0_46 = arith.constant 0 : index
      %c0_47 = arith.constant 0 : index
      %69 = vector.load %arg13[%c0_46, %c0_47] : memref<256x9xf32, #tpu.memory_space<vmem>>, vector<256x9xf32>
      %cst_48 = arith.constant dense<0.000000e+00> : vector<1x9xf32>
      %70 = tpu.matmul %68, %69, %cst_48 {dimension_numbers = #tpu.dot_dimension_numbers<[1], [0], [0], [1], [0, 0, 1, 1], [], []>} : vector<1x256xf32>, vector<256x9xf32>, vector<1x9xf32> -> vector<1x9xf32>
      %c0_49 = arith.constant 0 : index
      %c0_50 = arith.constant 0 : index
      %71 = vector.load %arg14[%c0_49, %c0_50] : memref<1x9xf32, #tpu.memory_space<vmem>>, vector<1x9xf32>
      %72 = arith.addf %70, %71 : vector<1x9xf32>
      %c0_51 = arith.constant 0 : index
      %c0_52 = arith.constant 0 : index
      %c0_53 = arith.constant 0 : index
      %73 = vector.load %arg15[%c0_51, %c0_52, %c0_53] : memref<1x1x9xf32, #tpu.memory_space<vmem>>, vector<1x1x9xf32>
      %74 = vector.shape_cast %73 : vector<1x1x9xf32> to vector<1x9xf32>
      %75 = vector.shape_cast %72 : vector<1x9xf32> to vector<1x1x9xf32>
      tpu.vector_store %arg15[%c0_51, %c0_52, %c0_53], %75 {strides = array<i32>} : memref<1x1x9xf32, #tpu.memory_space<vmem>>, vector<1x1x9xf32>,
    } else {
    }
    return
  }
  func.func @transform_0(%arg0: i32, %arg1: i32) -> (i32, i32, i32) {
    %c0_i32 = arith.constant 0 : i32
    %c0_i32_0 = arith.constant 0 : i32
    return %arg0, %c0_i32, %arg1 : i32, i32, i32
  }
  func.func @transform_1(%arg0: i32, %arg1: i32) -> (i32, i32) {
    %c0_i32 = arith.constant 0 : i32
    %c0_i32_0 = arith.constant 0 : i32
    %c0_i32_1 = arith.constant 0 : i32
    return %c0_i32, %c0_i32_0 : i32, i32
  }
  func.func @transform_2(%arg0: i32, %arg1: i32) -> (i32, i32) {
    %c0_i32 = arith.constant 0 : i32
    %c0_i32_0 = arith.constant 0 : i32
    %c0_i32_1 = arith.constant 0 : i32
    return %c0_i32, %c0_i32_0 : i32, i32
  }
  func.func @transform_3(%arg0: i32, %arg1: i32) -> (i32, i32) {
    %c0_i32 = arith.constant 0 : i32
    %c0_i32_0 = arith.constant 0 : i32
    %c0_i32_1 = arith.constant 0 : i32
    return %c0_i32, %c0_i32_0 : i32, i32
  }
  func.func @transform_4(%arg0: i32, %arg1: i32) -> (i32, i32) {
    %c0_i32 = arith.constant 0 : i32
    %c0_i32_0 = arith.constant 0 : i32
    %c0_i32_1 = arith.constant 0 : i32
    return %c0_i32, %c0_i32_0 : i32, i32
  }
  func.func @transform_5(%arg0: i32, %arg1: i32) -> (i32, i32) {
    %c0_i32 = arith.constant 0 : i32
    %c0_i32_0 = arith.constant 0 : i32
    %c0_i32_1 = arith.constant 0 : i32
    return %c0_i32, %c0_i32_0 : i32, i32
  }
  func.func @transform_6(%arg0: i32, %arg1: i32) -> (i32, i32) {
    %c0_i32 = arith.constant 0 : i32
    %c0_i32_0 = arith.constant 0 : i32
    %c0_i32_1 = arith.constant 0 : i32
    return %c0_i32, %c0_i32_0 : i32, i32
  }
  func.func @transform_7(%arg0: i32, %arg1: i32) -> (i32, i32) {
    %c0_i32 = arith.constant 0 : i32
    %c0_i32_0 = arith.constant 0 : i32
    %c0_i32_1 = arith.constant 0 : i32
    return %c0_i32, %c0_i32_0 : i32, i32
  }
  func.func @transform_8(%arg0: i32, %arg1: i32) -> (i32, i32) {
    %c0_i32 = arith.constant 0 : i32
    %c0_i32_0 = arith.constant 0 : i32
    %c0_i32_1 = arith.constant 0 : i32
    return %c0_i32, %c0_i32_0 : i32, i32
  }
  func.func @transform_9(%arg0: i32, %arg1: i32) -> (i32, i32) {
    %c0_i32 = arith.constant 0 : i32
    %c0_i32_0 = arith.constant 0 : i32
    %c0_i32_1 = arith.constant 0 : i32
    return %c0_i32, %c0_i32_0 : i32, i32
  }
  func.func @transform_10(%arg0: i32, %arg1: i32) -> (i32, i32) {
    %c0_i32 = arith.constant 0 : i32
    %c0_i32_0 = arith.constant 0 : i32
    %c0_i32_1 = arith.constant 0 : i32
    return %c0_i32, %c0_i32_0 : i32, i32
  }
  func.func @transform_11(%arg0: i32, %arg1: i32) -> (i32, i32) {
    %c0_i32 = arith.constant 0 : i32
    %c0_i32_0 = arith.constant 0 : i32
    %c0_i32_1 = arith.constant 0 : i32
    return %c0_i32, %c0_i32_0 : i32, i32
  }
  func.func @transform_12(%arg0: i32, %arg1: i32) -> (i32, i32) {
    %c0_i32 = arith.constant 0 : i32
    %c0_i32_0 = arith.constant 0 : i32
    %c0_i32_1 = arith.constant 0 : i32
    return %c0_i32, %c0_i32_0 : i32, i32
  }
  func.func @transform_13(%arg0: i32, %arg1: i32) -> (i32, i32, i32) {
    %c0_i32 = arith.constant 0 : i32
    %c0_i32_0 = arith.constant 0 : i32
    %c0_i32_1 = arith.constant 0 : i32
    return %arg0, %c0_i32, %c0_i32_0 : i32, i32, i32
  }
}

</mosaic_0001>

<llo_original>
// kernel: tpu_custom_call.1
$region0: #{tpu_custom_call.1}
  #allocation0 [shape = 'u32[]', space=smem, size = 0x4, offset = 0x4, fixed_abs, tag = 'smem constant byte address 0x4 - core index']
  #allocation1 [shape = 'u32[144,128]{1,0:T(1,128)}', space=vmem, size = 0x12000, scoped, tag = 'internal scratch']
  #allocation2 [shape = 'f32[1,1024]{1,0:T(1,128)}', space=vmem, size = 0x1000, scoped, tag = 'scratch operand']
  %s0 = inlined_call_operand.vmem [shape: f32[2,6,256], index: 0, kind: input, shape index: {}]
  %s1 = inlined_call_operand.vmem [shape: f32[64,6], index: 1, kind: input, shape index: {}]
  %s2 = inlined_call_operand.vmem [shape: f32[1,64], index: 2, kind: input, shape index: {}]
  %s3 = inlined_call_operand.vmem [shape: bf16[64,128], index: 3, kind: input, shape index: {}]
  %s4 = inlined_call_operand.vmem [shape: f32[1,128], index: 4, kind: input, shape index: {}]
  %s5 = inlined_call_operand.hbm [shape: bf16[128,1024], index: 5, kind: input, shape index: {}]
  %s6 = inlined_call_operand.vmem [shape: f32[1,1024], index: 6, kind: input, shape index: {}]
  %s7 = inlined_call_operand.hbm [shape: bf16[1024,512], index: 7, kind: input, shape index: {}]
  %s8 = inlined_call_operand.vmem [shape: f32[1,512], index: 8, kind: input, shape index: {}]
  %s9 = inlined_call_operand.hbm [shape: bf16[512,256], index: 9, kind: input, shape index: {}]
  %s10 = inlined_call_operand.vmem [shape: f32[1,256], index: 10, kind: input, shape index: {}]
  %s11 = inlined_call_operand.vmem [shape: f32[256,9], index: 11, kind: input, shape index: {}]
  %s12 = inlined_call_operand.vmem [shape: f32[1,9], index: 12, kind: input, shape index: {}]
  %s13 = inlined_call_operand.hbm [shape: f32[2,1,9], index: 13, kind: output, shape index: {}]
  %s14 = sld [smem:[#allocation0]]
  $region105: #{tpu_custom_call.1} parent=0
    _
  %s16 = ssub.s32 1, %s14
  %s17 = scalar_select 0, %s16, %s14
  $region1: #{tpu_custom_call.1} parent=0
    #allocation3 [shape = 'u8[262144]{0}', space=vmem, size = 0x40000, scoped, tag = 'input window, operand 5, single buffered']
    #allocation4 [shape = 's32[2]{0}', space=sflag, size = 0x8, scoped, tag = 'scoped memory for tpu_custom_call.1']
    #allocation5 [shape = 's32[2]{0}', space=sflag, size = 0x8, scoped, tag = 'scoped memory for tpu_custom_call.1']
    #allocation6 [shape = 'u8[1048576]{0}', space=vmem, size = 0x100000, scoped, tag = 'input window, operand 7, single buffered']
    #allocation7 [shape = 's32[1]{0}', space=sflag, size = 0x4, scoped, tag = 'scoped memory for tpu_custom_call.1']
    #allocation8 [shape = 'u8[262144]{0}', space=vmem, size = 0x40000, scoped, tag = 'input window, operand 9, single buffered']
    #allocation9 [shape = 'u8[1024]{0}', space=vmem, size = 0x400, scoped, tag = 'output window, operand 0']
    %18 = vsyncpa [#allocation4], 0
    %19 = vsyncpa [#allocation7], 0
    %20 = vsyncpa [#allocation5], 0
    %s21 = scalar_lea.sflag [#allocation5], 1
    %22 = vsyncpa %s21, 0
    loop: start=0, step=1, limit=6
    $region2: #{tpu_custom_call.1} parent=1 // loop_pre_header
      _
    $region3: #{tpu_custom_call.1} parent=1 // loop_header
      %s24 = sphi 0, %s28
      %p25 = scmp.ge.s32.totalorder %s24, 6
      %s31 = sphi 0, %s43
      %s32 = sphi 0, %s39
      %s33 = sphi 0, %s31
      %s34 = sphi 0, %s32
      %s35 = sphi 0, %s33
      %s36 = sphi 0, %s34
      %s48 = sphi 0, %s50
      %s51 = sphi 0, %s48
      %s52 = sphi 0, %s51
      %s68 = sphi 0, %s52
      %s72 = sphi 0, %s72
      %s74 = sphi 0, %s72
      %s75 = sphi 0, %s74
      %s89 = sphi 0, %s75
      %s93 = sphi 0, %s93
      %s95 = sphi 0, %s93
      %s96 = sphi 0, %s95
      %s110 = sphi 0, %s96
      %s114 = sphi 0, %s114
      %s116 = sphi 0, %s114
      %s117 = sphi 0, %s116
      %s131 = sphi 0, %s117
      %s135 = sphi 0, %s135
      %s137 = sphi 0, %s135
      %s138 = sphi 0, %s137
      %s152 = sphi 0, %s138
      %s156 = sphi 0, %s156
      %s158 = sphi 0, %s156
      %s159 = sphi 0, %s158
      %s173 = sphi 0, %s159
      %s177 = sphi 0, %s177
      %s179 = sphi 0, %s177
      %s180 = sphi 0, %s179
      %s194 = sphi 0, %s180
      %s198 = sphi 0, %s198
      %s200 = sphi 0, %s198
      %s201 = sphi 0, %s200
      %s215 = sphi 0, %s201
      %s219 = sphi 0, %s219
      %s221 = sphi 0, %s219
      %s222 = sphi 0, %s221
      %s236 = sphi 0, %s222
      %s240 = sphi 0, %s240
      %s242 = sphi 0, %s240
      %s243 = sphi 0, %s242
      %s257 = sphi 0, %s243
      %s261 = sphi 0, %s261
      %s263 = sphi 0, %s261
      %s264 = sphi 0, %s263
      %s278 = sphi 0, %s264
      %s282 = sphi 0, %s282
      %s284 = sphi 0, %s282
      %s285 = sphi 0, %s284
      %s299 = sphi 0, %s285
      %s303 = sphi 0, %s303
      %s305 = sphi 0, %s303
      %s306 = sphi 0, %s305
      %s320 = sphi 0, %s306
      %s326 = sphi 0, %s328
      %s329 = sphi 0, %s326
      %s330 = sphi 0, %s329
      %s346 = sphi 0, %s330
    $region4: #{tpu_custom_call.1} parent=1 // loop_header_branch
      %27 = sbr.rel (%p25) target = $region8
    $region5: #{tpu_custom_call.1} parent=1 // loop_body
      %s29 = ssub.s32 %s24, 1
      %s30 = ssub.s32 %s24, 2
      %s37 = sadd.s32 1, %s32
      %p38 = scmp.ge.s32.totalorder %s37, 2
      %s39 = scalar_select %p38, 0, %s37
      %s40 = sadd.s32 1, %s31
      %s41 = scalar_select %p38, %s40, %s31
      %p42 = scmp.ge.s32.totalorder %s41, 2
      %s43 = scalar_select %p42, 0, %s41
      %s44 = ssub.s32 %s31, %s43
      %s45 = ssub.s32 %s32, %s39
      %s46 = sor.u32 %s44, %s45
      %p47 = scmp.eq.s32.totalorder %s46, 0
      %s49 = sadd.s32 %s48, 1
      %s50 = scalar_select %p47, %s48, %s49
      %p53 = pneg %p47
      %p54 = scmp.eq.s32.totalorder %s24, 3
      %p55 = por %p53, %p54
      %p56 = scmp.ne.s32.totalorder %s48, %s51
      %p57 = scmp.eq.s32.totalorder %s24, 0
      %p58 = por %p56, %p57
      %p59 = scmp.ne.s32.totalorder %s48, %s51
      %p60 = scmp.eq.s32.totalorder %s29, 3
      %p61 = por %p59, %p60
      %p62 = scmp.ne.s32.totalorder %s51, %s52
      %p63 = scmp.eq.s32.totalorder %s29, 0
      %p64 = por %p62, %p63
      %p65 = scmp.ne.s32.totalorder %s51, %s52
      %p66 = scmp.eq.s32.totalorder %s30, 3
      %p67 = por %p65, %p66
      %p69 = scmp.ne.s32.totalorder %s52, %s68
      %p70 = scmp.eq.s32.totalorder %s30, 0
      %p71 = por %p69, %p70
      %s73 = sadd.s32 %s72, 1
      %p76 = scmp.eq.s32.totalorder %s24, 3
      %p77 = scmp.ne.s32.totalorder %s72, %s74
      %p78 = scmp.eq.s32.totalorder %s24, 0
      %p79 = por %p77, %p78
      %p80 = scmp.ne.s32.totalorder %s72, %s74
      %p81 = scmp.eq.s32.totalorder %s29, 3
      %p82 = por %p80, %p81
      %p83 = scmp.ne.s32.totalorder %s74, %s75
      %p84 = scmp.eq.s32.totalorder %s29, 0
      %p85 = por %p83, %p84
      %p86 = scmp.ne.s32.totalorder %s74, %s75
      %p87 = scmp.eq.s32.totalorder %s30, 3
      %p88 = por %p86, %p87
      %p90 = scmp.ne.s32.totalorder %s75, %s89
      %p91 = scmp.eq.s32.totalorder %s30, 0
      %p92 = por %p90, %p91
      %s94 = sadd.s32 %s93, 1
      %p97 = scmp.eq.s32.totalorder %s24, 3
      %p98 = scmp.ne.s32.totalorder %s93, %s95
      %p99 = scmp.eq.s32.totalorder %s24, 0
      %p100 = por %p98, %p99
      %p101 = scmp.ne.s32.totalorder %s93, %s95
      %p102 = scmp.eq.s32.totalorder %s29, 3
      %p103 = por %p101, %p102
      %p104 = scmp.ne.s32.totalorder %s95, %s96
      %p105 = scmp.eq.s32.totalorder %s29, 0
      %p106 = por %p104, %p105
      %p107 = scmp.ne.s32.totalorder %s95, %s96
      %p108 = scmp.eq.s32.totalorder %s30, 3
      %p109 = por %p107, %p108
      %p111 = scmp.ne.s32.totalorder %s96, %s110
      %p112 = scmp.eq.s32.totalorder %s30, 0
      %p113 = por %p111, %p112
      %s115 = sadd.s32 %s114, 1
      %p118 = scmp.eq.s32.totalorder %s24, 3
      %p119 = scmp.ne.s32.totalorder %s114, %s116
      %p120 = scmp.eq.s32.totalorder %s24, 0
      %p121 = por %p119, %p120
      %p122 = scmp.ne.s32.totalorder %s114, %s116
      %p123 = scmp.eq.s32.totalorder %s29, 3
      %p124 = por %p122, %p123
      %p125 = scmp.ne.s32.totalorder %s116, %s117
      %p126 = scmp.eq.s32.totalorder %s29, 0
      %p127 = por %p125, %p126
      %p128 = scmp.ne.s32.totalorder %s116, %s117
      %p129 = scmp.eq.s32.totalorder %s30, 3
      %p130 = por %p128, %p129
      %p132 = scmp.ne.s32.totalorder %s117, %s131
      %p133 = scmp.eq.s32.totalorder %s30, 0
      %p134 = por %p132, %p133
      %s136 = sadd.s32 %s135, 1
      %p139 = scmp.eq.s32.totalorder %s24, 3
      %p140 = scmp.ne.s32.totalorder %s135, %s137
      %p141 = scmp.eq.s32.totalorder %s24, 0
      %p142 = por %p140, %p141
      %p143 = scmp.ne.s32.totalorder %s135, %s137
      %p144 = scmp.eq.s32.totalorder %s29, 3
      %p145 = por %p143, %p144
      %p146 = scmp.ne.s32.totalorder %s137, %s138
      %p147 = scmp.eq.s32.totalorder %s29, 0
      %p148 = por %p146, %p147
      %p149 = scmp.ne.s32.totalorder %s137, %s138
      %p150 = scmp.eq.s32.totalorder %s30, 3
      %p151 = por %p149, %p150
      %p153 = scmp.ne.s32.totalorder %s138, %s152
      %p154 = scmp.eq.s32.totalorder %s30, 0
      %p155 = por %p153, %p154
      %s157 = sadd.s32 %s156, 1
      %p160 = scmp.eq.s32.totalorder %s24, 3
      %p161 = scmp.ne.s32.totalorder %s156, %s158
      %p162 = scmp.eq.s32.totalorder %s24, 0
      %p163 = por %p161, %p162
      %p164 = scmp.ne.s32.totalorder %s156, %s158
      %p165 = scmp.eq.s32.totalorder %s29, 3
      %p166 = por %p164, %p165
      %p167 = scmp.ne.s32.totalorder %s158, %s159
      %p168 = scmp.eq.s32.totalorder %s29, 0
      %p169 = por %p167, %p168
      %p170 = scmp.ne.s32.totalorder %s158, %s159
      %p171 = scmp.eq.s32.totalorder %s30, 3
      %p172 = por %p170, %p171
      %p174 = scmp.ne.s32.totalorder %s159, %s173
      %p175 = scmp.eq.s32.totalorder %s30, 0
      %p176 = por %p174, %p175
      %s178 = sadd.s32 %s177, 1
      %p181 = scmp.eq.s32.totalorder %s24, 3
      %p182 = scmp.ne.s32.totalorder %s177, %s179
      %p183 = scmp.eq.s32.totalorder %s24, 0
      %p184 = por %p182, %p183
      %p185 = scmp.ne.s32.totalorder %s177, %s179
      %p186 = scmp.eq.s32.totalorder %s29, 3
      %p187 = por %p185, %p186
      %p188 = scmp.ne.s32.totalorder %s179, %s180
      %p189 = scmp.eq.s32.totalorder %s29, 0
      %p190 = por %p188, %p189
      %p191 = scmp.ne.s32.totalorder %s179, %s180
      %p192 = scmp.eq.s32.totalorder %s30, 3
      %p193 = por %p191, %p192
      %p195 = scmp.ne.s32.totalorder %s180, %s194
      %p196 = scmp.eq.s32.totalorder %s30, 0
      %p197 = por %p195, %p196
      %s199 = sadd.s32 %s198, 1
      %p202 = scmp.eq.s32.totalorder %s24, 3
      %p203 = scmp.ne.s32.totalorder %s198, %s200
      %p204 = scmp.eq.s32.totalorder %s24, 0
      %p205 = por %p203, %p204
      %p206 = scmp.ne.s32.totalorder %s198, %s200
      %p207 = scmp.eq.s32.totalorder %s29, 3
      %p208 = por %p206, %p207
      %p209 = scmp.ne.s32.totalorder %s200, %s201
      %p210 = scmp.eq.s32.totalorder %s29, 0
      %p211 = por %p209, %p210
      %p212 = scmp.ne.s32.totalorder %s200, %s201
      %p213 = scmp.eq.s32.totalorder %s30, 3
      %p214 = por %p212, %p213
      %p216 = scmp.ne.s32.totalorder %s201, %s215
      %p217 = scmp.eq.s32.totalorder %s30, 0
      %p218 = por %p216, %p217
      %s220 = sadd.s32 %s219, 1
      %p223 = scmp.eq.s32.totalorder %s24, 3
      %p224 = scmp.ne.s32.totalorder %s219, %s221
      %p225 = scmp.eq.s32.totalorder %s24, 0
      %p226 = por %p224, %p225
      %p227 = scmp.ne.s32.totalorder %s219, %s221
      %p228 = scmp.eq.s32.totalorder %s29, 3
      %p229 = por %p227, %p228
      %p230 = scmp.ne.s32.totalorder %s221, %s222
      %p231 = scmp.eq.s32.totalorder %s29, 0
      %p232 = por %p230, %p231
      %p233 = scmp.ne.s32.totalorder %s221, %s222
      %p234 = scmp.eq.s32.totalorder %s30, 3
      %p235 = por %p233, %p234
      %p237 = scmp.ne.s32.totalorder %s222, %s236
      %p238 = scmp.eq.s32.totalorder %s30, 0
      %p239 = por %p237, %p238
      %s241 = sadd.s32 %s240, 1
      %p244 = scmp.eq.s32.totalorder %s24, 3
      %p245 = scmp.ne.s32.totalorder %s240, %s242
      %p246 = scmp.eq.s32.totalorder %s24, 0
      %p247 = por %p245, %p246
      %p248 = scmp.ne.s32.totalorder %s240, %s242
      %p249 = scmp.eq.s32.totalorder %s29, 3
      %p250 = por %p248, %p249
      %p251 = scmp.ne.s32.totalorder %s242, %s243
      %p252 = scmp.eq.s32.totalorder %s29, 0
      %p253 = por %p251, %p252
      %p254 = scmp.ne.s32.totalorder %s242, %s243
      %p255 = scmp.eq.s32.totalorder %s30, 3
      %p256 = por %p254, %p255
      %p258 = scmp.ne.s32.totalorder %s243, %s257
      %p259 = scmp.eq.s32.totalorder %s30, 0
      %p260 = por %p258, %p259
      %s262 = sadd.s32 %s261, 1
      %p265 = scmp.eq.s32.totalorder %s24, 3
      %p266 = scmp.ne.s32.totalorder %s261, %s263
      %p267 = scmp.eq.s32.totalorder %s24, 0
      %p268 = por %p266, %p267
      %p269 = scmp.ne.s32.totalorder %s261, %s263
      %p270 = scmp.eq.s32.totalorder %s29, 3
      %p271 = por %p269, %p270
      %p272 = scmp.ne.s32.totalorder %s263, %s264
      %p273 = scmp.eq.s32.totalorder %s29, 0
      %p274 = por %p272, %p273
      %p275 = scmp.ne.s32.totalorder %s263, %s264
      %p276 = scmp.eq.s32.totalorder %s30, 3
      %p277 = por %p275, %p276
      %p279 = scmp.ne.s32.totalorder %s264, %s278
      %p280 = scmp.eq.s32.totalorder %s30, 0
      %p281 = por %p279, %p280
      %s283 = sadd.s32 %s282, 1
      %p286 = scmp.eq.s32.totalorder %s24, 3
      %p287 = scmp.ne.s32.totalorder %s282, %s284
      %p288 = scmp.eq.s32.totalorder %s24, 0
      %p289 = por %p287, %p288
      %p290 = scmp.ne.s32.totalorder %s282, %s284
      %p291 = scmp.eq.s32.totalorder %s29, 3
      %p292 = por %p290, %p291
      %p293 = scmp.ne.s32.totalorder %s284, %s285
      %p294 = scmp.eq.s32.totalorder %s29, 0
      %p295 = por %p293, %p294
      %p296 = scmp.ne.s32.totalorder %s284, %s285
      %p297 = scmp.eq.s32.totalorder %s30, 3
      %p298 = por %p296, %p297
      %p300 = scmp.ne.s32.totalorder %s285, %s299
      %p301 = scmp.eq.s32.totalorder %s30, 0
      %p302 = por %p300, %p301
      %s304 = sadd.s32 %s303, 1
      %p307 = scmp.eq.s32.totalorder %s24, 3
      %p308 = scmp.ne.s32.totalorder %s303, %s305
      %p309 = scmp.eq.s32.totalorder %s24, 0
      %p310 = por %p308, %p309
      %p311 = scmp.ne.s32.totalorder %s303, %s305
      %p312 = scmp.eq.s32.totalorder %s29, 3
      %p313 = por %p311, %p312
      %p314 = scmp.ne.s32.totalorder %s305, %s306
      %p315 = scmp.eq.s32.totalorder %s29, 0
      %p316 = por %p314, %p315
      %p317 = scmp.ne.s32.totalorder %s305, %s306
      %p318 = scmp.eq.s32.totalorder %s30, 3
      %p319 = por %p317, %p318
      %p321 = scmp.ne.s32.totalorder %s306, %s320
      %p322 = scmp.eq.s32.totalorder %s30, 0
      %p323 = por %p321, %p322
      %s324 = ssub.s32 %s31, %s43
      %p325 = scmp.eq.s32.totalorder %s324, 0
      %s327 = sadd.s32 %s326, 1
      %s328 = scalar_select %p325, %s326, %s327
      %p331 = pneg %p325
      %p332 = scmp.eq.s32.totalorder %s24, 3
      %p333 = por %p331, %p332
      %p334 = scmp.ne.s32.totalorder %s326, %s329
      %p335 = scmp.eq.s32.totalorder %s24, 0
      %p336 = por %p334, %p335
      %p337 = scmp.ne.s32.totalorder %s326, %s329
      %p338 = scmp.eq.s32.totalorder %s29, 3
      %p339 = por %p337, %p338
      %p340 = scmp.ne.s32.totalorder %s329, %s330
      %p341 = scmp.eq.s32.totalorder %s29, 0
      %p342 = por %p340, %p341
      %p343 = scmp.ne.s32.totalorder %s329, %s330
      %p344 = scmp.eq.s32.totalorder %s30, 3
      %p345 = por %p343, %p344
      %p347 = scmp.ne.s32.totalorder %s330, %s346
      %p348 = scmp.eq.s32.totalorder %s30, 0
      %p349 = por %p347, %p348
      %p350 = scmp.le.s32.totalorder 1, %s24
      %p351 = scmp.lt.s32.totalorder %s24, 5
      %p352 = pnand %p350, %p351
      %p353 = pneg %p352
      // Predicated region
      $region9: #{tpu_custom_call.1} parent=5 // pred_check
        _
      $region10: #{tpu_custom_call.1} parent=5 // pred_check_branch
        %355 = sbr.rel (%p352) target = $region12
      $region11: #{tpu_custom_call.1} parent=5 // pred_region
        %s356 = ssub.s32 %s24, 1
        // Predicated region
        $region13: #{tpu_custom_call.1} parent=11 // pred_check
          %p357 = pneg %p85
        $region14: #{tpu_custom_call.1} parent=11 // pred_check_branch
          %359 = sbr.rel (%p357) target = $region16
        $region15: #{tpu_custom_call.1} parent=11 // pred_region
          _
        $region16: #{tpu_custom_call.1} parent=11 // pred_fallthru
          _
        // Predicated region
        $region17: #{tpu_custom_call.1} parent=11 // pred_check
          %p360 = pneg %p106
        $region18: #{tpu_custom_call.1} parent=11 // pred_check_branch
          %362 = sbr.rel (%p360) target = $region20
        $region19: #{tpu_custom_call.1} parent=11 // pred_region
          _
        $region20: #{tpu_custom_call.1} parent=11 // pred_fallthru
          _
        // Predicated region
        $region21: #{tpu_custom_call.1} parent=11 // pred_check
          %p363 = pneg %p127
        $region22: #{tpu_custom_call.1} parent=11 // pred_check_branch
          %365 = sbr.rel (%p363) target = $region24
        $region23: #{tpu_custom_call.1} parent=11 // pred_region
          _
        $region24: #{tpu_custom_call.1} parent=11 // pred_fallthru
          _
        // Predicated region
        $region25: #{tpu_custom_call.1} parent=11 // pred_check
          %p366 = pneg %p148
        $region26: #{tpu_custom_call.1} parent=11 // pred_check_branch
          %368 = sbr.rel (%p366) target = $region28
        $region27: #{tpu_custom_call.1} parent=11 // pred_region
          _
        $region28: #{tpu_custom_call.1} parent=11 // pred_fallthru
          _
        // Predicated region
        $region29: #{tpu_custom_call.1} parent=11 // pred_check
          %p369 = pneg %p169
        $region30: #{tpu_custom_call.1} parent=11 // pred_check_branch
          %371 = sbr.rel (%p369) target = $region32
        $region31: #{tpu_custom_call.1} parent=11 // pred_region
          %s373 = ssub.s32 8192, 8192
          %374 = vsyncadd [#allocation4], %s373
          %s375 = sshll.u32 [#allocation3], 4
          %s376 = int_to_ptr.vmem [resolvable:$true] %s375
          %381 = dma.hbm_to_vmem [thread:$0]  %s5, 8192, %s376, [#allocation4], 512, 512, 32
        $region32: #{tpu_custom_call.1} parent=11 // pred_fallthru
          _
        // Predicated region
        $region33: #{tpu_custom_call.1} parent=11 // pred_check
          %p382 = pneg %p190
        $region34: #{tpu_custom_call.1} parent=11 // pred_check_branch
          %384 = sbr.rel (%p382) target = $region36
        $region35: #{tpu_custom_call.1} parent=11 // pred_region
          _
        $region36: #{tpu_custom_call.1} parent=11 // pred_fallthru
          _
        // Predicated region
        $region37: #{tpu_custom_call.1} parent=11 // pred_check
          %p385 = pneg %p211
        $region38: #{tpu_custom_call.1} parent=11 // pred_check_branch
          %387 = sbr.rel (%p385) target = $region40
        $region39: #{tpu_custom_call.1} parent=11 // pred_region
          %s389 = ssub.s32 32768, 32768
          %390 = vsyncadd [#allocation7], %s389
          %s391 = sshll.u32 [#allocation6], 4
          %s392 = int_to_ptr.vmem [resolvable:$true] %s391
          %397 = dma.hbm_to_vmem [thread:$0]  %s7, 32768, %s392, [#allocation7], 256, 256, 16
        $region40: #{tpu_custom_call.1} parent=11 // pred_fallthru
          _
        // Predicated region
        $region41: #{tpu_custom_call.1} parent=11 // pred_check
          %p398 = pneg %p232
        $region42: #{tpu_custom_call.1} parent=11 // pred_check_branch
          %400 = sbr.rel (%p398) target = $region44
        $region43: #{tpu_custom_call.1} parent=11 // pred_region
          _
        $region44: #{tpu_custom_call.1} parent=11 // pred_fallthru
          _
        // Predicated region
        $region45: #{tpu_custom_call.1} parent=11 // pred_check
          %p401 = pneg %p253
        $region46: #{tpu_custom_call.1} parent=11 // pred_check_branch
          %403 = sbr.rel (%p401) target = $region48
        $region47: #{tpu_custom_call.1} parent=11 // pred_region
          %s405 = ssub.s32 8192, 8192
          %406 = vsyncadd [#allocation7], %s405
          %s407 = sshll.u32 [#allocation8], 4
          %s408 = int_to_ptr.vmem [resolvable:$true] %s407
          %413 = dma.hbm_to_vmem [thread:$0]  %s9, 8192, %s408, [#allocation7], 128, 128, 8
        $region48: #{tpu_custom_call.1} parent=11 // pred_fallthru
          _
        // Predicated region
        $region49: #{tpu_custom_call.1} parent=11 // pred_check
          %p414 = pneg %p274
        $region50: #{tpu_custom_call.1} parent=11 // pred_check_branch
          %416 = sbr.rel (%p414) target = $region52
        $region51: #{tpu_custom_call.1} parent=11 // pred_region
          _
        $region52: #{tpu_custom_call.1} parent=11 // pred_fallthru
          _
        // Predicated region
        $region53: #{tpu_custom_call.1} parent=11 // pred_check
          %p417 = pneg %p295
        $region54: #{tpu_custom_call.1} parent=11 // pred_check_branch
          %419 = sbr.rel (%p417) target = $region56
        $region55: #{tpu_custom_call.1} parent=11 // pred_region
          _
        $region56: #{tpu_custom_call.1} parent=11 // pred_fallthru
          _
        // Predicated region
        $region57: #{tpu_custom_call.1} parent=11 // pred_check
          %p420 = pneg %p316
        $region58: #{tpu_custom_call.1} parent=11 // pred_check_branch
          %422 = sbr.rel (%p420) target = $region60
        $region59: #{tpu_custom_call.1} parent=11 // pred_region
          _
        $region60: #{tpu_custom_call.1} parent=11 // pred_fallthru
          _
      $region12: #{tpu_custom_call.1} parent=5 // pred_fallthru
        _
      %p423 = scmp.lt.s32.totalorder %s24, 4
      // Predicated region
      $region61: #{tpu_custom_call.1} parent=5 // pred_check
        %p424 = pneg %p423
      $region62: #{tpu_custom_call.1} parent=5 // pred_check_branch
        %426 = sbr.rel (%p424) target = $region64
      $region63: #{tpu_custom_call.1} parent=5 // pred_region
        // Predicated region
        $region65: #{tpu_custom_call.1} parent=63 // pred_check
          %p427 = pneg %p58
        $region66: #{tpu_custom_call.1} parent=63 // pred_check_branch
          %429 = sbr.rel (%p427) target = $region68
        $region67: #{tpu_custom_call.1} parent=63 // pred_region
          %p430 = scmp.lt.s32.totalorder %s31, 1
          %s431 = scalar_select %p430, %s31, 1
          %p432 = scmp.lt.s32.totalorder %s32, 1
          %s433 = scalar_select %p432, %s32, 1
          %s434 = smul.addr %s431, 2
          %s435 = sadd.s32 %s433, %s434
          %s436 = smul.addr %s435, 8
          %s437 = scalar_lea.vmem %s0, %s436
        $region68: #{tpu_custom_call.1} parent=63 // pred_fallthru
          _
      $region64: #{tpu_custom_call.1} parent=5 // pred_fallthru
        _
      %p438 = scmp.le.s32.totalorder 1, %s24
      %p439 = scmp.lt.s32.totalorder %s24, 5
      %p440 = pnand %p438, %p439
      %p441 = pneg %p440
      // Predicated region
      $region69: #{tpu_custom_call.1} parent=5 // pred_check
        _
      $region70: #{tpu_custom_call.1} parent=5 // pred_check_branch
        %443 = sbr.rel (%p440) target = $region72
      $region71: #{tpu_custom_call.1} parent=5 // pred_region
        %s444 = ssub.s32 %s24, 1
        // Predicated region
        $region73: #{tpu_custom_call.1} parent=71 // pred_check
          %p445 = pneg %p169
        $region74: #{tpu_custom_call.1} parent=71 // pred_check_branch
          %447 = sbr.rel (%p445) target = $region76
        $region75: #{tpu_custom_call.1} parent=71 // pred_region
          %448 = dma.done [#allocation4], 8192
        $region76: #{tpu_custom_call.1} parent=71 // pred_fallthru
          _
        // Predicated region
        $region77: #{tpu_custom_call.1} parent=71 // pred_check
          %p449 = pneg %p211
        $region78: #{tpu_custom_call.1} parent=71 // pred_check_branch
          %451 = sbr.rel (%p449) target = $region80
        $region79: #{tpu_custom_call.1} parent=71 // pred_region
          %452 = dma.done [#allocation7], 32768
        $region80: #{tpu_custom_call.1} parent=71 // pred_fallthru
          _
        // Predicated region
        $region81: #{tpu_custom_call.1} parent=71 // pred_check
          %p453 = pneg %p253
        $region82: #{tpu_custom_call.1} parent=71 // pred_check_branch
          %455 = sbr.rel (%p453) target = $region84
        $region83: #{tpu_custom_call.1} parent=71 // pred_region
          %456 = dma.done [#allocation7], 8192
        $region84: #{tpu_custom_call.1} parent=71 // pred_fallthru
          _
        %p457 = scmp.lt.s32.totalorder %s33, 1
        %s458 = scalar_select %p457, %s33, 1
        %p459 = scmp.lt.s32.totalorder %s34, 1
        %s460 = scalar_select %p459, %s34, 1
        %s461 = smul.addr %s458, 2
        %s462 = sadd.s32 %s460, %s461
        %s463 = smul.addr %s462, 8
        %s464 = scalar_lea.vmem %s0, %s463
        %p465 = pneg %p64
        %p466 = pneg %p61
        %p467 = pneg %p85
        %p468 = pneg %p82
        %p469 = pneg %p106
        %p470 = pneg %p103
        %p471 = pneg %p127
        %p472 = pneg %p124
        %p473 = pneg %p148
        %p474 = pneg %p145
        %p475 = pneg %p169
        %p476 = pneg %p166
        %p477 = pneg %p190
        %p478 = pneg %p187
        %p479 = pneg %p211
        %p480 = pneg %p208
        %p481 = pneg %p232
        %p482 = pneg %p229
        %p483 = pneg %p253
        %p484 = pneg %p250
        %p485 = pneg %p274
        %p486 = pneg %p271
        %p487 = pneg %p295
        %p488 = pneg %p292
        %p489 = pneg %p316
        %p490 = pneg %p313
        %p491 = pneg %p342
        %p492 = pneg %p339
        %s493 = sand.u32 %s329, 1
        %s494 = scalar_lea.sflag [#allocation5], %s493
        %s495 = sand.u32 %s329, 1
        %s496 = scalar_lea.vmem [#allocation9], %s495
        %p497 = scmp.lt.s32.totalorder %s33, 1
        %s498 = scalar_select %p497, %s33, 1
        %p499 = scmp.lt.s32.totalorder %s34, 1
        %s500 = scalar_select %p499, %s34, 1
        %s501 = smul.addr %s498, 2
        %s502 = sadd.s32 %s500, %s501
        %s503 = smul.addr %s502, 8
        %s504 = scalar_lea.vmem %s0, %s503
        %v506 = vld [vmem:[%s504] sm:$0x3f]
        %v507 = vld [vmem:[%s1] sm:$0xff]
        %v508 = vld [vmem:[%s1 + $0x8] sm:$0xff]
        %v509 = vld [vmem:[%s1 + $0x10] sm:$0xff]
        %v510 = vld [vmem:[%s1 + $0x18] sm:$0xff]
        %v511 = vld [vmem:[%s1 + $0x20] sm:$0xff]
        %v512 = vld [vmem:[%s1 + $0x28] sm:$0xff]
        %v513 = vld [vmem:[%s1 + $0x30] sm:$0xff]
        %v514 = vld [vmem:[%s1 + $0x38] sm:$0xff]
        %vm515 = vcmask 48128
        %v517 = vsel %vm515, %v507, 0
        %v520 = vsel %vm515, %v508, 0
        %v523 = vsel %vm515, %v509, 0
        %v526 = vsel %vm515, %v510, 0
        %v529 = vsel %vm515, %v511, 0
        %v532 = vsel %vm515, %v512, 0
        %v535 = vsel %vm515, %v513, 0
        %v538 = vsel %vm515, %v514, 0
        %vm540 = vcmask 1045504
        %v542 = vsel %vm540, %v506, 0
        %544 = vmatprep.subr.mxu0 0.0
        %545 = vmatpush1.msra.mxu0 %v542
        %546 = vmatprep.subr.mxu0 0.0
        %547 = vmatpush1.msra.mxu0 0.0
        %548 = vmatprep.subr.mxu0 0.0
        %549 = vmatpush1.msra.mxu0 0.0
        %550 = vmatprep.subr.mxu0 0.0
        %551 = vmatpush1.msra.mxu0 0.0
        %552 = vmatprep.subr.mxu0 0.0
        %553 = vmatpush1.msra.mxu0 0.0
        %554 = vmatprep.subr.mxu0 0.0
        %555 = vmatpush1.msra.mxu0 0.0
        %556 = vmatprep.subr.mxu0 0.0
        %557 = vmatpush1.msra.mxu0 0.0
        %558 = vmatprep.subr.mxu0 0.0
        %559 = vmatpush1.msra.mxu0 0.0
        %560 = vmatprep.subr.mxu0 0.0
        %561 = vmatpush1.msra.mxu0 0.0
        %562 = vmatprep.subr.mxu0 0.0
        %563 = vmatpush1.msra.mxu0 0.0
        %564 = vmatprep.subr.mxu0 0.0
        %565 = vmatpush1.msra.mxu0 0.0
        %566 = vmatprep.subr.mxu0 0.0
        %567 = vmatpush1.msra.mxu0 0.0
        %568 = vmatprep.subr.mxu0 0.0
        %569 = vmatpush1.msra.mxu0 0.0
        %570 = vmatprep.subr.mxu0 0.0
        %571 = vmatpush1.msra.mxu0 0.0
        %572 = vmatprep.subr.mxu0 0.0
        %573 = vmatpush1.msra.mxu0 0.0
        %574 = vmatprep.subr.mxu0 0.0
        %575 = vmatpush1.msra.mxu0 0.0
        %576 = vmatprep.subr.mxu0 0.0
        %577 = vmatpush1.msra.mxu0 0.0
        %578 = vmatprep.subr.mxu0 0.0
        %579 = vmatpush1.msra.mxu0 0.0
        %580 = vmatprep.subr.mxu0 0.0
        %581 = vmatpush1.msra.mxu0 0.0
        %582 = vmatprep.subr.mxu0 0.0
        %583 = vmatpush1.msra.mxu0 0.0
        %584 = vmatprep.subr.mxu0 0.0
        %585 = vmatpush1.msra.mxu0 0.0
        %586 = vmatprep.subr.mxu0 0.0
        %587 = vmatpush1.msra.mxu0 0.0
        %588 = vmatprep.subr.mxu0 0.0
        %589 = vmatpush1.msra.mxu0 0.0
        %590 = vmatprep.subr.mxu0 0.0
        %591 = vmatpush1.msra.mxu0 0.0
        %592 = vmatprep.subr.mxu0 0.0
        %593 = vmatpush1.msra.mxu0 0.0
        %594 = vmatprep.subr.mxu0 0.0
        %595 = vmatpush1.msra.mxu0 0.0
        %596 = vmatprep.subr.mxu0 0.0
        %597 = vmatpush1.msra.mxu0 0.0
        %598 = vmatprep.subr.mxu0 0.0
        %599 = vmatpush1.msra.mxu0 0.0
        %600 = vmatprep.subr.mxu0 0.0
        %601 = vmatpush1.msra.mxu0 0.0
        %602 = vmatprep.subr.mxu0 0.0
        %603 = vmatpush1.msra.mxu0 0.0
        %604 = vmatprep.subr.mxu0 0.0
        %605 = vmatpush1.msra.mxu0 0.0
        %606 = vmatprep.subr.mxu0 0.0
        %607 = vmatpush1.msra.mxu0 0.0
        %608 = vmatprep.mubr.f32.mxu0 0.0
        %609 = vmatmul.mubr.f32.gmra.mrb[0].mxu0 %v517
        %v610 = vpop.f32.mrb[0].mxu0
        %v611 = vadd.f32 0.0, %v610
        %v612 = vpop.f32.mrb[0].mxu0
        %613 = vmatprep.mubr.f32.mxu0 0.0
        %614 = vmatmul.mubr.f32.gmra.mrb[0].mxu0 %v520
        %v615 = vpop.f32.mrb[0].mxu0
        %v616 = vadd.f32 0.0, %v615
        %v617 = vpop.f32.mrb[0].mxu0
        %618 = vmatprep.mubr.f32.mxu0 0.0
        %619 = vmatmul.mubr.f32.gmra.mrb[0].mxu0 %v523
        %v620 = vpop.f32.mrb[0].mxu0
        %v621 = vadd.f32 0.0, %v620
        %v622 = vpop.f32.mrb[0].mxu0
        %623 = vmatprep.mubr.f32.mxu0 0.0
        %624 = vmatmul.mubr.f32.gmra.mrb[0].mxu0 %v526
        %v625 = vpop.f32.mrb[0].mxu0
        %v626 = vadd.f32 0.0, %v625
        %v627 = vpop.f32.mrb[0].mxu0
        %628 = vmatprep.mubr.f32.mxu0 0.0
        %629 = vmatmul.mubr.f32.gmra.mrb[0].mxu0 %v529
        %v630 = vpop.f32.mrb[0].mxu0
        %v631 = vadd.f32 0.0, %v630
        %v632 = vpop.f32.mrb[0].mxu0
        %633 = vmatprep.mubr.f32.mxu0 0.0
        %634 = vmatmul.mubr.f32.gmra.mrb[0].mxu0 %v532
        %v635 = vpop.f32.mrb[0].mxu0
        %v636 = vadd.f32 0.0, %v635
        %v637 = vpop.f32.mrb[0].mxu0
        %638 = vmatprep.mubr.f32.mxu0 0.0
        %639 = vmatmul.mubr.f32.gmra.mrb[0].mxu0 %v535
        %v640 = vpop.f32.mrb[0].mxu0
        %v641 = vadd.f32 0.0, %v640
        %v642 = vpop.f32.mrb[0].mxu0
        %643 = vmatprep.mubr.f32.mxu0 0.0
        %644 = vmatmul.mubr.f32.gmra.mrb[0].mxu0 %v538
        %v645 = vpop.f32.mrb[0].mxu0
        %v646 = vadd.f32 0.0, %v645
        %v647 = vpop.f32.mrb[0].mxu0
        %648 = vdwg.mxu0
        %649 = vxpose.xlu0.b32.start [1/16] %v611, 128
        %650 = vxpose.xlu0.b32.cont [2/16] %v616, 128
        %651 = vxpose.xlu0.b32.cont [3/16] %v621, 128
        %652 = vxpose.xlu0.b32.cont [4/16] %v626, 128
        %653 = vxpose.xlu0.b32.cont [5/16] %v631, 128
        %654 = vxpose.xlu0.b32.cont [6/16] %v636, 128
        %655 = vxpose.xlu0.b32.cont [7/16] %v641, 128
        %656 = vxpose.xlu0.b32.cont [8/16] %v646, 128
        %657 = vxpose.xlu0.b32.cont [9/16] 0.0, 128
        %658 = vxpose.xlu0.b32.cont [10/16] 0.0, 128
        %659 = vxpose.xlu0.b32.cont [11/16] 0.0, 128
        %660 = vxpose.xlu0.b32.cont [12/16] 0.0, 128
        %661 = vxpose.xlu0.b32.cont [13/16] 0.0, 128
        %662 = vxpose.xlu0.b32.cont [14/16] 0.0, 128
        %663 = vxpose.xlu0.b32.cont [15/16] 0.0, 128
        %664 = vxpose.xlu0.b32.end [16/16] 0.0, 128
        %v665 = vpop.trf.xlu0
        %v666 = vpop.trf.xlu0
        %v667 = vpop.trf.xlu0
        %v668 = vpop.trf.xlu0
        %v669 = vpop.trf.xlu0
        %v670 = vpop.trf.xlu0
        %v671 = vpop.trf.xlu0
        %v672 = vpop.trf.xlu0
        %v673 = vpop.trf.xlu0
        %v674 = vpop.trf.xlu0
        %v675 = vpop.trf.xlu0
        %v676 = vpop.trf.xlu0
        %v677 = vpop.trf.xlu0
        %v678 = vpop.trf.xlu0
        %v679 = vpop.trf.xlu0
        %v680 = vpop.trf.xlu0
        %v681 = vld [vmem:[%s2] sm:$0x1]
        %v683 = vlaneseq
        %v684 = vshrl.u32 %v683, 7
        %v685 = vsub.s32 0, %v684
        %v686 = vrot.slane %v681, %v685
        %v688 = vadd.f32 %v665, %v686
        %v689 = vadd.f32 %v666, %v686
        %v690 = vadd.f32 %v667, %v686
        %v691 = vadd.f32 %v668, %v686
        %v692 = vadd.f32 %v669, %v686
        %v693 = vadd.f32 %v670, %v686
        %v694 = vadd.f32 %v671, %v686
        %v695 = vadd.f32 %v672, %v686
        %v696 = vadd.f32 %v673, %v686
        %v697 = vadd.f32 %v674, %v686
        %v698 = vadd.f32 %v675, %v686
        %v699 = vadd.f32 %v676, %v686
        %v700 = vadd.f32 %v677, %v686
        %v701 = vadd.f32 %v678, %v686
        %v702 = vadd.f32 %v679, %v686
        %v703 = vadd.f32 %v680, %v686
        %vm704 = vcmp.ge.f32.partialorder %v688, 0.0
        %vm705 = vcmp.ge.f32.partialorder %v689, 0.0
        %vm706 = vcmp.ge.f32.partialorder %v690, 0.0
        %vm707 = vcmp.ge.f32.partialorder %v691, 0.0
        %vm708 = vcmp.ge.f32.partialorder %v692, 0.0
        %vm709 = vcmp.ge.f32.partialorder %v693, 0.0
        %vm710 = vcmp.ge.f32.partialorder %v694, 0.0
        %vm711 = vcmp.ge.f32.partialorder %v695, 0.0
        %vm712 = vcmp.ge.f32.partialorder %v696, 0.0
        %vm713 = vcmp.ge.f32.partialorder %v697, 0.0
        %vm714 = vcmp.ge.f32.partialorder %v698, 0.0
        %vm715 = vcmp.ge.f32.partialorder %v699, 0.0
        %vm716 = vcmp.ge.f32.partialorder %v700, 0.0
        %vm717 = vcmp.ge.f32.partialorder %v701, 0.0
        %vm718 = vcmp.ge.f32.partialorder %v702, 0.0
        %vm719 = vcmp.ge.f32.partialorder %v703, 0.0
        %v720 = vmul.f32 %v688, 0.2
        %v721 = vmul.f32 %v689, 0.2
        %v722 = vmul.f32 %v690, 0.2
        %v723 = vmul.f32 %v691, 0.2
        %v724 = vmul.f32 %v692, 0.2
        %v725 = vmul.f32 %v693, 0.2
        %v726 = vmul.f32 %v694, 0.2
        %v727 = vmul.f32 %v695, 0.2
        %v728 = vmul.f32 %v696, 0.2
        %v729 = vmul.f32 %v697, 0.2
        %v730 = vmul.f32 %v698, 0.2
        %v731 = vmul.f32 %v699, 0.2
        %v732 = vmul.f32 %v700, 0.2
        %v733 = vmul.f32 %v701, 0.2
        %v734 = vmul.f32 %v702, 0.2
        %v735 = vmul.f32 %v703, 0.2
        %v736 = vsel %vm704, %v688, %v720
        %v737 = vsel %vm705, %v689, %v721
        %v738 = vsel %vm706, %v690, %v722
        %v739 = vsel %vm707, %v691, %v723
        %v740 = vsel %vm708, %v692, %v724
        %v741 = vsel %vm709, %v693, %v725
        %v742 = vsel %vm710, %v694, %v726
        %v743 = vsel %vm711, %v695, %v727
        %v744 = vsel %vm712, %v696, %v728
        %v745 = vsel %vm713, %v697, %v729
        %v746 = vsel %vm714, %v698, %v730
        %v747 = vsel %vm715, %v699, %v731
        %v748 = vsel %vm716, %v700, %v732
        %v749 = vsel %vm717, %v701, %v733
        %v750 = vsel %vm718, %v702, %v734
        %v751 = vsel %vm719, %v703, %v735
        %v752 = vpack.c.bf16 %v737, %v736
        %v753 = vpack.c.bf16 %v739, %v738
        %v754 = vpack.c.bf16 %v741, %v740
        %v755 = vpack.c.bf16 %v743, %v742
        %v756 = vpack.c.bf16 %v745, %v744
        %v757 = vpack.c.bf16 %v747, %v746
        %v758 = vpack.c.bf16 %v749, %v748
        %v759 = vpack.c.bf16 %v751, %v750
        %v760 = vld [vmem:[%s3] sm:$0xf]
        %v761 = vld [vmem:[%s3 + $0x4] sm:$0xf]
        %v762 = vld [vmem:[%s3 + $0x8] sm:$0xf]
        %v763 = vld [vmem:[%s3 + $0xc] sm:$0xf]
        %v764 = vld [vmem:[%s3 + $0x10] sm:$0xf]
        %v765 = vld [vmem:[%s3 + $0x14] sm:$0xf]
        %v766 = vld [vmem:[%s3 + $0x18] sm:$0xf]
        %v767 = vld [vmem:[%s3 + $0x1c] sm:$0xf]
        %v768 = vld [vmem:[%s4] sm:$0x1]
        %v770 = vlaneseq
        %v771 = vshrl.u32 %v770, 7
        %v772 = vsub.s32 0, %v771
        %v773 = vrot.slane %v768, %v772
        %v783 = vunpack.c.l.b16 %v760
        %v784 = vunpack.c.l.b16 %v761
        %v785 = vunpack.c.l.b16 %v762
        %v786 = vunpack.c.l.b16 %v763
        %v787 = vunpack.c.l.b16 %v764
        %v788 = vunpack.c.l.b16 %v765
        %v789 = vunpack.c.l.b16 %v766
        %v790 = vunpack.c.l.b16 %v767
        %v791 = vpack.c.b16 %v784, %v783
        %v792 = vpack.c.b16 %v786, %v785
        %v793 = vpack.c.b16 %v788, %v787
        %v794 = vpack.c.b16 %v790, %v789
        %vm799 = vcmask 523264
        %v801 = vsel %vm799, %v752, 0
        %v804 = vsel %vm799, %v753, 0
        %v807 = vsel %vm799, %v754, 0
        %v810 = vsel %vm799, %v755, 0
        %v813 = vsel %vm799, %v756, 0
        %v816 = vsel %vm799, %v757, 0
        %v819 = vsel %vm799, %v758, 0
        %v822 = vsel %vm799, %v759, 0
        %824 = vmatprep.subr.bf16.mxu0 0
        %825 = vmatpush1.bf16.msra.mxu0 %v791
        %826 = vmatprep.subr.bf16.mxu0 0
        %827 = vmatpush1.bf16.msra.mxu0 %v792
        %828 = vmatprep.subr.bf16.mxu0 0
        %829 = vmatpush1.bf16.msra.mxu0 %v793
        %830 = vmatprep.subr.bf16.mxu0 0
        %831 = vmatpush1.bf16.msra.mxu0 %v794
        %832 = vmatprep.subr.bf16.mxu0 0
        %833 = vmatpush1.bf16.msra.mxu0 0
        %834 = vmatprep.subr.bf16.mxu0 0
        %835 = vmatpush1.bf16.msra.mxu0 0
        %836 = vmatprep.subr.bf16.mxu0 0
        %837 = vmatpush1.bf16.msra.mxu0 0
        %838 = vmatprep.subr.bf16.mxu0 0
        %839 = vmatpush1.bf16.msra.mxu0 0
        %840 = vmatprep.subr.bf16.mxu0 0
        %841 = vmatpush1.bf16.msra.mxu0 0
        %842 = vmatprep.subr.bf16.mxu0 0
        %843 = vmatpush1.bf16.msra.mxu0 0
        %844 = vmatprep.subr.bf16.mxu0 0
        %845 = vmatpush1.bf16.msra.mxu0 0
        %846 = vmatprep.subr.bf16.mxu0 0
        %847 = vmatpush1.bf16.msra.mxu0 0
        %848 = vmatprep.subr.bf16.mxu0 0
        %849 = vmatpush1.bf16.msra.mxu0 0
        %850 = vmatprep.subr.bf16.mxu0 0
        %851 = vmatpush1.bf16.msra.mxu0 0
        %852 = vmatprep.subr.bf16.mxu0 0
        %853 = vmatpush1.bf16.msra.mxu0 0
        %854 = vmatprep.subr.bf16.mxu0 0
        %855 = vmatpush1.bf16.msra.mxu0 0
        %856 = vmatprep.mubr.bf16.mxu0 0
        %857 = vmatmul.mubr.bf16.gmra.mrb[0].mxu0 %v801
        %v858 = vpop.f32.mrb[0].mxu0
        %v859 = vadd.f32 %v773, %v858
        %v860 = vpop.f32.mrb[0].mxu0
        %v861 = vpop.f32.mrb[0].mxu0
        %v862 = vadd.f32 %v773, %v861
        %v863 = vpop.f32.mrb[0].mxu0
        %864 = vmatprep.mubr.bf16.mxu0 0
        %865 = vmatmul.mubr.bf16.gmra.mrb[0].mxu0 %v804
        %v866 = vpop.f32.mrb[0].mxu0
        %v867 = vadd.f32 %v773, %v866
        %v868 = vpop.f32.mrb[0].mxu0
        %v869 = vpop.f32.mrb[0].mxu0
        %v870 = vadd.f32 %v773, %v869
        %v871 = vpop.f32.mrb[0].mxu0
        %872 = vmatprep.mubr.bf16.mxu0 0
        %873 = vmatmul.mubr.bf16.gmra.mrb[0].mxu0 %v807
        %v874 = vpop.f32.mrb[0].mxu0
        %v875 = vadd.f32 %v773, %v874
        %v876 = vpop.f32.mrb[0].mxu0
        %v877 = vpop.f32.mrb[0].mxu0
        %v878 = vadd.f32 %v773, %v877
        %v879 = vpop.f32.mrb[0].mxu0
        %880 = vmatprep.mubr.bf16.mxu0 0
        %881 = vmatmul.mubr.bf16.gmra.mrb[0].mxu0 %v810
        %v882 = vpop.f32.mrb[0].mxu0
        %v883 = vadd.f32 %v773, %v882
        %v884 = vpop.f32.mrb[0].mxu0
        %v885 = vpop.f32.mrb[0].mxu0
        %v886 = vadd.f32 %v773, %v885
        %v887 = vpop.f32.mrb[0].mxu0
        %888 = vmatprep.mubr.bf16.mxu0 0
        %889 = vmatmul.mubr.bf16.gmra.mrb[0].mxu0 %v813
        %v890 = vpop.f32.mrb[0].mxu0
        %v891 = vadd.f32 %v773, %v890
        %v892 = vpop.f32.mrb[0].mxu0
        %v893 = vpop.f32.mrb[0].mxu0
        %v894 = vadd.f32 %v773, %v893
        %v895 = vpop.f32.mrb[0].mxu0
        %896 = vmatprep.mubr.bf16.mxu0 0
        %897 = vmatmul.mubr.bf16.gmra.mrb[0].mxu0 %v816
        %v898 = vpop.f32.mrb[0].mxu0
        %v899 = vadd.f32 %v773, %v898
        %v900 = vpop.f32.mrb[0].mxu0
        %v901 = vpop.f32.mrb[0].mxu0
        %v902 = vadd.f32 %v773, %v901
        %v903 = vpop.f32.mrb[0].mxu0
        %904 = vmatprep.mubr.bf16.mxu0 0
        %905 = vmatmul.mubr.bf16.gmra.mrb[0].mxu0 %v819
        %v906 = vpop.f32.mrb[0].mxu0
        %v907 = vadd.f32 %v773, %v906
        %v908 = vpop.f32.mrb[0].mxu0
        %v909 = vpop.f32.mrb[0].mxu0
        %v910 = vadd.f32 %v773, %v909
        %v911 = vpop.f32.mrb[0].mxu0
        %912 = vmatprep.mubr.bf16.mxu0 0
        %913 = vmatmul.mubr.bf16.gmra.mrb[0].mxu0 %v822
        %v914 = vpop.f32.mrb[0].mxu0
        %v915 = vadd.f32 %v773, %v914
        %v916 = vpop.f32.mrb[0].mxu0
        %v917 = vpop.f32.mrb[0].mxu0
        %v918 = vadd.f32 %v773, %v917
        %v919 = vpop.f32.mrb[0].mxu0
        %920 = vdwg.mxu0
        %vm921 = vcmp.ge.f32.partialorder %v859, 0.0
        %vm922 = vcmp.ge.f32.partialorder %v862, 0.0
        %vm923 = vcmp.ge.f32.partialorder %v867, 0.0
        %vm924 = vcmp.ge.f32.partialorder %v870, 0.0
        %vm925 = vcmp.ge.f32.partialorder %v875, 0.0
        %vm926 = vcmp.ge.f32.partialorder %v878, 0.0
        %vm927 = vcmp.ge.f32.partialorder %v883, 0.0
        %vm928 = vcmp.ge.f32.partialorder %v886, 0.0
        %vm929 = vcmp.ge.f32.partialorder %v891, 0.0
        %vm930 = vcmp.ge.f32.partialorder %v894, 0.0
        %vm931 = vcmp.ge.f32.partialorder %v899, 0.0
        %vm932 = vcmp.ge.f32.partialorder %v902, 0.0
        %vm933 = vcmp.ge.f32.partialorder %v907, 0.0
        %vm934 = vcmp.ge.f32.partialorder %v910, 0.0
        %vm935 = vcmp.ge.f32.partialorder %v915, 0.0
        %vm936 = vcmp.ge.f32.partialorder %v918, 0.0
        %v937 = vmul.f32 %v859, 0.2
        %v938 = vmul.f32 %v862, 0.2
        %v939 = vmul.f32 %v867, 0.2
        %v940 = vmul.f32 %v870, 0.2
        %v941 = vmul.f32 %v875, 0.2
        %v942 = vmul.f32 %v878, 0.2
        %v943 = vmul.f32 %v883, 0.2
        %v944 = vmul.f32 %v886, 0.2
        %v945 = vmul.f32 %v891, 0.2
        %v946 = vmul.f32 %v894, 0.2
        %v947 = vmul.f32 %v899, 0.2
        %v948 = vmul.f32 %v902, 0.2
        %v949 = vmul.f32 %v907, 0.2
        %v950 = vmul.f32 %v910, 0.2
        %v951 = vmul.f32 %v915, 0.2
        %v952 = vmul.f32 %v918, 0.2
        %v953 = vsel %vm921, %v859, %v937
        %v954 = vsel %vm922, %v862, %v938
        %v955 = vsel %vm923, %v867, %v939
        %v956 = vsel %vm924, %v870, %v940
        %v957 = vsel %vm925, %v875, %v941
        %v958 = vsel %vm926, %v878, %v942
        %v959 = vsel %vm927, %v883, %v943
        %v960 = vsel %vm928, %v886, %v944
        %v961 = vsel %vm929, %v891, %v945
        %v962 = vsel %vm930, %v894, %v946
        %v963 = vsel %vm931, %v899, %v947
        %v964 = vsel %vm932, %v902, %v948
        %v965 = vsel %vm933, %v907, %v949
        %v966 = vsel %vm934, %v910, %v950
        %v967 = vsel %vm935, %v915, %v951
        %v968 = vsel %vm936, %v918, %v952
        %v969 = vrot.slane %v953, 4
        %v970 = vmax.f32 %v953, %v969
        %v971 = vrot.slane %v970, 2
        %v972 = vmax.f32 %v970, %v971
        %v973 = vrot.slane %v972, 1
        %v974 = vmax.f32 %v972, %v973
        %v975 = vrot.slane %v954, 4
        %v976 = vmax.f32 %v954, %v975
        %v977 = vrot.slane %v976, 2
        %v978 = vmax.f32 %v976, %v977
        %v979 = vrot.slane %v978, 1
        %v980 = vmax.f32 %v978, %v979
        %v981 = vrot.slane %v955, 4
        %v982 = vmax.f32 %v955, %v981
        %v983 = vrot.slane %v982, 2
        %v984 = vmax.f32 %v982, %v983
        %v985 = vrot.slane %v984, 1
        %v986 = vmax.f32 %v984, %v985
        %v987 = vrot.slane %v956, 4
        %v988 = vmax.f32 %v956, %v987
        %v989 = vrot.slane %v988, 2
        %v990 = vmax.f32 %v988, %v989
        %v991 = vrot.slane %v990, 1
        %v992 = vmax.f32 %v990, %v991
        %v993 = vrot.slane %v957, 4
        %v994 = vmax.f32 %v957, %v993
        %v995 = vrot.slane %v994, 2
        %v996 = vmax.f32 %v994, %v995
        %v997 = vrot.slane %v996, 1
        %v998 = vmax.f32 %v996, %v997
        %v999 = vrot.slane %v958, 4
        %v1000 = vmax.f32 %v958, %v999
        %v1001 = vrot.slane %v1000, 2
        %v1002 = vmax.f32 %v1000, %v1001
        %v1003 = vrot.slane %v1002, 1
        %v1004 = vmax.f32 %v1002, %v1003
        %v1005 = vrot.slane %v959, 4
        %v1006 = vmax.f32 %v959, %v1005
        %v1007 = vrot.slane %v1006, 2
        %v1008 = vmax.f32 %v1006, %v1007
        %v1009 = vrot.slane %v1008, 1
        %v1010 = vmax.f32 %v1008, %v1009
        %v1011 = vrot.slane %v960, 4
        %v1012 = vmax.f32 %v960, %v1011
        %v1013 = vrot.slane %v1012, 2
        %v1014 = vmax.f32 %v1012, %v1013
        %v1015 = vrot.slane %v1014, 1
        %v1016 = vmax.f32 %v1014, %v1015
        %v1017 = vrot.slane %v961, 4
        %v1018 = vmax.f32 %v961, %v1017
        %v1019 = vrot.slane %v1018, 2
        %v1020 = vmax.f32 %v1018, %v1019
        %v1021 = vrot.slane %v1020, 1
        %v1022 = vmax.f32 %v1020, %v1021
        %v1023 = vrot.slane %v962, 4
        %v1024 = vmax.f32 %v962, %v1023
        %v1025 = vrot.slane %v1024, 2
        %v1026 = vmax.f32 %v1024, %v1025
        %v1027 = vrot.slane %v1026, 1
        %v1028 = vmax.f32 %v1026, %v1027
        %v1029 = vrot.slane %v963, 4
        %v1030 = vmax.f32 %v963, %v1029
        %v1031 = vrot.slane %v1030, 2
        %v1032 = vmax.f32 %v1030, %v1031
        %v1033 = vrot.slane %v1032, 1
        %v1034 = vmax.f32 %v1032, %v1033
        %v1035 = vrot.slane %v964, 4
        %v1036 = vmax.f32 %v964, %v1035
        %v1037 = vrot.slane %v1036, 2
        %v1038 = vmax.f32 %v1036, %v1037
        %v1039 = vrot.slane %v1038, 1
        %v1040 = vmax.f32 %v1038, %v1039
        %v1041 = vrot.slane %v965, 4
        %v1042 = vmax.f32 %v965, %v1041
        %v1043 = vrot.slane %v1042, 2
        %v1044 = vmax.f32 %v1042, %v1043
        %v1045 = vrot.slane %v1044, 1
        %v1046 = vmax.f32 %v1044, %v1045
        %v1047 = vrot.slane %v966, 4
        %v1048 = vmax.f32 %v966, %v1047
        %v1049 = vrot.slane %v1048, 2
        %v1050 = vmax.f32 %v1048, %v1049
        %v1051 = vrot.slane %v1050, 1
        %v1052 = vmax.f32 %v1050, %v1051
        %v1053 = vrot.slane %v967, 4
        %v1054 = vmax.f32 %v967, %v1053
        %v1055 = vrot.slane %v1054, 2
        %v1056 = vmax.f32 %v1054, %v1055
        %v1057 = vrot.slane %v1056, 1
        %v1058 = vmax.f32 %v1056, %v1057
        %v1059 = vrot.slane %v968, 4
        %v1060 = vmax.f32 %v968, %v1059
        %v1061 = vrot.slane %v1060, 2
        %v1062 = vmax.f32 %v1060, %v1061
        %v1063 = vrot.slane %v1062, 1
        %v1064 = vmax.f32 %v1062, %v1063
        %v1065 = vpack.c.bf16 %v974, %v974
        %v1066 = vpack.c.bf16 %v980, %v980
        %v1067 = vpack.c.bf16 %v986, %v986
        %v1068 = vpack.c.bf16 %v992, %v992
        %v1069 = vpack.c.bf16 %v998, %v998
        %v1070 = vpack.c.bf16 %v1004, %v1004
        %v1071 = vpack.c.bf16 %v1010, %v1010
        %v1072 = vpack.c.bf16 %v1016, %v1016
        %v1073 = vpack.c.bf16 %v1022, %v1022
        %v1074 = vpack.c.bf16 %v1028, %v1028
        %v1075 = vpack.c.bf16 %v1034, %v1034
        %v1076 = vpack.c.bf16 %v1040, %v1040
        %v1077 = vpack.c.bf16 %v1046, %v1046
        %v1078 = vpack.c.bf16 %v1052, %v1052
        %v1079 = vpack.c.bf16 %v1058, %v1058
        %v1080 = vpack.c.bf16 %v1064, %v1064
        %v1081 = vld [vmem:[#allocation3] sm:$0xff]
        %v1082 = vld [vmem:[#allocation3 + $0x8] sm:$0xff]
        %v1083 = vld [vmem:[#allocation3 + $0x10] sm:$0xff]
        %v1084 = vld [vmem:[#allocation3 + $0x18] sm:$0xff]
        %v1085 = vld [vmem:[#allocation3 + $0x20] sm:$0xff]
        %v1086 = vld [vmem:[#allocation3 + $0x28] sm:$0xff]
        %v1087 = vld [vmem:[#allocation3 + $0x30] sm:$0xff]
        %v1088 = vld [vmem:[#allocation3 + $0x38] sm:$0xff]
        %v1089 = vld [vmem:[#allocation3 + $0x40] sm:$0xff]
        %v1090 = vld [vmem:[#allocation3 + $0x48] sm:$0xff]
        %v1091 = vld [vmem:[#allocation3 + $0x50] sm:$0xff]
        %v1092 = vld [vmem:[#allocation3 + $0x58] sm:$0xff]
        %v1093 = vld [vmem:[#allocation3 + $0x60] sm:$0xff]
        %v1094 = vld [vmem:[#allocation3 + $0x68] sm:$0xff]
        %v1095 = vld [vmem:[#allocation3 + $0x70] sm:$0xff]
        %v1096 = vld [vmem:[#allocation3 + $0x78] sm:$0xff]
        %v1097 = vld [vmem:[#allocation3 + $0x80] sm:$0xff]
        %v1098 = vld [vmem:[#allocation3 + $0x88] sm:$0xff]
        %v1099 = vld [vmem:[#allocation3 + $0x90] sm:$0xff]
        %v1100 = vld [vmem:[#allocation3 + $0x98] sm:$0xff]
        %v1101 = vld [vmem:[#allocation3 + $0xa0] sm:$0xff]
        %v1102 = vld [vmem:[#allocation3 + $0xa8] sm:$0xff]
        %v1103 = vld [vmem:[#allocation3 + $0xb0] sm:$0xff]
        %v1104 = vld [vmem:[#allocation3 + $0xb8] sm:$0xff]
        %v1105 = vld [vmem:[#allocation3 + $0xc0] sm:$0xff]
        %v1106 = vld [vmem:[#allocation3 + $0xc8] sm:$0xff]
        %v1107 = vld [vmem:[#allocation3 + $0xd0] sm:$0xff]
        %v1108 = vld [vmem:[#allocation3 + $0xd8] sm:$0xff]
        %v1109 = vld [vmem:[#allocation3 + $0xe0] sm:$0xff]
        %v1110 = vld [vmem:[#allocation3 + $0xe8] sm:$0xff]
        %v1111 = vld [vmem:[#allocation3 + $0xf0] sm:$0xff]
        %v1112 = vld [vmem:[#allocation3 + $0xf8] sm:$0xff]
        %v1113 = vld [vmem:[#allocation3 + $0x100] sm:$0xff]
        %v1114 = vld [vmem:[#allocation3 + $0x108] sm:$0xff]
        %v1115 = vld [vmem:[#allocation3 + $0x110] sm:$0xff]
        %v1116 = vld [vmem:[#allocation3 + $0x118] sm:$0xff]
        %v1117 = vld [vmem:[#allocation3 + $0x120] sm:$0xff]
        %v1118 = vld [vmem:[#allocation3 + $0x128] sm:$0xff]
        %v1119 = vld [vmem:[#allocation3 + $0x130] sm:$0xff]
        %v1120 = vld [vmem:[#allocation3 + $0x138] sm:$0xff]
        %v1121 = vld [vmem:[#allocation3 + $0x140] sm:$0xff]
        %v1122 = vld [vmem:[#allocation3 + $0x148] sm:$0xff]
        %v1123 = vld [vmem:[#allocation3 + $0x150] sm:$0xff]
        %v1124 = vld [vmem:[#allocation3 + $0x158] sm:$0xff]
        %v1125 = vld [vmem:[#allocation3 + $0x160] sm:$0xff]
        %v1126 = vld [vmem:[#allocation3 + $0x168] sm:$0xff]
        %v1127 = vld [vmem:[#allocation3 + $0x170] sm:$0xff]
        %v1128 = vld [vmem:[#allocation3 + $0x178] sm:$0xff]
        %v1129 = vld [vmem:[#allocation3 + $0x180] sm:$0xff]
        %v1130 = vld [vmem:[#allocation3 + $0x188] sm:$0xff]
        %v1131 = vld [vmem:[#allocation3 + $0x190] sm:$0xff]
        %v1132 = vld [vmem:[#allocation3 + $0x198] sm:$0xff]
        %v1133 = vld [vmem:[#allocation3 + $0x1a0] sm:$0xff]
        %v1134 = vld [vmem:[#allocation3 + $0x1a8] sm:$0xff]
        %v1135 = vld [vmem:[#allocation3 + $0x1b0] sm:$0xff]
        %v1136 = vld [vmem:[#allocation3 + $0x1b8] sm:$0xff]
        %v1137 = vld [vmem:[#allocation3 + $0x1c0] sm:$0xff]
        %v1138 = vld [vmem:[#allocation3 + $0x1c8] sm:$0xff]
        %v1139 = vld [vmem:[#allocation3 + $0x1d0] sm:$0xff]
        %v1140 = vld [vmem:[#allocation3 + $0x1d8] sm:$0xff]
        %v1141 = vld [vmem:[#allocation3 + $0x1e0] sm:$0xff]
        %v1142 = vld [vmem:[#allocation3 + $0x1e8] sm:$0xff]
        %v1143 = vld [vmem:[#allocation3 + $0x1f0] sm:$0xff]
        %v1144 = vld [vmem:[#allocation3 + $0x1f8] sm:$0xff]
        %v1145 = vld [vmem:[%s6] sm:$0xff]
        %v1147 = vlaneseq
        %v1148 = vshrl.u32 %v1147, 7
        %v1149 = vsub.s32 0, %v1148
        %v1150 = vrot.slane %v1145, %v1149
        %v1151 = vlaneseq
        %v1152 = vshrl.u32 %v1151, 7
        %v1153 = vsub.s32 1, %v1152
        %v1154 = vrot.slane %v1145, %v1153
        %v1155 = vlaneseq
        %v1156 = vshrl.u32 %v1155, 7
        %v1157 = vsub.s32 2, %v1156
        %v1158 = vrot.slane %v1145, %v1157
        %v1159 = vlaneseq
        %v1160 = vshrl.u32 %v1159, 7
        %v1161 = vsub.s32 3, %v1160
        %v1162 = vrot.slane %v1145, %v1161
        %v1163 = vlaneseq
        %v1164 = vshrl.u32 %v1163, 7
        %v1165 = vsub.s32 4, %v1164
        %v1166 = vrot.slane %v1145, %v1165
        %v1167 = vlaneseq
        %v1168 = vshrl.u32 %v1167, 7
        %v1169 = vsub.s32 5, %v1168
        %v1170 = vrot.slane %v1145, %v1169
        %v1171 = vlaneseq
        %v1172 = vshrl.u32 %v1171, 7
        %v1173 = vsub.s32 6, %v1172
        %v1174 = vrot.slane %v1145, %v1173
        %v1175 = vlaneseq
        %v1176 = vshrl.u32 %v1175, 7
        %v1177 = vsub.s32 7, %v1176
        %v1178 = vrot.slane %v1145, %v1177
        %v1203 = vunpack.c.l.b16 %v1065
        %v1204 = vunpack.c.l.b16 %v1066
        %v1205 = vunpack.c.l.b16 %v1067
        %v1206 = vunpack.c.l.b16 %v1068
        %v1207 = vunpack.c.l.b16 %v1069
        %v1208 = vunpack.c.l.b16 %v1070
        %v1209 = vunpack.c.l.b16 %v1071
        %v1210 = vunpack.c.l.b16 %v1072
        %v1211 = vunpack.c.l.b16 %v1073
        %v1212 = vunpack.c.l.b16 %v1074
        %v1213 = vunpack.c.l.b16 %v1075
        %v1214 = vunpack.c.l.b16 %v1076
        %v1215 = vunpack.c.l.b16 %v1077
        %v1216 = vunpack.c.l.b16 %v1078
        %v1217 = vunpack.c.l.b16 %v1079
        %v1218 = vunpack.c.l.b16 %v1080
        %vm1219 = vcmask 1041409
        %v1220 = vsel %vm1219, %v1204, %v1203
        %vm1221 = vcmask 1042434
        %v1222 = vsel %vm1221, %v1205, %v1220
        %vm1223 = vcmask 1043459
        %v1224 = vsel %vm1223, %v1206, %v1222
        %vm1225 = vcmask 1044484
        %v1226 = vsel %vm1225, %v1207, %v1224
        %vm1227 = vcmask 1045509
        %v1228 = vsel %vm1227, %v1208, %v1226
        %vm1229 = vcmask 1046534
        %v1230 = vsel %vm1229, %v1209, %v1228
        %vm1231 = vcmask 1047559
        %v1232 = vsel %vm1231, %v1210, %v1230
        %v1233 = vsel %vm1219, %v1212, %v1211
        %v1234 = vsel %vm1221, %v1213, %v1233
        %v1235 = vsel %vm1223, %v1214, %v1234
        %v1236 = vsel %vm1225, %v1215, %v1235
        %v1237 = vsel %vm1227, %v1216, %v1236
        %v1238 = vsel %vm1229, %v1217, %v1237
        %v1239 = vsel %vm1231, %v1218, %v1238
        %v1240 = vpack.c.b16 %v1239, %v1232
        %v1306 = vunpack.c.l.b16 %v1081
        %v1307 = vunpack.c.h.b16 %v1081
        %v1308 = vunpack.c.l.b16 %v1082
        %v1309 = vunpack.c.h.b16 %v1082
        %v1310 = vunpack.c.l.b16 %v1083
        %v1311 = vunpack.c.h.b16 %v1083
        %v1312 = vunpack.c.l.b16 %v1084
        %v1313 = vunpack.c.h.b16 %v1084
        %v1314 = vunpack.c.l.b16 %v1085
        %v1315 = vunpack.c.h.b16 %v1085
        %v1316 = vunpack.c.l.b16 %v1086
        %v1317 = vunpack.c.h.b16 %v1086
        %v1318 = vunpack.c.l.b16 %v1087
        %v1319 = vunpack.c.h.b16 %v1087
        %v1320 = vunpack.c.l.b16 %v1088
        %v1321 = vunpack.c.h.b16 %v1088
        %v1322 = vunpack.c.l.b16 %v1089
        %v1323 = vunpack.c.h.b16 %v1089
        %v1324 = vunpack.c.l.b16 %v1090
        %v1325 = vunpack.c.h.b16 %v1090
        %v1326 = vunpack.c.l.b16 %v1091
        %v1327 = vunpack.c.h.b16 %v1091
        %v1328 = vunpack.c.l.b16 %v1092
        %v1329 = vunpack.c.h.b16 %v1092
        %v1330 = vunpack.c.l.b16 %v1093
        %v1331 = vunpack.c.h.b16 %v1093
        %v1332 = vunpack.c.l.b16 %v1094
        %v1333 = vunpack.c.h.b16 %v1094
        %v1334 = vunpack.c.l.b16 %v1095
        %v1335 = vunpack.c.h.b16 %v1095
        %v1336 = vunpack.c.l.b16 %v1096
        %v1337 = vunpack.c.h.b16 %v1096
        %v1338 = vunpack.c.l.b16 %v1097
        %v1339 = vunpack.c.h.b16 %v1097
        %v1340 = vunpack.c.l.b16 %v1098
        %v1341 = vunpack.c.h.b16 %v1098
        %v1342 = vunpack.c.l.b16 %v1099
        %v1343 = vunpack.c.h.b16 %v1099
        %v1344 = vunpack.c.l.b16 %v1100
        %v1345 = vunpack.c.h.b16 %v1100
        %v1346 = vunpack.c.l.b16 %v1101
        %v1347 = vunpack.c.h.b16 %v1101
        %v1348 = vunpack.c.l.b16 %v1102
        %v1349 = vunpack.c.h.b16 %v1102
        %v1350 = vunpack.c.l.b16 %v1103
        %v1351 = vunpack.c.h.b16 %v1103
        %v1352 = vunpack.c.l.b16 %v1104
        %v1353 = vunpack.c.h.b16 %v1104
        %v1354 = vunpack.c.l.b16 %v1105
        %v1355 = vunpack.c.h.b16 %v1105
        %v1356 = vunpack.c.l.b16 %v1106
        %v1357 = vunpack.c.h.b16 %v1106
        %v1358 = vunpack.c.l.b16 %v1107
        %v1359 = vunpack.c.h.b16 %v1107
        %v1360 = vunpack.c.l.b16 %v1108
        %v1361 = vunpack.c.h.b16 %v1108
        %v1362 = vunpack.c.l.b16 %v1109
        %v1363 = vunpack.c.h.b16 %v1109
        %v1364 = vunpack.c.l.b16 %v1110
        %v1365 = vunpack.c.h.b16 %v1110
        %v1366 = vunpack.c.l.b16 %v1111
        %v1367 = vunpack.c.h.b16 %v1111
        %v1368 = vunpack.c.l.b16 %v1112
        %v1369 = vunpack.c.h.b16 %v1112
        %v1370 = vunpack.c.l.b16 %v1113
        %v1371 = vunpack.c.h.b16 %v1113
        %v1372 = vunpack.c.l.b16 %v1114
        %v1373 = vunpack.c.h.b16 %v1114
        %v1374 = vunpack.c.l.b16 %v1115
        %v1375 = vunpack.c.h.b16 %v1115
        %v1376 = vunpack.c.l.b16 %v1116
        %v1377 = vunpack.c.h.b16 %v1116
        %v1378 = vunpack.c.l.b16 %v1117
        %v1379 = vunpack.c.h.b16 %v1117
        %v1380 = vunpack.c.l.b16 %v1118
        %v1381 = vunpack.c.h.b16 %v1118
        %v1382 = vunpack.c.l.b16 %v1119
        %v1383 = vunpack.c.h.b16 %v1119
        %v1384 = vunpack.c.l.b16 %v1120
        %v1385 = vunpack.c.h.b16 %v1120
        %v1386 = vunpack.c.l.b16 %v1121
        %v1387 = vunpack.c.h.b16 %v1121
        %v1388 = vunpack.c.l.b16 %v1122
        %v1389 = vunpack.c.h.b16 %v1122
        %v1390 = vunpack.c.l.b16 %v1123
        %v1391 = vunpack.c.h.b16 %v1123
        %v1392 = vunpack.c.l.b16 %v1124
        %v1393 = vunpack.c.h.b16 %v1124
        %v1394 = vunpack.c.l.b16 %v1125
        %v1395 = vunpack.c.h.b16 %v1125
        %v1396 = vunpack.c.l.b16 %v1126
        %v1397 = vunpack.c.h.b16 %v1126
        %v1398 = vunpack.c.l.b16 %v1127
        %v1399 = vunpack.c.h.b16 %v1127
        %v1400 = vunpack.c.l.b16 %v1128
        %v1401 = vunpack.c.h.b16 %v1128
        %v1402 = vunpack.c.l.b16 %v1129
        %v1403 = vunpack.c.h.b16 %v1129
        %v1404 = vunpack.c.l.b16 %v1130
        %v1405 = vunpack.c.h.b16 %v1130
        %v1406 = vunpack.c.l.b16 %v1131
        %v1407 = vunpack.c.h.b16 %v1131
        %v1408 = vunpack.c.l.b16 %v1132
        %v1409 = vunpack.c.h.b16 %v1132
        %v1410 = vunpack.c.l.b16 %v1133
        %v1411 = vunpack.c.h.b16 %v1133
        %v1412 = vunpack.c.l.b16 %v1134
        %v1413 = vunpack.c.h.b16 %v1134
        %v1414 = vunpack.c.l.b16 %v1135
        %v1415 = vunpack.c.h.b16 %v1135
        %v1416 = vunpack.c.l.b16 %v1136
        %v1417 = vunpack.c.h.b16 %v1136
        %v1418 = vunpack.c.l.b16 %v1137
        %v1419 = vunpack.c.h.b16 %v1137
        %v1420 = vunpack.c.l.b16 %v1138
        %v1421 = vunpack.c.h.b16 %v1138
        %v1422 = vunpack.c.l.b16 %v1139
        %v1423 = vunpack.c.h.b16 %v1139
        %v1424 = vunpack.c.l.b16 %v1140
        %v1425 = vunpack.c.h.b16 %v1140
        %v1426 = vunpack.c.l.b16 %v1141
        %v1427 = vunpack.c.h.b16 %v1141
        %v1428 = vunpack.c.l.b16 %v1142
        %v1429 = vunpack.c.h.b16 %v1142
        %v1430 = vunpack.c.l.b16 %v1143
        %v1431 = vunpack.c.h.b16 %v1143
        %v1432 = vunpack.c.l.b16 %v1144
        %v1433 = vunpack.c.h.b16 %v1144
        %v1434 = vpack.c.b16 %v1314, %v1306
        %v1435 = vpack.c.b16 %v1315, %v1307
        %v1436 = vpack.c.b16 %v1316, %v1308
        %v1437 = vpack.c.b16 %v1317, %v1309
        %v1438 = vpack.c.b16 %v1318, %v1310
        %v1439 = vpack.c.b16 %v1319, %v1311
        %v1440 = vpack.c.b16 %v1320, %v1312
        %v1441 = vpack.c.b16 %v1321, %v1313
        %v1442 = vpack.c.b16 %v1330, %v1322
        %v1443 = vpack.c.b16 %v1331, %v1323
        %v1444 = vpack.c.b16 %v1332, %v1324
        %v1445 = vpack.c.b16 %v1333, %v1325
        %v1446 = vpack.c.b16 %v1334, %v1326
        %v1447 = vpack.c.b16 %v1335, %v1327
        %v1448 = vpack.c.b16 %v1336, %v1328
        %v1449 = vpack.c.b16 %v1337, %v1329
        %v1450 = vpack.c.b16 %v1346, %v1338
        %v1451 = vpack.c.b16 %v1347, %v1339
        %v1452 = vpack.c.b16 %v1348, %v1340
        %v1453 = vpack.c.b16 %v1349, %v1341
        %v1454 = vpack.c.b16 %v1350, %v1342
        %v1455 = vpack.c.b16 %v1351, %v1343
        %v1456 = vpack.c.b16 %v1352, %v1344
        %v1457 = vpack.c.b16 %v1353, %v1345
        %v1458 = vpack.c.b16 %v1362, %v1354
        %v1459 = vpack.c.b16 %v1363, %v1355
        %v1460 = vpack.c.b16 %v1364, %v1356
        %v1461 = vpack.c.b16 %v1365, %v1357
        %v1462 = vpack.c.b16 %v1366, %v1358
        %v1463 = vpack.c.b16 %v1367, %v1359
        %v1464 = vpack.c.b16 %v1368, %v1360
        %v1465 = vpack.c.b16 %v1369, %v1361
        %v1466 = vpack.c.b16 %v1378, %v1370
        %v1467 = vpack.c.b16 %v1379, %v1371
        %v1468 = vpack.c.b16 %v1380, %v1372
        %v1469 = vpack.c.b16 %v1381, %v1373
        %v1470 = vpack.c.b16 %v1382, %v1374
        %v1471 = vpack.c.b16 %v1383, %v1375
        %v1472 = vpack.c.b16 %v1384, %v1376
        %v1473 = vpack.c.b16 %v1385, %v1377
        %v1474 = vpack.c.b16 %v1394, %v1386
        %v1475 = vpack.c.b16 %v1395, %v1387
        %v1476 = vpack.c.b16 %v1396, %v1388
        %v1477 = vpack.c.b16 %v1397, %v1389
        %v1478 = vpack.c.b16 %v1398, %v1390
        %v1479 = vpack.c.b16 %v1399, %v1391
        %v1480 = vpack.c.b16 %v1400, %v1392
        %v1481 = vpack.c.b16 %v1401, %v1393
        %v1482 = vpack.c.b16 %v1410, %v1402
        %v1483 = vpack.c.b16 %v1411, %v1403
        %v1484 = vpack.c.b16 %v1412, %v1404
        %v1485 = vpack.c.b16 %v1413, %v1405
        %v1486 = vpack.c.b16 %v1414, %v1406
        %v1487 = vpack.c.b16 %v1415, %v1407
        %v1488 = vpack.c.b16 %v1416, %v1408
        %v1489 = vpack.c.b16 %v1417, %v1409
        %v1490 = vpack.c.b16 %v1426, %v1418
        %v1491 = vpack.c.b16 %v1427, %v1419
        %v1492 = vpack.c.b16 %v1428, %v1420
        %v1493 = vpack.c.b16 %v1429, %v1421
        %v1494 = vpack.c.b16 %v1430, %v1422
        %v1495 = vpack.c.b16 %v1431, %v1423
        %v1496 = vpack.c.b16 %v1432, %v1424
        %v1497 = vpack.c.b16 %v1433, %v1425
        %1562 = vmatprep.subr.bf16.mxu0 %v1435
        %1563 = vmatpush1.bf16.msra.mxu0 %v1434
        %1564 = vmatprep.subr.bf16.mxu0 %v1443
        %1565 = vmatpush1.bf16.msra.mxu0 %v1442
        %1566 = vmatprep.subr.bf16.mxu0 %v1451
        %1567 = vmatpush1.bf16.msra.mxu0 %v1450
        %1568 = vmatprep.subr.bf16.mxu0 %v1459
        %1569 = vmatpush1.bf16.msra.mxu0 %v1458
        %1570 = vmatprep.subr.bf16.mxu0 %v1467
        %1571 = vmatpush1.bf16.msra.mxu0 %v1466
        %1572 = vmatprep.subr.bf16.mxu0 %v1475
        %1573 = vmatpush1.bf16.msra.mxu0 %v1474
        %1574 = vmatprep.subr.bf16.mxu0 %v1483
        %1575 = vmatpush1.bf16.msra.mxu0 %v1482
        %1576 = vmatprep.subr.bf16.mxu0 %v1491
        %1577 = vmatpush1.bf16.msra.mxu0 %v1490
        %1578 = vmatprep.subr.bf16.mxu0 0
        %1579 = vmatpush1.bf16.msra.mxu0 0
        %1580 = vmatprep.subr.bf16.mxu0 0
        %1581 = vmatpush1.bf16.msra.mxu0 0
        %1582 = vmatprep.subr.bf16.mxu0 0
        %1583 = vmatpush1.bf16.msra.mxu0 0
        %1584 = vmatprep.subr.bf16.mxu0 0
        %1585 = vmatpush1.bf16.msra.mxu0 0
        %1586 = vmatprep.subr.bf16.mxu0 0
        %1587 = vmatpush1.bf16.msra.mxu0 0
        %1588 = vmatprep.subr.bf16.mxu0 0
        %1589 = vmatpush1.bf16.msra.mxu0 0
        %1590 = vmatprep.subr.bf16.mxu0 0
        %1591 = vmatpush1.bf16.msra.mxu0 0
        %1592 = vmatprep.subr.bf16.mxu0 0
        %1593 = vmatpush1.bf16.msra.mxu0 0
        %1594 = vmatprep.mubr.bf16.mxu0 0
        %1595 = vmatmul.mubr.bf16.gmra.mrb[0].mxu0 %v1240
        %v1596 = vpop.f32.mrb[0].mxu0
        %v1597 = vadd.f32 %v1150, %v1596
        %v1598 = vpop.f32.mrb[0].mxu0
        %v1599 = vadd.f32 %v1154, %v1598
        %v1600 = vpop.f32.mrb[0].mxu0
        %v1601 = vadd.f32 %v1150, %v1600
        %v1602 = vpop.f32.mrb[0].mxu0
        %v1603 = vadd.f32 %v1154, %v1602
        %1604 = vdwg.mxu0
        %1605 = vmatprep.subr.bf16.mxu0 %v1437
        %1606 = vmatpush1.bf16.msra.mxu0 %v1436
        %1607 = vmatprep.subr.bf16.mxu0 %v1445
        %1608 = vmatpush1.bf16.msra.mxu0 %v1444
        %1609 = vmatprep.subr.bf16.mxu0 %v1453
        %1610 = vmatpush1.bf16.msra.mxu0 %v1452
        %1611 = vmatprep.subr.bf16.mxu0 %v1461
        %1612 = vmatpush1.bf16.msra.mxu0 %v1460
        %1613 = vmatprep.subr.bf16.mxu0 %v1469
        %1614 = vmatpush1.bf16.msra.mxu0 %v1468
        %1615 = vmatprep.subr.bf16.mxu0 %v1477
        %1616 = vmatpush1.bf16.msra.mxu0 %v1476
        %1617 = vmatprep.subr.bf16.mxu0 %v1485
        %1618 = vmatpush1.bf16.msra.mxu0 %v1484
        %1619 = vmatprep.subr.bf16.mxu0 %v1493
        %1620 = vmatpush1.bf16.msra.mxu0 %v1492
        %1621 = vmatprep.subr.bf16.mxu0 0
        %1622 = vmatpush1.bf16.msra.mxu0 0
        %1623 = vmatprep.subr.bf16.mxu0 0
        %1624 = vmatpush1.bf16.msra.mxu0 0
        %1625 = vmatprep.subr.bf16.mxu0 0
        %1626 = vmatpush1.bf16.msra.mxu0 0
        %1627 = vmatprep.subr.bf16.mxu0 0
        %1628 = vmatpush1.bf16.msra.mxu0 0
        %1629 = vmatprep.subr.bf16.mxu0 0
        %1630 = vmatpush1.bf16.msra.mxu0 0
        %1631 = vmatprep.subr.bf16.mxu0 0
        %1632 = vmatpush1.bf16.msra.mxu0 0
        %1633 = vmatprep.subr.bf16.mxu0 0
        %1634 = vmatpush1.bf16.msra.mxu0 0
        %1635 = vmatprep.subr.bf16.mxu0 0
        %1636 = vmatpush1.bf16.msra.mxu0 0
        %1637 = vmatprep.mubr.bf16.mxu0 0
        %1638 = vmatmul.mubr.bf16.gmra.mrb[0].mxu0 %v1240
        %v1639 = vpop.f32.mrb[0].mxu0
        %v1640 = vadd.f32 %v1158, %v1639
        %v1641 = vpop.f32.mrb[0].mxu0
        %v1642 = vadd.f32 %v1162, %v1641
        %v1643 = vpop.f32.mrb[0].mxu0
        %v1644 = vadd.f32 %v1158, %v1643
        %v1645 = vpop.f32.mrb[0].mxu0
        %v1646 = vadd.f32 %v1162, %v1645
        %1647 = vdwg.mxu0
        %1648 = vmatprep.subr.bf16.mxu0 %v1439
        %1649 = vmatpush1.bf16.msra.mxu0 %v1438
        %1650 = vmatprep.subr.bf16.mxu0 %v1447
        %1651 = vmatpush1.bf16.msra.mxu0 %v1446
        %1652 = vmatprep.subr.bf16.mxu0 %v1455
        %1653 = vmatpush1.bf16.msra.mxu0 %v1454
        %1654 = vmatprep.subr.bf16.mxu0 %v1463
        %1655 = vmatpush1.bf16.msra.mxu0 %v1462
        %1656 = vmatprep.subr.bf16.mxu0 %v1471
        %1657 = vmatpush1.bf16.msra.mxu0 %v1470
        %1658 = vmatprep.subr.bf16.mxu0 %v1479
        %1659 = vmatpush1.bf16.msra.mxu0 %v1478
        %1660 = vmatprep.subr.bf16.mxu0 %v1487
        %1661 = vmatpush1.bf16.msra.mxu0 %v1486
        %1662 = vmatprep.subr.bf16.mxu0 %v1495
        %1663 = vmatpush1.bf16.msra.mxu0 %v1494
        %1664 = vmatprep.subr.bf16.mxu0 0
        %1665 = vmatpush1.bf16.msra.mxu0 0
        %1666 = vmatprep.subr.bf16.mxu0 0
        %1667 = vmatpush1.bf16.msra.mxu0 0
        %1668 = vmatprep.subr.bf16.mxu0 0
        %1669 = vmatpush1.bf16.msra.mxu0 0
        %1670 = vmatprep.subr.bf16.mxu0 0
        %1671 = vmatpush1.bf16.msra.mxu0 0
        %1672 = vmatprep.subr.bf16.mxu0 0
        %1673 = vmatpush1.bf16.msra.mxu0 0
        %1674 = vmatprep.subr.bf16.mxu0 0
        %1675 = vmatpush1.bf16.msra.mxu0 0
        %1676 = vmatprep.subr.bf16.mxu0 0
        %1677 = vmatpush1.bf16.msra.mxu0 0
        %1678 = vmatprep.subr.bf16.mxu0 0
        %1679 = vmatpush1.bf16.msra.mxu0 0
        %1680 = vmatprep.mubr.bf16.mxu0 0
        %1681 = vmatmul.mubr.bf16.gmra.mrb[0].mxu0 %v1240
        %v1682 = vpop.f32.mrb[0].mxu0
        %v1683 = vadd.f32 %v1166, %v1682
        %v1684 = vpop.f32.mrb[0].mxu0
        %v1685 = vadd.f32 %v1170, %v1684
        %v1686 = vpop.f32.mrb[0].mxu0
        %v1687 = vadd.f32 %v1166, %v1686
        %v1688 = vpop.f32.mrb[0].mxu0
        %v1689 = vadd.f32 %v1170, %v1688
        %1690 = vdwg.mxu0
        %1691 = vmatprep.subr.bf16.mxu0 %v1441
        %1692 = vmatpush1.bf16.msra.mxu0 %v1440
        %1693 = vmatprep.subr.bf16.mxu0 %v1449
        %1694 = vmatpush1.bf16.msra.mxu0 %v1448
        %1695 = vmatprep.subr.bf16.mxu0 %v1457
        %1696 = vmatpush1.bf16.msra.mxu0 %v1456
        %1697 = vmatprep.subr.bf16.mxu0 %v1465
        %1698 = vmatpush1.bf16.msra.mxu0 %v1464
        %1699 = vmatprep.subr.bf16.mxu0 %v1473
        %1700 = vmatpush1.bf16.msra.mxu0 %v1472
        %1701 = vmatprep.subr.bf16.mxu0 %v1481
        %1702 = vmatpush1.bf16.msra.mxu0 %v1480
        %1703 = vmatprep.subr.bf16.mxu0 %v1489
        %1704 = vmatpush1.bf16.msra.mxu0 %v1488
        %1705 = vmatprep.subr.bf16.mxu0 %v1497
        %1706 = vmatpush1.bf16.msra.mxu0 %v1496
        %1707 = vmatprep.subr.bf16.mxu0 0
        %1708 = vmatpush1.bf16.msra.mxu0 0
        %1709 = vmatprep.subr.bf16.mxu0 0
        %1710 = vmatpush1.bf16.msra.mxu0 0
        %1711 = vmatprep.subr.bf16.mxu0 0
        %1712 = vmatpush1.bf16.msra.mxu0 0
        %1713 = vmatprep.subr.bf16.mxu0 0
        %1714 = vmatpush1.bf16.msra.mxu0 0
        %1715 = vmatprep.subr.bf16.mxu0 0
        %1716 = vmatpush1.bf16.msra.mxu0 0
        %1717 = vmatprep.subr.bf16.mxu0 0
        %1718 = vmatpush1.bf16.msra.mxu0 0
        %1719 = vmatprep.subr.bf16.mxu0 0
        %1720 = vmatpush1.bf16.msra.mxu0 0
        %1721 = vmatprep.subr.bf16.mxu0 0
        %1722 = vmatpush1.bf16.msra.mxu0 0
        %1723 = vmatprep.mubr.bf16.mxu0 0
        %1724 = vmatmul.mubr.bf16.gmra.mrb[0].mxu0 %v1240
        %v1725 = vpop.f32.mrb[0].mxu0
        %v1726 = vadd.f32 %v1174, %v1725
        %v1727 = vpop.f32.mrb[0].mxu0
        %v1728 = vadd.f32 %v1178, %v1727
        %v1729 = vpop.f32.mrb[0].mxu0
        %v1730 = vadd.f32 %v1174, %v1729
        %v1731 = vpop.f32.mrb[0].mxu0
        %v1732 = vadd.f32 %v1178, %v1731
        %1733 = vdwg.mxu0
        %vm1734 = vcmp.ge.f32.partialorder %v1597, 0.0
        %vm1735 = vcmp.ge.f32.partialorder %v1599, 0.0
        %vm1736 = vcmp.ge.f32.partialorder %v1640, 0.0
        %vm1737 = vcmp.ge.f32.partialorder %v1642, 0.0
        %vm1738 = vcmp.ge.f32.partialorder %v1683, 0.0
        %vm1739 = vcmp.ge.f32.partialorder %v1685, 0.0
        %vm1740 = vcmp.ge.f32.partialorder %v1726, 0.0
        %vm1741 = vcmp.ge.f32.partialorder %v1728, 0.0
        %vm1742 = vcmp.ge.f32.partialorder %v1601, 0.0
        %vm1743 = vcmp.ge.f32.partialorder %v1603, 0.0
        %vm1744 = vcmp.ge.f32.partialorder %v1644, 0.0
        %vm1745 = vcmp.ge.f32.partialorder %v1646, 0.0
        %vm1746 = vcmp.ge.f32.partialorder %v1687, 0.0
        %vm1747 = vcmp.ge.f32.partialorder %v1689, 0.0
        %vm1748 = vcmp.ge.f32.partialorder %v1730, 0.0
        %vm1749 = vcmp.ge.f32.partialorder %v1732, 0.0
        %v1750 = vmul.f32 %v1597, 0.2
        %v1751 = vmul.f32 %v1599, 0.2
        %v1752 = vmul.f32 %v1640, 0.2
        %v1753 = vmul.f32 %v1642, 0.2
        %v1754 = vmul.f32 %v1683, 0.2
        %v1755 = vmul.f32 %v1685, 0.2
        %v1756 = vmul.f32 %v1726, 0.2
        %v1757 = vmul.f32 %v1728, 0.2
        %v1758 = vmul.f32 %v1601, 0.2
        %v1759 = vmul.f32 %v1603, 0.2
        %v1760 = vmul.f32 %v1644, 0.2
        %v1761 = vmul.f32 %v1646, 0.2
        %v1762 = vmul.f32 %v1687, 0.2
        %v1763 = vmul.f32 %v1689, 0.2
        %v1764 = vmul.f32 %v1730, 0.2
        %v1765 = vmul.f32 %v1732, 0.2
        %v1766 = vsel %vm1734, %v1597, %v1750
        %v1767 = vsel %vm1735, %v1599, %v1751
        %v1768 = vsel %vm1736, %v1640, %v1752
        %v1769 = vsel %vm1737, %v1642, %v1753
        %v1770 = vsel %vm1738, %v1683, %v1754
        %v1771 = vsel %vm1739, %v1685, %v1755
        %v1772 = vsel %vm1740, %v1726, %v1756
        %v1773 = vsel %vm1741, %v1728, %v1757
        %v1774 = vsel %vm1742, %v1601, %v1758
        %v1775 = vsel %vm1743, %v1603, %v1759
        %v1776 = vsel %vm1744, %v1644, %v1760
        %v1777 = vsel %vm1745, %v1646, %v1761
        %v1778 = vsel %vm1746, %v1687, %v1762
        %v1779 = vsel %vm1747, %v1689, %v1763
        %v1780 = vsel %vm1748, %v1730, %v1764
        %v1781 = vsel %vm1749, %v1732, %v1765
        %p1782 = scmp.eq.s32.totalorder %s34, 0
        // Predicated region
        $region85: #{tpu_custom_call.1} parent=71 // pred_check
          %p1783 = pneg %p1782
        $region86: #{tpu_custom_call.1} parent=71 // pred_check_branch
          %1785 = sbr.rel (%p1783) target = $region88
        $region87: #{tpu_custom_call.1} parent=71 // pred_region
          %1786 = vst [vmem:[#allocation2] sm:$0xff] -inf
        $region88: #{tpu_custom_call.1} parent=71 // pred_fallthru
          _
        %v1787 = vld [vmem:[#allocation2] sm:$0xff]
        %v1788 = vmax.f32 %v1766, %v1774
        %v1789 = vrot.slane %v1788, 4
        %v1790 = vmax.f32 %v1788, %v1789
        %v1791 = vrot.slane %v1790, 2
        %v1792 = vmax.f32 %v1790, %v1791
        %v1793 = vrot.slane %v1792, 1
        %v1794 = vmax.f32 %v1792, %v1793
        %v1795 = vmax.f32 %v1767, %v1775
        %v1796 = vrot.slane %v1795, 4
        %v1797 = vmax.f32 %v1795, %v1796
        %v1798 = vrot.slane %v1797, 2
        %v1799 = vmax.f32 %v1797, %v1798
        %v1800 = vrot.slane %v1799, 1
        %v1801 = vmax.f32 %v1799, %v1800
        %v1802 = vmax.f32 %v1768, %v1776
        %v1803 = vrot.slane %v1802, 4
        %v1804 = vmax.f32 %v1802, %v1803
        %v1805 = vrot.slane %v1804, 2
        %v1806 = vmax.f32 %v1804, %v1805
        %v1807 = vrot.slane %v1806, 1
        %v1808 = vmax.f32 %v1806, %v1807
        %v1809 = vmax.f32 %v1769, %v1777
        %v1810 = vrot.slane %v1809, 4
        %v1811 = vmax.f32 %v1809, %v1810
        %v1812 = vrot.slane %v1811, 2
        %v1813 = vmax.f32 %v1811, %v1812
        %v1814 = vrot.slane %v1813, 1
        %v1815 = vmax.f32 %v1813, %v1814
        %v1816 = vmax.f32 %v1770, %v1778
        %v1817 = vrot.slane %v1816, 4
        %v1818 = vmax.f32 %v1816, %v1817
        %v1819 = vrot.slane %v1818, 2
        %v1820 = vmax.f32 %v1818, %v1819
        %v1821 = vrot.slane %v1820, 1
        %v1822 = vmax.f32 %v1820, %v1821
        %v1823 = vmax.f32 %v1771, %v1779
        %v1824 = vrot.slane %v1823, 4
        %v1825 = vmax.f32 %v1823, %v1824
        %v1826 = vrot.slane %v1825, 2
        %v1827 = vmax.f32 %v1825, %v1826
        %v1828 = vrot.slane %v1827, 1
        %v1829 = vmax.f32 %v1827, %v1828
        %v1830 = vmax.f32 %v1772, %v1780
        %v1831 = vrot.slane %v1830, 4
        %v1832 = vmax.f32 %v1830, %v1831
        %v1833 = vrot.slane %v1832, 2
        %v1834 = vmax.f32 %v1832, %v1833
        %v1835 = vrot.slane %v1834, 1
        %v1836 = vmax.f32 %v1834, %v1835
        %v1837 = vmax.f32 %v1773, %v1781
        %v1838 = vrot.slane %v1837, 4
        %v1839 = vmax.f32 %v1837, %v1838
        %v1840 = vrot.slane %v1839, 2
        %v1841 = vmax.f32 %v1839, %v1840
        %v1842 = vrot.slane %v1841, 1
        %v1843 = vmax.f32 %v1841, %v1842
        %v1852 = vcombine.low %v1794, %v1801
        %v1853 = vcombine.low %v1808, %v1815
        %v1854 = vcombine.low %v1822, %v1829
        %v1855 = vcombine.low %v1836, %v1843
        %v1857 = vunpack.c.l.s4 1966171168
        %v1858 = vunpack.c.0.s8 %v1857
        %v1859 = vlaneseq
        %v1860 = vshrl.u32 %v1859, 7
        %v1861 = vsub.s32 %v1858, %v1860
        %v1862 = vrot.slane %v1852, %v1861
        %v1864 = vunpack.c.l.s4 1966171168
        %v1865 = vunpack.c.0.s8 %v1864
        %v1866 = vlaneseq
        %v1867 = vshrl.u32 %v1866, 7
        %v1868 = vsub.s32 %v1865, %v1867
        %v1869 = vrot.slane %v1853, %v1868
        %v1871 = vunpack.c.l.s4 1966171168
        %v1872 = vunpack.c.0.s8 %v1871
        %v1873 = vlaneseq
        %v1874 = vshrl.u32 %v1873, 7
        %v1875 = vsub.s32 %v1872, %v1874
        %v1876 = vrot.slane %v1854, %v1875
        %v1878 = vunpack.c.l.s4 1966171168
        %v1879 = vunpack.c.0.s8 %v1878
        %v1880 = vlaneseq
        %v1881 = vshrl.u32 %v1880, 7
        %v1882 = vsub.s32 %v1879, %v1881
        %v1883 = vrot.slane %v1855, %v1882
        %v1884 = vcombine.low %v1862, %v1869
        %v1885 = vcombine.low %v1876, %v1883
        %v1887 = vunpack.c.l.s4 1966171168
        %v1888 = vunpack.c.0.s8 %v1887
        %v1889 = vlaneseq
        %v1890 = vshrl.u32 %v1889, 7
        %v1891 = vsub.s32 %v1888, %v1890
        %v1892 = vrot.slane %v1884, %v1891
        %v1894 = vunpack.c.l.s4 1966171168
        %v1895 = vunpack.c.0.s8 %v1894
        %v1896 = vlaneseq
        %v1897 = vshrl.u32 %v1896, 7
        %v1898 = vsub.s32 %v1895, %v1897
        %v1899 = vrot.slane %v1885, %v1898
        %v1900 = vcombine.low %v1892, %v1899
        %v1902 = vmax.f32 %v1787, %v1900
        %1903 = vst [vmem:[#allocation2] sm:$0xff] %v1902
        %p1904 = scmp.eq.s32.totalorder %s34, 1
        // Predicated region
        $region89: #{tpu_custom_call.1} parent=71 // pred_check
          %p1905 = pneg %p1904
        $region90: #{tpu_custom_call.1} parent=71 // pred_check_branch
          %1907 = sbr.rel (%p1905) target = $region92
        $region91: #{tpu_custom_call.1} parent=71 // pred_region
          %v1908 = vld [vmem:[#allocation2] sm:$0xff]
          %v1910 = vlaneseq
          %v1911 = vshrl.u32 %v1910, 7
          %v1912 = vsub.s32 0, %v1911
          %v1913 = vrot.slane %v1908, %v1912
          %v1914 = vlaneseq
          %v1915 = vshrl.u32 %v1914, 7
          %v1916 = vsub.s32 1, %v1915
          %v1917 = vrot.slane %v1908, %v1916
          %v1918 = vlaneseq
          %v1919 = vshrl.u32 %v1918, 7
          %v1920 = vsub.s32 2, %v1919
          %v1921 = vrot.slane %v1908, %v1920
          %v1922 = vlaneseq
          %v1923 = vshrl.u32 %v1922, 7
          %v1924 = vsub.s32 3, %v1923
          %v1925 = vrot.slane %v1908, %v1924
          %v1926 = vlaneseq
          %v1927 = vshrl.u32 %v1926, 7
          %v1928 = vsub.s32 4, %v1927
          %v1929 = vrot.slane %v1908, %v1928
          %v1930 = vlaneseq
          %v1931 = vshrl.u32 %v1930, 7
          %v1932 = vsub.s32 5, %v1931
          %v1933 = vrot.slane %v1908, %v1932
          %v1934 = vlaneseq
          %v1935 = vshrl.u32 %v1934, 7
          %v1936 = vsub.s32 6, %v1935
          %v1937 = vrot.slane %v1908, %v1936
          %v1938 = vlaneseq
          %v1939 = vshrl.u32 %v1938, 7
          %v1940 = vsub.s32 7, %v1939
          %v1941 = vrot.slane %v1908, %v1940
          %v1950 = vpack.c.bf16 %v1913, %v1913
          %v1951 = vpack.c.bf16 %v1917, %v1917
          %v1952 = vpack.c.bf16 %v1921, %v1921
          %v1953 = vpack.c.bf16 %v1925, %v1925
          %v1954 = vpack.c.bf16 %v1929, %v1929
          %v1955 = vpack.c.bf16 %v1933, %v1933
          %v1956 = vpack.c.bf16 %v1937, %v1937
          %v1957 = vpack.c.bf16 %v1941, %v1941
          %v1958 = vld [vmem:[#allocation6] sm:$0xff]
          %v1959 = vld [vmem:[#allocation6 + $0x8] sm:$0xff]
          %v1960 = vld [vmem:[#allocation6 + $0x10] sm:$0xff]
          %v1961 = vld [vmem:[#allocation6 + $0x18] sm:$0xff]
          %v1962 = vld [vmem:[#allocation6 + $0x20] sm:$0xff]
          %v1963 = vld [vmem:[#allocation6 + $0x28] sm:$0xff]
          %v1964 = vld [vmem:[#allocation6 + $0x30] sm:$0xff]
          %v1965 = vld [vmem:[#allocation6 + $0x38] sm:$0xff]
          %v1966 = vld [vmem:[#allocation6 + $0x40] sm:$0xff]
          %v1967 = vld [vmem:[#allocation6 + $0x48] sm:$0xff]
          %v1968 = vld [vmem:[#allocation6 + $0x50] sm:$0xff]
          %v1969 = vld [vmem:[#allocation6 + $0x58] sm:$0xff]
          %v1970 = vld [vmem:[#allocation6 + $0x60] sm:$0xff]
          %v1971 = vld [vmem:[#allocation6 + $0x68] sm:$0xff]
          %v1972 = vld [vmem:[#allocation6 + $0x70] sm:$0xff]
          %v1973 = vld [vmem:[#allocation6 + $0x78] sm:$0xff]
          %v1974 = vld [vmem:[#allocation6 + $0x80] sm:$0xff]
          %v1975 = vld [vmem:[#allocation6 + $0x88] sm:$0xff]
          %v1976 = vld [vmem:[#allocation6 + $0x90] sm:$0xff]
          %v1977 = vld [vmem:[#allocation6 + $0x98] sm:$0xff]
          %v1978 = vld [vmem:[#allocation6 + $0xa0] sm:$0xff]
          %v1979 = vld [vmem:[#allocation6 + $0xa8] sm:$0xff]
          %v1980 = vld [vmem:[#allocation6 + $0xb0] sm:$0xff]
          %v1981 = vld [vmem:[#allocation6 + $0xb8] sm:$0xff]
          %v1982 = vld [vmem:[#allocation6 + $0xc0] sm:$0xff]
          %v1983 = vld [vmem:[#allocation6 + $0xc8] sm:$0xff]
          %v1984 = vld [vmem:[#allocation6 + $0xd0] sm:$0xff]
          %v1985 = vld [vmem:[#allocation6 + $0xd8] sm:$0xff]
          %v1986 = vld [vmem:[#allocation6 + $0xe0] sm:$0xff]
          %v1987 = vld [vmem:[#allocation6 + $0xe8] sm:$0xff]
          %v1988 = vld [vmem:[#allocation6 + $0xf0] sm:$0xff]
          %v1989 = vld [vmem:[#allocation6 + $0xf8] sm:$0xff]
          %v1990 = vld [vmem:[#allocation6 + $0x100] sm:$0xff]
          %v1991 = vld [vmem:[#allocation6 + $0x108] sm:$0xff]
          %v1992 = vld [vmem:[#allocation6 + $0x110] sm:$0xff]
          %v1993 = vld [vmem:[#allocation6 + $0x118] sm:$0xff]
          %v1994 = vld [vmem:[#allocation6 + $0x120] sm:$0xff]
          %v1995 = vld [vmem:[#allocation6 + $0x128] sm:$0xff]
          %v1996 = vld [vmem:[#allocation6 + $0x130] sm:$0xff]
          %v1997 = vld [vmem:[#allocation6 + $0x138] sm:$0xff]
          %v1998 = vld [vmem:[#allocation6 + $0x140] sm:$0xff]
          %v1999 = vld [vmem:[#allocation6 + $0x148] sm:$0xff]
          %v2000 = vld [vmem:[#allocation6 + $0x150] sm:$0xff]
          %v2001 = vld [vmem:[#allocation6 + $0x158] sm:$0xff]
          %v2002 = vld [vmem:[#allocation6 + $0x160] sm:$0xff]
          %v2003 = vld [vmem:[#allocation6 + $0x168] sm:$0xff]
          %v2004 = vld [vmem:[#allocation6 + $0x170] sm:$0xff]
          %v2005 = vld [vmem:[#allocation6 + $0x178] sm:$0xff]
          %v2006 = vld [vmem:[#allocation6 + $0x180] sm:$0xff]
          %v2007 = vld [vmem:[#allocation6 + $0x188] sm:$0xff]
          %v2008 = vld [vmem:[#allocation6 + $0x190] sm:$0xff]
          %v2009 = vld [vmem:[#allocation6 + $0x198] sm:$0xff]
          %v2010 = vld [vmem:[#allocation6 + $0x1a0] sm:$0xff]
          %v2011 = vld [vmem:[#allocation6 + $0x1a8] sm:$0xff]
          %v2012 = vld [vmem:[#allocation6 + $0x1b0] sm:$0xff]
          %v2013 = vld [vmem:[#allocation6 + $0x1b8] sm:$0xff]
          %v2014 = vld [vmem:[#allocation6 + $0x1c0] sm:$0xff]
          %v2015 = vld [vmem:[#allocation6 + $0x1c8] sm:$0xff]
          %v2016 = vld [vmem:[#allocation6 + $0x1d0] sm:$0xff]
          %v2017 = vld [vmem:[#allocation6 + $0x1d8] sm:$0xff]
          %v2018 = vld [vmem:[#allocation6 + $0x1e0] sm:$0xff]
          %v2019 = vld [vmem:[#allocation6 + $0x1e8] sm:$0xff]
          %v2020 = vld [vmem:[#allocation6 + $0x1f0] sm:$0xff]
          %v2021 = vld [vmem:[#allocation6 + $0x1f8] sm:$0xff]
          %v2022 = vld [vmem:[#allocation6 + $0x200] sm:$0xff]
          %v2023 = vld [vmem:[#allocation6 + $0x208] sm:$0xff]
          %v2024 = vld [vmem:[#allocation6 + $0x210] sm:$0xff]
          %v2025 = vld [vmem:[#allocation6 + $0x218] sm:$0xff]
          %v2026 = vld [vmem:[#allocation6 + $0x220] sm:$0xff]
          %v2027 = vld [vmem:[#allocation6 + $0x228] sm:$0xff]
          %v2028 = vld [vmem:[#allocation6 + $0x230] sm:$0xff]
          %v2029 = vld [vmem:[#allocation6 + $0x238] sm:$0xff]
          %v2030 = vld [vmem:[#allocation6 + $0x240] sm:$0xff]
          %v2031 = vld [vmem:[#allocation6 + $0x248] sm:$0xff]
          %v2032 = vld [vmem:[#allocation6 + $0x250] sm:$0xff]
          %v2033 = vld [vmem:[#allocation6 + $0x258] sm:$0xff]
          %v2034 = vld [vmem:[#allocation6 + $0x260] sm:$0xff]
          %v2035 = vld [vmem:[#allocation6 + $0x268] sm:$0xff]
          %v2036 = vld [vmem:[#allocation6 + $0x270] sm:$0xff]
          %v2037 = vld [vmem:[#allocation6 + $0x278] sm:$0xff]
          %v2038 = vld [vmem:[#allocation6 + $0x280] sm:$0xff]
          %v2039 = vld [vmem:[#allocation6 + $0x288] sm:$0xff]
          %v2040 = vld [vmem:[#allocation6 + $0x290] sm:$0xff]
          %v2041 = vld [vmem:[#allocation6 + $0x298] sm:$0xff]
          %v2042 = vld [vmem:[#allocation6 + $0x2a0] sm:$0xff]
          %v2043 = vld [vmem:[#allocation6 + $0x2a8] sm:$0xff]
          %v2044 = vld [vmem:[#allocation6 + $0x2b0] sm:$0xff]
          %v2045 = vld [vmem:[#allocation6 + $0x2b8] sm:$0xff]
          %v2046 = vld [vmem:[#allocation6 + $0x2c0] sm:$0xff]
          %v2047 = vld [vmem:[#allocation6 + $0x2c8] sm:$0xff]
          %v2048 = vld [vmem:[#allocation6 + $0x2d0] sm:$0xff]
          %v2049 = vld [vmem:[#allocation6 + $0x2d8] sm:$0xff]
          %v2050 = vld [vmem:[#allocation6 + $0x2e0] sm:$0xff]
          %v2051 = vld [vmem:[#allocation6 + $0x2e8] sm:$0xff]
          %v2052 = vld [vmem:[#allocation6 + $0x2f0] sm:$0xff]
          %v2053 = vld [vmem:[#allocation6 + $0x2f8] sm:$0xff]
          %v2054 = vld [vmem:[#allocation6 + $0x300] sm:$0xff]
          %v2055 = vld [vmem:[#allocation6 + $0x308] sm:$0xff]
          %v2056 = vld [vmem:[#allocation6 + $0x310] sm:$0xff]
          %v2057 = vld [vmem:[#allocation6 + $0x318] sm:$0xff]
          %v2058 = vld [vmem:[#allocation6 + $0x320] sm:$0xff]
          %v2059 = vld [vmem:[#allocation6 + $0x328] sm:$0xff]
          %v2060 = vld [vmem:[#allocation6 + $0x330] sm:$0xff]
          %v2061 = vld [vmem:[#allocation6 + $0x338] sm:$0xff]
          %v2062 = vld [vmem:[#allocation6 + $0x340] sm:$0xff]
          %v2063 = vld [vmem:[#allocation6 + $0x348] sm:$0xff]
          %v2064 = vld [vmem:[#allocation6 + $0x350] sm:$0xff]
          %v2065 = vld [vmem:[#allocation6 + $0x358] sm:$0xff]
          %v2066 = vld [vmem:[#allocation6 + $0x360] sm:$0xff]
          %v2067 = vld [vmem:[#allocation6 + $0x368] sm:$0xff]
          %v2068 = vld [vmem:[#allocation6 + $0x370] sm:$0xff]
          %v2069 = vld [vmem:[#allocation6 + $0x378] sm:$0xff]
          %v2070 = vld [vmem:[#allocation6 + $0x380] sm:$0xff]
          %v2071 = vld [vmem:[#allocation6 + $0x388] sm:$0xff]
          %v2072 = vld [vmem:[#allocation6 + $0x390] sm:$0xff]
          %v2073 = vld [vmem:[#allocation6 + $0x398] sm:$0xff]
          %v2074 = vld [vmem:[#allocation6 + $0x3a0] sm:$0xff]
          %v2075 = vld [vmem:[#allocation6 + $0x3a8] sm:$0xff]
          %v2076 = vld [vmem:[#allocation6 + $0x3b0] sm:$0xff]
          %v2077 = vld [vmem:[#allocation6 + $0x3b8] sm:$0xff]
          %v2078 = vld [vmem:[#allocation6 + $0x3c0] sm:$0xff]
          %v2079 = vld [vmem:[#allocation6 + $0x3c8] sm:$0xff]
          %v2080 = vld [vmem:[#allocation6 + $0x3d0] sm:$0xff]
          %v2081 = vld [vmem:[#allocation6 + $0x3d8] sm:$0xff]
          %v2082 = vld [vmem:[#allocation6 + $0x3e0] sm:$0xff]
          %v2083 = vld [vmem:[#allocation6 + $0x3e8] sm:$0xff]
          %v2084 = vld [vmem:[#allocation6 + $0x3f0] sm:$0xff]
          %v2085 = vld [vmem:[#allocation6 + $0x3f8] sm:$0xff]
          %v2086 = vld [vmem:[#allocation6 + $0x400] sm:$0xff]
          %v2087 = vld [vmem:[#allocation6 + $0x408] sm:$0xff]
          %v2088 = vld [vmem:[#allocation6 + $0x410] sm:$0xff]
          %v2089 = vld [vmem:[#allocation6 + $0x418] sm:$0xff]
          %v2090 = vld [vmem:[#allocation6 + $0x420] sm:$0xff]
          %v2091 = vld [vmem:[#allocation6 + $0x428] sm:$0xff]
          %v2092 = vld [vmem:[#allocation6 + $0x430] sm:$0xff]
          %v2093 = vld [vmem:[#allocation6 + $0x438] sm:$0xff]
          %v2094 = vld [vmem:[#allocation6 + $0x440] sm:$0xff]
          %v2095 = vld [vmem:[#allocation6 + $0x448] sm:$0xff]
          %v2096 = vld [vmem:[#allocation6 + $0x450] sm:$0xff]
          %v2097 = vld [vmem:[#allocation6 + $0x458] sm:$0xff]
          %v2098 = vld [vmem:[#allocation6 + $0x460] sm:$0xff]
          %v2099 = vld [vmem:[#allocation6 + $0x468] sm:$0xff]
          %v2100 = vld [vmem:[#allocation6 + $0x470] sm:$0xff]
          %v2101 = vld [vmem:[#allocation6 + $0x478] sm:$0xff]
          %v2102 = vld [vmem:[#allocation6 + $0x480] sm:$0xff]
          %v2103 = vld [vmem:[#allocation6 + $0x488] sm:$0xff]
          %v2104 = vld [vmem:[#allocation6 + $0x490] sm:$0xff]
          %v2105 = vld [vmem:[#allocation6 + $0x498] sm:$0xff]
          %v2106 = vld [vmem:[#allocation6 + $0x4a0] sm:$0xff]
          %v2107 = vld [vmem:[#allocation6 + $0x4a8] sm:$0xff]
          %v2108 = vld [vmem:[#allocation6 + $0x4b0] sm:$0xff]
          %v2109 = vld [vmem:[#allocation6 + $0x4b8] sm:$0xff]
          %v2110 = vld [vmem:[#allocation6 + $0x4c0] sm:$0xff]
          %v2111 = vld [vmem:[#allocation6 + $0x4c8] sm:$0xff]
          %v2112 = vld [vmem:[#allocation6 + $0x4d0] sm:$0xff]
          %v2113 = vld [vmem:[#allocation6 + $0x4d8] sm:$0xff]
          %v2114 = vld [vmem:[#allocation6 + $0x4e0] sm:$0xff]
          %v2115 = vld [vmem:[#allocation6 + $0x4e8] sm:$0xff]
          %v2116 = vld [vmem:[#allocation6 + $0x4f0] sm:$0xff]
          %v2117 = vld [vmem:[#allocation6 + $0x4f8] sm:$0xff]
          %v2118 = vld [vmem:[#allocation6 + $0x500] sm:$0xff]
          %v2119 = vld [vmem:[#allocation6 + $0x508] sm:$0xff]
          %v2120 = vld [vmem:[#allocation6 + $0x510] sm:$0xff]
          %v2121 = vld [vmem:[#allocation6 + $0x518] sm:$0xff]
          %v2122 = vld [vmem:[#allocation6 + $0x520] sm:$0xff]
          %v2123 = vld [vmem:[#allocation6 + $0x528] sm:$0xff]
          %v2124 = vld [vmem:[#allocation6 + $0x530] sm:$0xff]
          %v2125 = vld [vmem:[#allocation6 + $0x538] sm:$0xff]
          %v2126 = vld [vmem:[#allocation6 + $0x540] sm:$0xff]
          %v2127 = vld [vmem:[#allocation6 + $0x548] sm:$0xff]
          %v2128 = vld [vmem:[#allocation6 + $0x550] sm:$0xff]
          %v2129 = vld [vmem:[#allocation6 + $0x558] sm:$0xff]
          %v2130 = vld [vmem:[#allocation6 + $0x560] sm:$0xff]
          %v2131 = vld [vmem:[#allocation6 + $0x568] sm:$0xff]
          %v2132 = vld [vmem:[#allocation6 + $0x570] sm:$0xff]
          %v2133 = vld [vmem:[#allocation6 + $0x578] sm:$0xff]
          %v2134 = vld [vmem:[#allocation6 + $0x580] sm:$0xff]
          %v2135 = vld [vmem:[#allocation6 + $0x588] sm:$0xff]
          %v2136 = vld [vmem:[#allocation6 + $0x590] sm:$0xff]
          %v2137 = vld [vmem:[#allocation6 + $0x598] sm:$0xff]
          %v2138 = vld [vmem:[#allocation6 + $0x5a0] sm:$0xff]
          %v2139 = vld [vmem:[#allocation6 + $0x5a8] sm:$0xff]
          %v2140 = vld [vmem:[#allocation6 + $0x5b0] sm:$0xff]
          %v2141 = vld [vmem:[#allocation6 + $0x5b8] sm:$0xff]
          %v2142 = vld [vmem:[#allocation6 + $0x5c0] sm:$0xff]
          %v2143 = vld [vmem:[#allocation6 + $0x5c8] sm:$0xff]
          %v2144 = vld [vmem:[#allocation6 + $0x5d0] sm:$0xff]
          %v2145 = vld [vmem:[#allocation6 + $0x5d8] sm:$0xff]
          %v2146 = vld [vmem:[#allocation6 + $0x5e0] sm:$0xff]
          %v2147 = vld [vmem:[#allocation6 + $0x5e8] sm:$0xff]
          %v2148 = vld [vmem:[#allocation6 + $0x5f0] sm:$0xff]
          %v2149 = vld [vmem:[#allocation6 + $0x5f8] sm:$0xff]
          %v2150 = vld [vmem:[#allocation6 + $0x600] sm:$0xff]
          %v2151 = vld [vmem:[#allocation6 + $0x608] sm:$0xff]
          %v2152 = vld [vmem:[#allocation6 + $0x610] sm:$0xff]
          %v2153 = vld [vmem:[#allocation6 + $0x618] sm:$0xff]
          %v2154 = vld [vmem:[#allocation6 + $0x620] sm:$0xff]
          %v2155 = vld [vmem:[#allocation6 + $0x628] sm:$0xff]
          %v2156 = vld [vmem:[#allocation6 + $0x630] sm:$0xff]
          %v2157 = vld [vmem:[#allocation6 + $0x638] sm:$0xff]
          %v2158 = vld [vmem:[#allocation6 + $0x640] sm:$0xff]
          %v2159 = vld [vmem:[#allocation6 + $0x648] sm:$0xff]
          %v2160 = vld [vmem:[#allocation6 + $0x650] sm:$0xff]
          %v2161 = vld [vmem:[#allocation6 + $0x658] sm:$0xff]
          %v2162 = vld [vmem:[#allocation6 + $0x660] sm:$0xff]
          %v2163 = vld [vmem:[#allocation6 + $0x668] sm:$0xff]
          %v2164 = vld [vmem:[#allocation6 + $0x670] sm:$0xff]
          %v2165 = vld [vmem:[#allocation6 + $0x678] sm:$0xff]
          %v2166 = vld [vmem:[#allocation6 + $0x680] sm:$0xff]
          %v2167 = vld [vmem:[#allocation6 + $0x688] sm:$0xff]
          %v2168 = vld [vmem:[#allocation6 + $0x690] sm:$0xff]
          %v2169 = vld [vmem:[#allocation6 + $0x698] sm:$0xff]
          %v2170 = vld [vmem:[#allocation6 + $0x6a0] sm:$0xff]
          %v2171 = vld [vmem:[#allocation6 + $0x6a8] sm:$0xff]
          %v2172 = vld [vmem:[#allocation6 + $0x6b0] sm:$0xff]
          %v2173 = vld [vmem:[#allocation6 + $0x6b8] sm:$0xff]
          %v2174 = vld [vmem:[#allocation6 + $0x6c0] sm:$0xff]
          %v2175 = vld [vmem:[#allocation6 + $0x6c8] sm:$0xff]
          %v2176 = vld [vmem:[#allocation6 + $0x6d0] sm:$0xff]
          %v2177 = vld [vmem:[#allocation6 + $0x6d8] sm:$0xff]
          %v2178 = vld [vmem:[#allocation6 + $0x6e0] sm:$0xff]
          %v2179 = vld [vmem:[#allocation6 + $0x6e8] sm:$0xff]
          %v2180 = vld [vmem:[#allocation6 + $0x6f0] sm:$0xff]
          %v2181 = vld [vmem:[#allocation6 + $0x6f8] sm:$0xff]
          %v2182 = vld [vmem:[#allocation6 + $0x700] sm:$0xff]
          %v2183 = vld [vmem:[#allocation6 + $0x708] sm:$0xff]
          %v2184 = vld [vmem:[#allocation6 + $0x710] sm:$0xff]
          %v2185 = vld [vmem:[#allocation6 + $0x718] sm:$0xff]
          %v2186 = vld [vmem:[#allocation6 + $0x720] sm:$0xff]
          %v2187 = vld [vmem:[#allocation6 + $0x728] sm:$0xff]
          %v2188 = vld [vmem:[#allocation6 + $0x730] sm:$0xff]
          %v2189 = vld [vmem:[#allocation6 + $0x738] sm:$0xff]
          %v2190 = vld [vmem:[#allocation6 + $0x740] sm:$0xff]
          %v2191 = vld [vmem:[#allocation6 + $0x748] sm:$0xff]
          %v2192 = vld [vmem:[#allocation6 + $0x750] sm:$0xff]
          %v2193 = vld [vmem:[#allocation6 + $0x758] sm:$0xff]
          %v2194 = vld [vmem:[#allocation6 + $0x760] sm:$0xff]
          %v2195 = vld [vmem:[#allocation6 + $0x768] sm:$0xff]
          %v2196 = vld [vmem:[#allocation6 + $0x770] sm:$0xff]
          %v2197 = vld [vmem:[#allocation6 + $0x778] sm:$0xff]
          %v2198 = vld [vmem:[#allocation6 + $0x780] sm:$0xff]
          %v2199 = vld [vmem:[#allocation6 + $0x788] sm:$0xff]
          %v2200 = vld [vmem:[#allocation6 + $0x790] sm:$0xff]
          %v2201 = vld [vmem:[#allocation6 + $0x798] sm:$0xff]
          %v2202 = vld [vmem:[#allocation6 + $0x7a0] sm:$0xff]
          %v2203 = vld [vmem:[#allocation6 + $0x7a8] sm:$0xff]
          %v2204 = vld [vmem:[#allocation6 + $0x7b0] sm:$0xff]
          %v2205 = vld [vmem:[#allocation6 + $0x7b8] sm:$0xff]
          %v2206 = vld [vmem:[#allocation6 + $0x7c0] sm:$0xff]
          %v2207 = vld [vmem:[#allocation6 + $0x7c8] sm:$0xff]
          %v2208 = vld [vmem:[#allocation6 + $0x7d0] sm:$0xff]
          %v2209 = vld [vmem:[#allocation6 + $0x7d8] sm:$0xff]
          %v2210 = vld [vmem:[#allocation6 + $0x7e0] sm:$0xff]
          %v2211 = vld [vmem:[#allocation6 + $0x7e8] sm:$0xff]
          %v2212 = vld [vmem:[#allocation6 + $0x7f0] sm:$0xff]
          %v2213 = vld [vmem:[#allocation6 + $0x7f8] sm:$0xff]
          %v2214 = vld [vmem:[%s8] sm:$0xf]
          %v2471 = vunpack.c.l.b16 %v1958
          %v2472 = vunpack.c.h.b16 %v1958
          %v2473 = vunpack.c.l.b16 %v1959
          %v2474 = vunpack.c.h.b16 %v1959
          %v2475 = vunpack.c.l.b16 %v1960
          %v2476 = vunpack.c.h.b16 %v1960
          %v2477 = vunpack.c.l.b16 %v1961
          %v2478 = vunpack.c.h.b16 %v1961
          %v2479 = vunpack.c.l.b16 %v1962
          %v2480 = vunpack.c.h.b16 %v1962
          %v2481 = vunpack.c.l.b16 %v1963
          %v2482 = vunpack.c.h.b16 %v1963
          %v2483 = vunpack.c.l.b16 %v1964
          %v2484 = vunpack.c.h.b16 %v1964
          %v2485 = vunpack.c.l.b16 %v1965
          %v2486 = vunpack.c.h.b16 %v1965
          %v2487 = vunpack.c.l.b16 %v1966
          %v2488 = vunpack.c.h.b16 %v1966
          %v2489 = vunpack.c.l.b16 %v1967
          %v2490 = vunpack.c.h.b16 %v1967
          %v2491 = vunpack.c.l.b16 %v1968
          %v2492 = vunpack.c.h.b16 %v1968
          %v2493 = vunpack.c.l.b16 %v1969
          %v2494 = vunpack.c.h.b16 %v1969
          %v2495 = vunpack.c.l.b16 %v1970
          %v2496 = vunpack.c.h.b16 %v1970
          %v2497 = vunpack.c.l.b16 %v1971
          %v2498 = vunpack.c.h.b16 %v1971
          %v2499 = vunpack.c.l.b16 %v1972
          %v2500 = vunpack.c.h.b16 %v1972
          %v2501 = vunpack.c.l.b16 %v1973
          %v2502 = vunpack.c.h.b16 %v1973
          %v2503 = vunpack.c.l.b16 %v1974
          %v2504 = vunpack.c.h.b16 %v1974
          %v2505 = vunpack.c.l.b16 %v1975
          %v2506 = vunpack.c.h.b16 %v1975
          %v2507 = vunpack.c.l.b16 %v1976
          %v2508 = vunpack.c.h.b16 %v1976
          %v2509 = vunpack.c.l.b16 %v1977
          %v2510 = vunpack.c.h.b16 %v1977
          %v2511 = vunpack.c.l.b16 %v1978
          %v2512 = vunpack.c.h.b16 %v1978
          %v2513 = vunpack.c.l.b16 %v1979
          %v2514 = vunpack.c.h.b16 %v1979
          %v2515 = vunpack.c.l.b16 %v1980
          %v2516 = vunpack.c.h.b16 %v1980
          %v2517 = vunpack.c.l.b16 %v1981
          %v2518 = vunpack.c.h.b16 %v1981
          %v2519 = vunpack.c.l.b16 %v1982
          %v2520 = vunpack.c.h.b16 %v1982
          %v2521 = vunpack.c.l.b16 %v1983
          %v2522 = vunpack.c.h.b16 %v1983
          %v2523 = vunpack.c.l.b16 %v1984
          %v2524 = vunpack.c.h.b16 %v1984
          %v2525 = vunpack.c.l.b16 %v1985
          %v2526 = vunpack.c.h.b16 %v1985
          %v2527 = vunpack.c.l.b16 %v1986
          %v2528 = vunpack.c.h.b16 %v1986
          %v2529 = vunpack.c.l.b16 %v1987
          %v2530 = vunpack.c.h.b16 %v1987
          %v2531 = vunpack.c.l.b16 %v1988
          %v2532 = vunpack.c.h.b16 %v1988
          %v2533 = vunpack.c.l.b16 %v1989
          %v2534 = vunpack.c.h.b16 %v1989
          %v2535 = vunpack.c.l.b16 %v1990
          %v2536 = vunpack.c.h.b16 %v1990
          %v2537 = vunpack.c.l.b16 %v1991
          %v2538 = vunpack.c.h.b16 %v1991
          %v2539 = vunpack.c.l.b16 %v1992
          %v2540 = vunpack.c.h.b16 %v1992
          %v2541 = vunpack.c.l.b16 %v1993
          %v2542 = vunpack.c.h.b16 %v1993
          %v2543 = vunpack.c.l.b16 %v1994
          %v2544 = vunpack.c.h.b16 %v1994
          %v2545 = vunpack.c.l.b16 %v1995
          %v2546 = vunpack.c.h.b16 %v1995
          %v2547 = vunpack.c.l.b16 %v1996
          %v2548 = vunpack.c.h.b16 %v1996
          %v2549 = vunpack.c.l.b16 %v1997
          %v2550 = vunpack.c.h.b16 %v1997
          %v2551 = vunpack.c.l.b16 %v1998
          %v2552 = vunpack.c.h.b16 %v1998
          %v2553 = vunpack.c.l.b16 %v1999
          %v2554 = vunpack.c.h.b16 %v1999
          %v2555 = vunpack.c.l.b16 %v2000
          %v2556 = vunpack.c.h.b16 %v2000
          %v2557 = vunpack.c.l.b16 %v2001
          %v2558 = vunpack.c.h.b16 %v2001
          %v2559 = vunpack.c.l.b16 %v2002
          %v2560 = vunpack.c.h.b16 %v2002
          %v2561 = vunpack.c.l.b16 %v2003
          %v2562 = vunpack.c.h.b16 %v2003
          %v2563 = vunpack.c.l.b16 %v2004
          %v2564 = vunpack.c.h.b16 %v2004
          %v2565 = vunpack.c.l.b16 %v2005
          %v2566 = vunpack.c.h.b16 %v2005
          %v2567 = vunpack.c.l.b16 %v2006
          %v2568 = vunpack.c.h.b16 %v2006
          %v2569 = vunpack.c.l.b16 %v2007
          %v2570 = vunpack.c.h.b16 %v2007
          %v2571 = vunpack.c.l.b16 %v2008
          %v2572 = vunpack.c.h.b16 %v2008
          %v2573 = vunpack.c.l.b16 %v2009
          %v2574 = vunpack.c.h.b16 %v2009
          %v2575 = vunpack.c.l.b16 %v2010
          %v2576 = vunpack.c.h.b16 %v2010
          %v2577 = vunpack.c.l.b16 %v2011
          %v2578 = vunpack.c.h.b16 %v2011
          %v2579 = vunpack.c.l.b16 %v2012
          %v2580 = vunpack.c.h.b16 %v2012
          %v2581 = vunpack.c.l.b16 %v2013
          %v2582 = vunpack.c.h.b16 %v2013
          %v2583 = vunpack.c.l.b16 %v2014
          %v2584 = vunpack.c.h.b16 %v2014
          %v2585 = vunpack.c.l.b16 %v2015
          %v2586 = vunpack.c.h.b16 %v2015
          %v2587 = vunpack.c.l.b16 %v2016
          %v2588 = vunpack.c.h.b16 %v2016
          %v2589 = vunpack.c.l.b16 %v2017
          %v2590 = vunpack.c.h.b16 %v2017
          %v2591 = vunpack.c.l.b16 %v2018
          %v2592 = vunpack.c.h.b16 %v2018
          %v2593 = vunpack.c.l.b16 %v2019
          %v2594 = vunpack.c.h.b16 %v2019
          %v2595 = vunpack.c.l.b16 %v2020
          %v2596 = vunpack.c.h.b16 %v2020
          %v2597 = vunpack.c.l.b16 %v2021
          %v2598 = vunpack.c.h.b16 %v2021
          %v2599 = vunpack.c.l.b16 %v2022
          %v2600 = vunpack.c.h.b16 %v2022
          %v2601 = vunpack.c.l.b16 %v2023
          %v2602 = vunpack.c.h.b16 %v2023
          %v2603 = vunpack.c.l.b16 %v2024
          %v2604 = vunpack.c.h.b16 %v2024
          %v2605 = vunpack.c.l.b16 %v2025
          %v2606 = vunpack.c.h.b16 %v2025
          %v2607 = vunpack.c.l.b16 %v2026
          %v2608 = vunpack.c.h.b16 %v2026
          %v2609 = vunpack.c.l.b16 %v2027
          %v2610 = vunpack.c.h.b16 %v2027
          %v2611 = vunpack.c.l.b16 %v2028
          %v2612 = vunpack.c.h.b16 %v2028
          %v2613 = vunpack.c.l.b16 %v2029
          %v2614 = vunpack.c.h.b16 %v2029
          %v2615 = vunpack.c.l.b16 %v2030
          %v2616 = vunpack.c.h.b16 %v2030
          %v2617 = vunpack.c.l.b16 %v2031
          %v2618 = vunpack.c.h.b16 %v2031
          %v2619 = vunpack.c.l.b16 %v2032
          %v2620 = vunpack.c.h.b16 %v2032
          %v2621 = vunpack.c.l.b16 %v2033
          %v2622 = vunpack.c.h.b16 %v2033
          %v2623 = vunpack.c.l.b16 %v2034
          %v2624 = vunpack.c.h.b16 %v2034
          %v2625 = vunpack.c.l.b16 %v2035
          %v2626 = vunpack.c.h.b16 %v2035
          %v2627 = vunpack.c.l.b16 %v2036
          %v2628 = vunpack.c.h.b16 %v2036
          %v2629 = vunpack.c.l.b16 %v2037
          %v2630 = vunpack.c.h.b16 %v2037
          %v2631 = vunpack.c.l.b16 %v2038
          %v2632 = vunpack.c.h.b16 %v2038
          %v2633 = vunpack.c.l.b16 %v2039
          %v2634 = vunpack.c.h.b16 %v2039
          %v2635 = vunpack.c.l.b16 %v2040
          %v2636 = vunpack.c.h.b16 %v2040
          %v2637 = vunpack.c.l.b16 %v2041
          %v2638 = vunpack.c.h.b16 %v2041
          %v2639 = vunpack.c.l.b16 %v2042
          %v2640 = vunpack.c.h.b16 %v2042
          %v2641 = vunpack.c.l.b16 %v2043
          %v2642 = vunpack.c.h.b16 %v2043
          %v2643 = vunpack.c.l.b16 %v2044
          %v2644 = vunpack.c.h.b16 %v2044
          %v2645 = vunpack.c.l.b16 %v2045
          %v2646 = vunpack.c.h.b16 %v2045
          %v2647 = vunpack.c.l.b16 %v2046
          %v2648 = vunpack.c.h.b16 %v2046
          %v2649 = vunpack.c.l.b16 %v2047
          %v2650 = vunpack.c.h.b16 %v2047
          %v2651 = vunpack.c.l.b16 %v2048
          %v2652 = vunpack.c.h.b16 %v2048
          %v2653 = vunpack.c.l.b16 %v2049
          %v2654 = vunpack.c.h.b16 %v2049
          %v2655 = vunpack.c.l.b16 %v2050
          %v2656 = vunpack.c.h.b16 %v2050
          %v2657 = vunpack.c.l.b16 %v2051
          %v2658 = vunpack.c.h.b16 %v2051
          %v2659 = vunpack.c.l.b16 %v2052
          %v2660 = vunpack.c.h.b16 %v2052
          %v2661 = vunpack.c.l.b16 %v2053
          %v2662 = vunpack.c.h.b16 %v2053
          %v2663 = vunpack.c.l.b16 %v2054
          %v2664 = vunpack.c.h.b16 %v2054
          %v2665 = vunpack.c.l.b16 %v2055
          %v2666 = vunpack.c.h.b16 %v2055
          %v2667 = vunpack.c.l.b16 %v2056
          %v2668 = vunpack.c.h.b16 %v2056
          %v2669 = vunpack.c.l.b16 %v2057
          %v2670 = vunpack.c.h.b16 %v2057
          %v2671 = vunpack.c.l.b16 %v2058
          %v2672 = vunpack.c.h.b16 %v2058
          %v2673 = vunpack.c.l.b16 %v2059
          %v2674 = vunpack.c.h.b16 %v2059
          %v2675 = vunpack.c.l.b16 %v2060
          %v2676 = vunpack.c.h.b16 %v2060
          %v2677 = vunpack.c.l.b16 %v2061
          %v2678 = vunpack.c.h.b16 %v2061
          %v2679 = vunpack.c.l.b16 %v2062
          %v2680 = vunpack.c.h.b16 %v2062
          %v2681 = vunpack.c.l.b16 %v2063
          %v2682 = vunpack.c.h.b16 %v2063
          %v2683 = vunpack.c.l.b16 %v2064
          %v2684 = vunpack.c.h.b16 %v2064
          %v2685 = vunpack.c.l.b16 %v2065
          %v2686 = vunpack.c.h.b16 %v2065
          %v2687 = vunpack.c.l.b16 %v2066
          %v2688 = vunpack.c.h.b16 %v2066
          %v2689 = vunpack.c.l.b16 %v2067
          %v2690 = vunpack.c.h.b16 %v2067
          %v2691 = vunpack.c.l.b16 %v2068
          %v2692 = vunpack.c.h.b16 %v2068
          %v2693 = vunpack.c.l.b16 %v2069
          %v2694 = vunpack.c.h.b16 %v2069
          %v2695 = vunpack.c.l.b16 %v2070
          %v2696 = vunpack.c.h.b16 %v2070
          %v2697 = vunpack.c.l.b16 %v2071
          %v2698 = vunpack.c.h.b16 %v2071
          %v2699 = vunpack.c.l.b16 %v2072
          %v2700 = vunpack.c.h.b16 %v2072
          %v2701 = vunpack.c.l.b16 %v2073
          %v2702 = vunpack.c.h.b16 %v2073
          %v2703 = vunpack.c.l.b16 %v2074
          %v2704 = vunpack.c.h.b16 %v2074
          %v2705 = vunpack.c.l.b16 %v2075
          %v2706 = vunpack.c.h.b16 %v2075
          %v2707 = vunpack.c.l.b16 %v2076
          %v2708 = vunpack.c.h.b16 %v2076
          %v2709 = vunpack.c.l.b16 %v2077
          %v2710 = vunpack.c.h.b16 %v2077
          %v2711 = vunpack.c.l.b16 %v2078
          %v2712 = vunpack.c.h.b16 %v2078
          %v2713 = vunpack.c.l.b16 %v2079
          %v2714 = vunpack.c.h.b16 %v2079
          %v2715 = vunpack.c.l.b16 %v2080
          %v2716 = vunpack.c.h.b16 %v2080
          %v2717 = vunpack.c.l.b16 %v2081
          %v2718 = vunpack.c.h.b16 %v2081
          %v2719 = vunpack.c.l.b16 %v2082
          %v2720 = vunpack.c.h.b16 %v2082
          %v2721 = vunpack.c.l.b16 %v2083
          %v2722 = vunpack.c.h.b16 %v2083
          %v2723 = vunpack.c.l.b16 %v2084
          %v2724 = vunpack.c.h.b16 %v2084
          %v2725 = vunpack.c.l.b16 %v2085
          %v2726 = vunpack.c.h.b16 %v2085
          %v2727 = vunpack.c.l.b16 %v2086
          %v2728 = vunpack.c.h.b16 %v2086
          %v2729 = vunpack.c.l.b16 %v2087
          %v2730 = vunpack.c.h.b16 %v2087
          %v2731 = vunpack.c.l.b16 %v2088
          %v2732 = vunpack.c.h.b16 %v2088
          %v2733 = vunpack.c.l.b16 %v2089
          %v2734 = vunpack.c.h.b16 %v2089
          %v2735 = vunpack.c.l.b16 %v2090
          %v2736 = vunpack.c.h.b16 %v2090
          %v2737 = vunpack.c.l.b16 %v2091
          %v2738 = vunpack.c.h.b16 %v2091
          %v2739 = vunpack.c.l.b16 %v2092
          %v2740 = vunpack.c.h.b16 %v2092
          %v2741 = vunpack.c.l.b16 %v2093
          %v2742 = vunpack.c.h.b16 %v2093
          %v2743 = vunpack.c.l.b16 %v2094
          %v2744 = vunpack.c.h.b16 %v2094
          %v2745 = vunpack.c.l.b16 %v2095
          %v2746 = vunpack.c.h.b16 %v2095
          %v2747 = vunpack.c.l.b16 %v2096
          %v2748 = vunpack.c.h.b16 %v2096
          %v2749 = vunpack.c.l.b16 %v2097
          %v2750 = vunpack.c.h.b16 %v2097
          %v2751 = vunpack.c.l.b16 %v2098
          %v2752 = vunpack.c.h.b16 %v2098
          %v2753 = vunpack.c.l.b16 %v2099
          %v2754 = vunpack.c.h.b16 %v2099
          %v2755 = vunpack.c.l.b16 %v2100
          %v2756 = vunpack.c.h.b16 %v2100
          %v2757 = vunpack.c.l.b16 %v2101
          %v2758 = vunpack.c.h.b16 %v2101
          %v2759 = vunpack.c.l.b16 %v2102
          %v2760 = vunpack.c.h.b16 %v2102
          %v2761 = vunpack.c.l.b16 %v2103
          %v2762 = vunpack.c.h.b16 %v2103
          %v2763 = vunpack.c.l.b16 %v2104
          %v2764 = vunpack.c.h.b16 %v2104
          %v2765 = vunpack.c.l.b16 %v2105
          %v2766 = vunpack.c.h.b16 %v2105
          %v2767 = vunpack.c.l.b16 %v2106
          %v2768 = vunpack.c.h.b16 %v2106
          %v2769 = vunpack.c.l.b16 %v2107
          %v2770 = vunpack.c.h.b16 %v2107
          %v2771 = vunpack.c.l.b16 %v2108
          %v2772 = vunpack.c.h.b16 %v2108
          %v2773 = vunpack.c.l.b16 %v2109
          %v2774 = vunpack.c.h.b16 %v2109
          %v2775 = vunpack.c.l.b16 %v2110
          %v2776 = vunpack.c.h.b16 %v2110
          %v2777 = vunpack.c.l.b16 %v2111
          %v2778 = vunpack.c.h.b16 %v2111
          %v2779 = vunpack.c.l.b16 %v2112
          %v2780 = vunpack.c.h.b16 %v2112
          %v2781 = vunpack.c.l.b16 %v2113
          %v2782 = vunpack.c.h.b16 %v2113
          %v2783 = vunpack.c.l.b16 %v2114
          %v2784 = vunpack.c.h.b16 %v2114
          %v2785 = vunpack.c.l.b16 %v2115
          %v2786 = vunpack.c.h.b16 %v2115
          %v2787 = vunpack.c.l.b16 %v2116
          %v2788 = vunpack.c.h.b16 %v2116
          %v2789 = vunpack.c.l.b16 %v2117
          %v2790 = vunpack.c.h.b16 %v2117
          %v2791 = vunpack.c.l.b16 %v2118
          %v2792 = vunpack.c.h.b16 %v2118
          %v2793 = vunpack.c.l.b16 %v2119
          %v2794 = vunpack.c.h.b16 %v2119
          %v2795 = vunpack.c.l.b16 %v2120
          %v2796 = vunpack.c.h.b16 %v2120
          %v2797 = vunpack.c.l.b16 %v2121
          %v2798 = vunpack.c.h.b16 %v2121
          %v2799 = vunpack.c.l.b16 %v2122
          %v2800 = vunpack.c.h.b16 %v2122
          %v2801 = vunpack.c.l.b16 %v2123
          %v2802 = vunpack.c.h.b16 %v2123
          %v2803 = vunpack.c.l.b16 %v2124
          %v2804 = vunpack.c.h.b16 %v2124
          %v2805 = vunpack.c.l.b16 %v2125
          %v2806 = vunpack.c.h.b16 %v2125
          %v2807 = vunpack.c.l.b16 %v2126
          %v2808 = vunpack.c.h.b16 %v2126
          %v2809 = vunpack.c.l.b16 %v2127
          %v2810 = vunpack.c.h.b16 %v2127
          %v2811 = vunpack.c.l.b16 %v2128
          %v2812 = vunpack.c.h.b16 %v2128
          %v2813 = vunpack.c.l.b16 %v2129
          %v2814 = vunpack.c.h.b16 %v2129
          %v2815 = vunpack.c.l.b16 %v2130
          %v2816 = vunpack.c.h.b16 %v2130
          %v2817 = vunpack.c.l.b16 %v2131
          %v2818 = vunpack.c.h.b16 %v2131
          %v2819 = vunpack.c.l.b16 %v2132
          %v2820 = vunpack.c.h.b16 %v2132
          %v2821 = vunpack.c.l.b16 %v2133
          %v2822 = vunpack.c.h.b16 %v2133
          %v2823 = vunpack.c.l.b16 %v2134
          %v2824 = vunpack.c.h.b16 %v2134
          %v2825 = vunpack.c.l.b16 %v2135
          %v2826 = vunpack.c.h.b16 %v2135
          %v2827 = vunpack.c.l.b16 %v2136
          %v2828 = vunpack.c.h.b16 %v2136
          %v2829 = vunpack.c.l.b16 %v2137
          %v2830 = vunpack.c.h.b16 %v2137
          %v2831 = vunpack.c.l.b16 %v2138
          %v2832 = vunpack.c.h.b16 %v2138
          %v2833 = vunpack.c.l.b16 %v2139
          %v2834 = vunpack.c.h.b16 %v2139
          %v2835 = vunpack.c.l.b16 %v2140
          %v2836 = vunpack.c.h.b16 %v2140
          %v2837 = vunpack.c.l.b16 %v2141
          %v2838 = vunpack.c.h.b16 %v2141
          %v2839 = vunpack.c.l.b16 %v2142
          %v2840 = vunpack.c.h.b16 %v2142
          %v2841 = vunpack.c.l.b16 %v2143
          %v2842 = vunpack.c.h.b16 %v2143
          %v2843 = vunpack.c.l.b16 %v2144
          %v2844 = vunpack.c.h.b16 %v2144
          %v2845 = vunpack.c.l.b16 %v2145
          %v2846 = vunpack.c.h.b16 %v2145
          %v2847 = vunpack.c.l.b16 %v2146
          %v2848 = vunpack.c.h.b16 %v2146
          %v2849 = vunpack.c.l.b16 %v2147
          %v2850 = vunpack.c.h.b16 %v2147
          %v2851 = vunpack.c.l.b16 %v2148
          %v2852 = vunpack.c.h.b16 %v2148
          %v2853 = vunpack.c.l.b16 %v2149
          %v2854 = vunpack.c.h.b16 %v2149
          %v2855 = vunpack.c.l.b16 %v2150
          %v2856 = vunpack.c.h.b16 %v2150
          %v2857 = vunpack.c.l.b16 %v2151
          %v2858 = vunpack.c.h.b16 %v2151
          %v2859 = vunpack.c.l.b16 %v2152
          %v2860 = vunpack.c.h.b16 %v2152
          %v2861 = vunpack.c.l.b16 %v2153
          %v2862 = vunpack.c.h.b16 %v2153
          %v2863 = vunpack.c.l.b16 %v2154
          %v2864 = vunpack.c.h.b16 %v2154
          %v2865 = vunpack.c.l.b16 %v2155
          %v2866 = vunpack.c.h.b16 %v2155
          %v2867 = vunpack.c.l.b16 %v2156
          %v2868 = vunpack.c.h.b16 %v2156
          %v2869 = vunpack.c.l.b16 %v2157
          %v2870 = vunpack.c.h.b16 %v2157
          %v2871 = vunpack.c.l.b16 %v2158
          %v2872 = vunpack.c.h.b16 %v2158
          %v2873 = vunpack.c.l.b16 %v2159
          %v2874 = vunpack.c.h.b16 %v2159
          %v2875 = vunpack.c.l.b16 %v2160
          %v2876 = vunpack.c.h.b16 %v2160
          %v2877 = vunpack.c.l.b16 %v2161
          %v2878 = vunpack.c.h.b16 %v2161
          %v2879 = vunpack.c.l.b16 %v2162
          %v2880 = vunpack.c.h.b16 %v2162
          %v2881 = vunpack.c.l.b16 %v2163
          %v2882 = vunpack.c.h.b16 %v2163
          %v2883 = vunpack.c.l.b16 %v2164
          %v2884 = vunpack.c.h.b16 %v2164
          %v2885 = vunpack.c.l.b16 %v2165
          %v2886 = vunpack.c.h.b16 %v2165
          %v2887 = vunpack.c.l.b16 %v2166
          %v2888 = vunpack.c.h.b16 %v2166
          %v2889 = vunpack.c.l.b16 %v2167
          %v2890 = vunpack.c.h.b16 %v2167
          %v2891 = vunpack.c.l.b16 %v2168
          %v2892 = vunpack.c.h.b16 %v2168
          %v2893 = vunpack.c.l.b16 %v2169
          %v2894 = vunpack.c.h.b16 %v2169
          %v2895 = vunpack.c.l.b16 %v2170
          %v2896 = vunpack.c.h.b16 %v2170
          %v2897 = vunpack.c.l.b16 %v2171
          %v2898 = vunpack.c.h.b16 %v2171
          %v2899 = vunpack.c.l.b16 %v2172
          %v2900 = vunpack.c.h.b16 %v2172
          %v2901 = vunpack.c.l.b16 %v2173
          %v2902 = vunpack.c.h.b16 %v2173
          %v2903 = vunpack.c.l.b16 %v2174
          %v2904 = vunpack.c.h.b16 %v2174
          %v2905 = vunpack.c.l.b16 %v2175
          %v2906 = vunpack.c.h.b16 %v2175
          %v2907 = vunpack.c.l.b16 %v2176
          %v2908 = vunpack.c.h.b16 %v2176
          %v2909 = vunpack.c.l.b16 %v2177
          %v2910 = vunpack.c.h.b16 %v2177
          %v2911 = vunpack.c.l.b16 %v2178
          %v2912 = vunpack.c.h.b16 %v2178
          %v2913 = vunpack.c.l.b16 %v2179
          %v2914 = vunpack.c.h.b16 %v2179
          %v2915 = vunpack.c.l.b16 %v2180
          %v2916 = vunpack.c.h.b16 %v2180
          %v2917 = vunpack.c.l.b16 %v2181
          %v2918 = vunpack.c.h.b16 %v2181
          %v2919 = vunpack.c.l.b16 %v2182
          %v2920 = vunpack.c.h.b16 %v2182
          %v2921 = vunpack.c.l.b16 %v2183
          %v2922 = vunpack.c.h.b16 %v2183
          %v2923 = vunpack.c.l.b16 %v2184
          %v2924 = vunpack.c.h.b16 %v2184
          %v2925 = vunpack.c.l.b16 %v2185
          %v2926 = vunpack.c.h.b16 %v2185
          %v2927 = vunpack.c.l.b16 %v2186
          %v2928 = vunpack.c.h.b16 %v2186
          %v2929 = vunpack.c.l.b16 %v2187
          %v2930 = vunpack.c.h.b16 %v2187
          %v2931 = vunpack.c.l.b16 %v2188
          %v2932 = vunpack.c.h.b16 %v2188
          %v2933 = vunpack.c.l.b16 %v2189
          %v2934 = vunpack.c.h.b16 %v2189
          %v2935 = vunpack.c.l.b16 %v2190
          %v2936 = vunpack.c.h.b16 %v2190
          %v2937 = vunpack.c.l.b16 %v2191
          %v2938 = vunpack.c.h.b16 %v2191
          %v2939 = vunpack.c.l.b16 %v2192
          %v2940 = vunpack.c.h.b16 %v2192
          %v2941 = vunpack.c.l.b16 %v2193
          %v2942 = vunpack.c.h.b16 %v2193
          %v2943 = vunpack.c.l.b16 %v2194
          %v2944 = vunpack.c.h.b16 %v2194
          %v2945 = vunpack.c.l.b16 %v2195
          %v2946 = vunpack.c.h.b16 %v2195
          %v2947 = vunpack.c.l.b16 %v2196
          %v2948 = vunpack.c.h.b16 %v2196
          %v2949 = vunpack.c.l.b16 %v2197
          %v2950 = vunpack.c.h.b16 %v2197
          %v2951 = vunpack.c.l.b16 %v2198
          %v2952 = vunpack.c.h.b16 %v2198
          %v2953 = vunpack.c.l.b16 %v2199
          %v2954 = vunpack.c.h.b16 %v2199
          %v2955 = vunpack.c.l.b16 %v2200
          %v2956 = vunpack.c.h.b16 %v2200
          %v2957 = vunpack.c.l.b16 %v2201
          %v2958 = vunpack.c.h.b16 %v2201
          %v2959 = vunpack.c.l.b16 %v2202
          %v2960 = vunpack.c.h.b16 %v2202
          %v2961 = vunpack.c.l.b16 %v2203
          %v2962 = vunpack.c.h.b16 %v2203
          %v2963 = vunpack.c.l.b16 %v2204
          %v2964 = vunpack.c.h.b16 %v2204
          %v2965 = vunpack.c.l.b16 %v2205
          %v2966 = vunpack.c.h.b16 %v2205
          %v2967 = vunpack.c.l.b16 %v2206
          %v2968 = vunpack.c.h.b16 %v2206
          %v2969 = vunpack.c.l.b16 %v2207
          %v2970 = vunpack.c.h.b16 %v2207
          %v2971 = vunpack.c.l.b16 %v2208
          %v2972 = vunpack.c.h.b16 %v2208
          %v2973 = vunpack.c.l.b16 %v2209
          %v2974 = vunpack.c.h.b16 %v2209
          %v2975 = vunpack.c.l.b16 %v2210
          %v2976 = vunpack.c.h.b16 %v2210
          %v2977 = vunpack.c.l.b16 %v2211
          %v2978 = vunpack.c.h.b16 %v2211
          %v2979 = vunpack.c.l.b16 %v2212
          %v2980 = vunpack.c.h.b16 %v2212
          %v2981 = vunpack.c.l.b16 %v2213
          %v2982 = vunpack.c.h.b16 %v2213
          %v2983 = vpack.c.b16 %v2475, %v2471
          %v2984 = vpack.c.b16 %v2476, %v2472
          %v2985 = vpack.c.b16 %v2477, %v2473
          %v2986 = vpack.c.b16 %v2478, %v2474
          %v2987 = vpack.c.b16 %v2483, %v2479
          %v2988 = vpack.c.b16 %v2484, %v2480
          %v2989 = vpack.c.b16 %v2485, %v2481
          %v2990 = vpack.c.b16 %v2486, %v2482
          %v2991 = vpack.c.b16 %v2491, %v2487
          %v2992 = vpack.c.b16 %v2492, %v2488
          %v2993 = vpack.c.b16 %v2493, %v2489
          %v2994 = vpack.c.b16 %v2494, %v2490
          %v2995 = vpack.c.b16 %v2499, %v2495
          %v2996 = vpack.c.b16 %v2500, %v2496
          %v2997 = vpack.c.b16 %v2501, %v2497
          %v2998 = vpack.c.b16 %v2502, %v2498
          %v2999 = vpack.c.b16 %v2507, %v2503
          %v3000 = vpack.c.b16 %v2508, %v2504
          %v3001 = vpack.c.b16 %v2509, %v2505
          %v3002 = vpack.c.b16 %v2510, %v2506
          %v3003 = vpack.c.b16 %v2515, %v2511
          %v3004 = vpack.c.b16 %v2516, %v2512
          %v3005 = vpack.c.b16 %v2517, %v2513
          %v3006 = vpack.c.b16 %v2518, %v2514
          %v3007 = vpack.c.b16 %v2523, %v2519
          %v3008 = vpack.c.b16 %v2524, %v2520
          %v3009 = vpack.c.b16 %v2525, %v2521
          %v3010 = vpack.c.b16 %v2526, %v2522
          %v3011 = vpack.c.b16 %v2531, %v2527
          %v3012 = vpack.c.b16 %v2532, %v2528
          %v3013 = vpack.c.b16 %v2533, %v2529
          %v3014 = vpack.c.b16 %v2534, %v2530
          %v3015 = vpack.c.b16 %v2539, %v2535
          %v3016 = vpack.c.b16 %v2540, %v2536
          %v3017 = vpack.c.b16 %v2541, %v2537
          %v3018 = vpack.c.b16 %v2542, %v2538
          %v3019 = vpack.c.b16 %v2547, %v2543
          %v3020 = vpack.c.b16 %v2548, %v2544
          %v3021 = vpack.c.b16 %v2549, %v2545
          %v3022 = vpack.c.b16 %v2550, %v2546
          %v3023 = vpack.c.b16 %v2555, %v2551
          %v3024 = vpack.c.b16 %v2556, %v2552
          %v3025 = vpack.c.b16 %v2557, %v2553
          %v3026 = vpack.c.b16 %v2558, %v2554
          %v3027 = vpack.c.b16 %v2563, %v2559
          %v3028 = vpack.c.b16 %v2564, %v2560
          %v3029 = vpack.c.b16 %v2565, %v2561
          %v3030 = vpack.c.b16 %v2566, %v2562
          %v3031 = vpack.c.b16 %v2571, %v2567
          %v3032 = vpack.c.b16 %v2572, %v2568
          %v3033 = vpack.c.b16 %v2573, %v2569
          %v3034 = vpack.c.b16 %v2574, %v2570
          %v3035 = vpack.c.b16 %v2579, %v2575
          %v3036 = vpack.c.b16 %v2580, %v2576
          %v3037 = vpack.c.b16 %v2581, %v2577
          %v3038 = vpack.c.b16 %v2582, %v2578
          %v3039 = vpack.c.b16 %v2587, %v2583
          %v3040 = vpack.c.b16 %v2588, %v2584
          %v3041 = vpack.c.b16 %v2589, %v2585
          %v3042 = vpack.c.b16 %v2590, %v2586
          %v3043 = vpack.c.b16 %v2595, %v2591
          %v3044 = vpack.c.b16 %v2596, %v2592
          %v3045 = vpack.c.b16 %v2597, %v2593
          %v3046 = vpack.c.b16 %v2598, %v2594
          %v3047 = vpack.c.b16 %v2603, %v2599
          %v3048 = vpack.c.b16 %v2604, %v2600
          %v3049 = vpack.c.b16 %v2605, %v2601
          %v3050 = vpack.c.b16 %v2606, %v2602
          %v3051 = vpack.c.b16 %v2611, %v2607
          %v3052 = vpack.c.b16 %v2612, %v2608
          %v3053 = vpack.c.b16 %v2613, %v2609
          %v3054 = vpack.c.b16 %v2614, %v2610
          %v3055 = vpack.c.b16 %v2619, %v2615
          %v3056 = vpack.c.b16 %v2620, %v2616
          %v3057 = vpack.c.b16 %v2621, %v2617
          %v3058 = vpack.c.b16 %v2622, %v2618
          %v3059 = vpack.c.b16 %v2627, %v2623
          %v3060 = vpack.c.b16 %v2628, %v2624
          %v3061 = vpack.c.b16 %v2629, %v2625
          %v3062 = vpack.c.b16 %v2630, %v2626
          %v3063 = vpack.c.b16 %v2635, %v2631
          %v3064 = vpack.c.b16 %v2636, %v2632
          %v3065 = vpack.c.b16 %v2637, %v2633
          %v3066 = vpack.c.b16 %v2638, %v2634
          %v3067 = vpack.c.b16 %v2643, %v2639
          %v3068 = vpack.c.b16 %v2644, %v2640
          %v3069 = vpack.c.b16 %v2645, %v2641
          %v3070 = vpack.c.b16 %v2646, %v2642
          %v3071 = vpack.c.b16 %v2651, %v2647
          %v3072 = vpack.c.b16 %v2652, %v2648
          %v3073 = vpack.c.b16 %v2653, %v2649
          %v3074 = vpack.c.b16 %v2654, %v2650
          %v3075 = vpack.c.b16 %v2659, %v2655
          %v3076 = vpack.c.b16 %v2660, %v2656
          %v3077 = vpack.c.b16 %v2661, %v2657
          %v3078 = vpack.c.b16 %v2662, %v2658
          %v3079 = vpack.c.b16 %v2667, %v2663
          %v3080 = vpack.c.b16 %v2668, %v2664
          %v3081 = vpack.c.b16 %v2669, %v2665
          %v3082 = vpack.c.b16 %v2670, %v2666
          %v3083 = vpack.c.b16 %v2675, %v2671
          %v3084 = vpack.c.b16 %v2676, %v2672
          %v3085 = vpack.c.b16 %v2677, %v2673
          %v3086 = vpack.c.b16 %v2678, %v2674
          %v3087 = vpack.c.b16 %v2683, %v2679
          %v3088 = vpack.c.b16 %v2684, %v2680
          %v3089 = vpack.c.b16 %v2685, %v2681
          %v3090 = vpack.c.b16 %v2686, %v2682
          %v3091 = vpack.c.b16 %v2691, %v2687
          %v3092 = vpack.c.b16 %v2692, %v2688
          %v3093 = vpack.c.b16 %v2693, %v2689
          %v3094 = vpack.c.b16 %v2694, %v2690
          %v3095 = vpack.c.b16 %v2699, %v2695
          %v3096 = vpack.c.b16 %v2700, %v2696
          %v3097 = vpack.c.b16 %v2701, %v2697
          %v3098 = vpack.c.b16 %v2702, %v2698
          %v3099 = vpack.c.b16 %v2707, %v2703
          %v3100 = vpack.c.b16 %v2708, %v2704
          %v3101 = vpack.c.b16 %v2709, %v2705
          %v3102 = vpack.c.b16 %v2710, %v2706
          %v3103 = vpack.c.b16 %v2715, %v2711
          %v3104 = vpack.c.b16 %v2716, %v2712
          %v3105 = vpack.c.b16 %v2717, %v2713
          %v3106 = vpack.c.b16 %v2718, %v2714
          %v3107 = vpack.c.b16 %v2723, %v2719
          %v3108 = vpack.c.b16 %v2724, %v2720
          %v3109 = vpack.c.b16 %v2725, %v2721
          %v3110 = vpack.c.b16 %v2726, %v2722
          %v3111 = vpack.c.b16 %v2731, %v2727
          %v3112 = vpack.c.b16 %v2732, %v2728
          %v3113 = vpack.c.b16 %v2733, %v2729
          %v3114 = vpack.c.b16 %v2734, %v2730
          %v3115 = vpack.c.b16 %v2739, %v2735
          %v3116 = vpack.c.b16 %v2740, %v2736
          %v3117 = vpack.c.b16 %v2741, %v2737
          %v3118 = vpack.c.b16 %v2742, %v2738
          %v3119 = vpack.c.b16 %v2747, %v2743
          %v3120 = vpack.c.b16 %v2748, %v2744
          %v3121 = vpack.c.b16 %v2749, %v2745
          %v3122 = vpack.c.b16 %v2750, %v2746
          %v3123 = vpack.c.b16 %v2755, %v2751
          %v3124 = vpack.c.b16 %v2756, %v2752
          %v3125 = vpack.c.b16 %v2757, %v2753
          %v3126 = vpack.c.b16 %v2758, %v2754
          %v3127 = vpack.c.b16 %v2763, %v2759
          %v3128 = vpack.c.b16 %v2764, %v2760
          %v3129 = vpack.c.b16 %v2765, %v2761
          %v3130 = vpack.c.b16 %v2766, %v2762
          %v3131 = vpack.c.b16 %v2771, %v2767
          %v3132 = vpack.c.b16 %v2772, %v2768
          %v3133 = vpack.c.b16 %v2773, %v2769
          %v3134 = vpack.c.b16 %v2774, %v2770
          %v3135 = vpack.c.b16 %v2779, %v2775
          %v3136 = vpack.c.b16 %v2780, %v2776
          %v3137 = vpack.c.b16 %v2781, %v2777
          %v3138 = vpack.c.b16 %v2782, %v2778
          %v3139 = vpack.c.b16 %v2787, %v2783
          %v3140 = vpack.c.b16 %v2788, %v2784
          %v3141 = vpack.c.b16 %v2789, %v2785
          %v3142 = vpack.c.b16 %v2790, %v2786
          %v3143 = vpack.c.b16 %v2795, %v2791
          %v3144 = vpack.c.b16 %v2796, %v2792
          %v3145 = vpack.c.b16 %v2797, %v2793
          %v3146 = vpack.c.b16 %v2798, %v2794
          %v3147 = vpack.c.b16 %v2803, %v2799
          %v3148 = vpack.c.b16 %v2804, %v2800
          %v3149 = vpack.c.b16 %v2805, %v2801
          %v3150 = vpack.c.b16 %v2806, %v2802
          %v3151 = vpack.c.b16 %v2811, %v2807
          %v3152 = vpack.c.b16 %v2812, %v2808
          %v3153 = vpack.c.b16 %v2813, %v2809
          %v3154 = vpack.c.b16 %v2814, %v2810
          %v3155 = vpack.c.b16 %v2819, %v2815
          %v3156 = vpack.c.b16 %v2820, %v2816
          %v3157 = vpack.c.b16 %v2821, %v2817
          %v3158 = vpack.c.b16 %v2822, %v2818
          %v3159 = vpack.c.b16 %v2827, %v2823
          %v3160 = vpack.c.b16 %v2828, %v2824
          %v3161 = vpack.c.b16 %v2829, %v2825
          %v3162 = vpack.c.b16 %v2830, %v2826
          %v3163 = vpack.c.b16 %v2835, %v2831
          %v3164 = vpack.c.b16 %v2836, %v2832
          %v3165 = vpack.c.b16 %v2837, %v2833
          %v3166 = vpack.c.b16 %v2838, %v2834
          %v3167 = vpack.c.b16 %v2843, %v2839
          %v3168 = vpack.c.b16 %v2844, %v2840
          %v3169 = vpack.c.b16 %v2845, %v2841
          %v3170 = vpack.c.b16 %v2846, %v2842
          %v3171 = vpack.c.b16 %v2851, %v2847
          %v3172 = vpack.c.b16 %v2852, %v2848
          %v3173 = vpack.c.b16 %v2853, %v2849
          %v3174 = vpack.c.b16 %v2854, %v2850
          %v3175 = vpack.c.b16 %v2859, %v2855
          %v3176 = vpack.c.b16 %v2860, %v2856
          %v3177 = vpack.c.b16 %v2861, %v2857
          %v3178 = vpack.c.b16 %v2862, %v2858
          %v3179 = vpack.c.b16 %v2867, %v2863
          %v3180 = vpack.c.b16 %v2868, %v2864
          %v3181 = vpack.c.b16 %v2869, %v2865
          %v3182 = vpack.c.b16 %v2870, %v2866
          %v3183 = vpack.c.b16 %v2875, %v2871
          %v3184 = vpack.c.b16 %v2876, %v2872
          %v3185 = vpack.c.b16 %v2877, %v2873
          %v3186 = vpack.c.b16 %v2878, %v2874
          %v3187 = vpack.c.b16 %v2883, %v2879
          %v3188 = vpack.c.b16 %v2884, %v2880
          %v3189 = vpack.c.b16 %v2885, %v2881
          %v3190 = vpack.c.b16 %v2886, %v2882
          %v3191 = vpack.c.b16 %v2891, %v2887
          %v3192 = vpack.c.b16 %v2892, %v2888
          %v3193 = vpack.c.b16 %v2893, %v2889
          %v3194 = vpack.c.b16 %v2894, %v2890
          %v3195 = vpack.c.b16 %v2899, %v2895
          %v3196 = vpack.c.b16 %v2900, %v2896
          %v3197 = vpack.c.b16 %v2901, %v2897
          %v3198 = vpack.c.b16 %v2902, %v2898
          %v3199 = vpack.c.b16 %v2907, %v2903
          %v3200 = vpack.c.b16 %v2908, %v2904
          %v3201 = vpack.c.b16 %v2909, %v2905
          %v3202 = vpack.c.b16 %v2910, %v2906
          %v3203 = vpack.c.b16 %v2915, %v2911
          %v3204 = vpack.c.b16 %v2916, %v2912
          %v3205 = vpack.c.b16 %v2917, %v2913
          %v3206 = vpack.c.b16 %v2918, %v2914
          %v3207 = vpack.c.b16 %v2923, %v2919
          %v3208 = vpack.c.b16 %v2924, %v2920
          %v3209 = vpack.c.b16 %v2925, %v2921
          %v3210 = vpack.c.b16 %v2926, %v2922
          %v3211 = vpack.c.b16 %v2931, %v2927
          %v3212 = vpack.c.b16 %v2932, %v2928
          %v3213 = vpack.c.b16 %v2933, %v2929
          %v3214 = vpack.c.b16 %v2934, %v2930
          %v3215 = vpack.c.b16 %v2939, %v2935
          %v3216 = vpack.c.b16 %v2940, %v2936
          %v3217 = vpack.c.b16 %v2941, %v2937
          %v3218 = vpack.c.b16 %v2942, %v2938
          %v3219 = vpack.c.b16 %v2947, %v2943
          %v3220 = vpack.c.b16 %v2948, %v2944
          %v3221 = vpack.c.b16 %v2949, %v2945
          %v3222 = vpack.c.b16 %v2950, %v2946
          %v3223 = vpack.c.b16 %v2955, %v2951
          %v3224 = vpack.c.b16 %v2956, %v2952
          %v3225 = vpack.c.b16 %v2957, %v2953
          %v3226 = vpack.c.b16 %v2958, %v2954
          %v3227 = vpack.c.b16 %v2963, %v2959
          %v3228 = vpack.c.b16 %v2964, %v2960
          %v3229 = vpack.c.b16 %v2965, %v2961
          %v3230 = vpack.c.b16 %v2966, %v2962
          %v3231 = vpack.c.b16 %v2971, %v2967
          %v3232 = vpack.c.b16 %v2972, %v2968
          %v3233 = vpack.c.b16 %v2973, %v2969
          %v3234 = vpack.c.b16 %v2974, %v2970
          %v3235 = vpack.c.b16 %v2979, %v2975
          %v3236 = vpack.c.b16 %v2980, %v2976
          %v3237 = vpack.c.b16 %v2981, %v2977
          %v3238 = vpack.c.b16 %v2982, %v2978
          %v3496 = vlaneseq
          %v3497 = vshrl.u32 %v3496, 7
          %v3498 = vsub.s32 0, %v3497
          %v3499 = vrot.slane %v2214, %v3498
          %v3500 = vlaneseq
          %v3501 = vshrl.u32 %v3500, 7
          %v3502 = vsub.s32 1, %v3501
          %v3503 = vrot.slane %v2214, %v3502
          %v3504 = vlaneseq
          %v3505 = vshrl.u32 %v3504, 7
          %v3506 = vsub.s32 2, %v3505
          %v3507 = vrot.slane %v2214, %v3506
          %v3508 = vlaneseq
          %v3509 = vshrl.u32 %v3508, 7
          %v3510 = vsub.s32 3, %v3509
          %v3511 = vrot.slane %v2214, %v3510
          %3516 = vmatprep.subr.bf16.mxu0 %v2984
          %3517 = vmatpush1.bf16.msra.mxu0 %v2983
          %3518 = vmatprep.subr.bf16.mxu0 %v2988
          %3519 = vmatpush1.bf16.msra.mxu0 %v2987
          %3520 = vmatprep.subr.bf16.mxu0 %v2992
          %3521 = vmatpush1.bf16.msra.mxu0 %v2991
          %3522 = vmatprep.subr.bf16.mxu0 %v2996
          %3523 = vmatpush1.bf16.msra.mxu0 %v2995
          %3524 = vmatprep.subr.bf16.mxu0 %v3000
          %3525 = vmatpush1.bf16.msra.mxu0 %v2999
          %3526 = vmatprep.subr.bf16.mxu0 %v3004
          %3527 = vmatpush1.bf16.msra.mxu0 %v3003
          %3528 = vmatprep.subr.bf16.mxu0 %v3008
          %3529 = vmatpush1.bf16.msra.mxu0 %v3007
          %3530 = vmatprep.subr.bf16.mxu0 %v3012
          %3531 = vmatpush1.bf16.msra.mxu0 %v3011
          %3532 = vmatprep.subr.bf16.mxu0 %v3016
          %3533 = vmatpush1.bf16.msra.mxu0 %v3015
          %3534 = vmatprep.subr.bf16.mxu0 %v3020
          %3535 = vmatpush1.bf16.msra.mxu0 %v3019
          %3536 = vmatprep.subr.bf16.mxu0 %v3024
          %3537 = vmatpush1.bf16.msra.mxu0 %v3023
          %3538 = vmatprep.subr.bf16.mxu0 %v3028
          %3539 = vmatpush1.bf16.msra.mxu0 %v3027
          %3540 = vmatprep.subr.bf16.mxu0 %v3032
          %3541 = vmatpush1.bf16.msra.mxu0 %v3031
          %3542 = vmatprep.subr.bf16.mxu0 %v3036
          %3543 = vmatpush1.bf16.msra.mxu0 %v3035
          %3544 = vmatprep.subr.bf16.mxu0 %v3040
          %3545 = vmatpush1.bf16.msra.mxu0 %v3039
          %3546 = vmatprep.subr.bf16.mxu0 %v3044
          %3547 = vmatpush1.bf16.msra.mxu0 %v3043
          %3548 = vmatprep.mubr.bf16.mxu0 %v1951
          %3549 = vmatmul.mubr.bf16.gmra.mrb[0].mxu0 %v1950
          %v3550 = vpop.f32.mrb[0].mxu0
          %v3551 = vadd.f32 %v3499, %v3550
          %v3552 = vpop.f32.mrb[0].mxu0
          %v3553 = vadd.f32 %v3503, %v3552
          %v3554 = vpop.f32.mrb[0].mxu0
          %v3555 = vpop.f32.mrb[0].mxu0
          %3556 = vdwg.mxu0
          %3557 = vmatprep.subr.bf16.mxu0 %v3048
          %3558 = vmatpush1.bf16.msra.mxu0 %v3047
          %3559 = vmatprep.subr.bf16.mxu0 %v3052
          %3560 = vmatpush1.bf16.msra.mxu0 %v3051
          %3561 = vmatprep.subr.bf16.mxu0 %v3056
          %3562 = vmatpush1.bf16.msra.mxu0 %v3055
          %3563 = vmatprep.subr.bf16.mxu0 %v3060
          %3564 = vmatpush1.bf16.msra.mxu0 %v3059
          %3565 = vmatprep.subr.bf16.mxu0 %v3064
          %3566 = vmatpush1.bf16.msra.mxu0 %v3063
          %3567 = vmatprep.subr.bf16.mxu0 %v3068
          %3568 = vmatpush1.bf16.msra.mxu0 %v3067
          %3569 = vmatprep.subr.bf16.mxu0 %v3072
          %3570 = vmatpush1.bf16.msra.mxu0 %v3071
          %3571 = vmatprep.subr.bf16.mxu0 %v3076
          %3572 = vmatpush1.bf16.msra.mxu0 %v3075
          %3573 = vmatprep.subr.bf16.mxu0 %v3080
          %3574 = vmatpush1.bf16.msra.mxu0 %v3079
          %3575 = vmatprep.subr.bf16.mxu0 %v3084
          %3576 = vmatpush1.bf16.msra.mxu0 %v3083
          %3577 = vmatprep.subr.bf16.mxu0 %v3088
          %3578 = vmatpush1.bf16.msra.mxu0 %v3087
          %3579 = vmatprep.subr.bf16.mxu0 %v3092
          %3580 = vmatpush1.bf16.msra.mxu0 %v3091
          %3581 = vmatprep.subr.bf16.mxu0 %v3096
          %3582 = vmatpush1.bf16.msra.mxu0 %v3095
          %3583 = vmatprep.subr.bf16.mxu0 %v3100
          %3584 = vmatpush1.bf16.msra.mxu0 %v3099
          %3585 = vmatprep.subr.bf16.mxu0 %v3104
          %3586 = vmatpush1.bf16.msra.mxu0 %v3103
          %3587 = vmatprep.subr.bf16.mxu0 %v3108
          %3588 = vmatpush1.bf16.msra.mxu0 %v3107
          %3589 = vmatprep.mubr.bf16.mxu0 %v1953
          %3590 = vmatmul.mubr.bf16.gmra.mrb[0].mxu0 %v1952
          %v3591 = vpop.f32.mrb[0].mxu0
          %v3592 = vadd.f32 %v3551, %v3591
          %v3593 = vpop.f32.mrb[0].mxu0
          %v3594 = vadd.f32 %v3553, %v3593
          %v3595 = vpop.f32.mrb[0].mxu0
          %v3596 = vpop.f32.mrb[0].mxu0
          %3597 = vdwg.mxu0
          %3598 = vmatprep.subr.bf16.mxu0 %v3112
          %3599 = vmatpush1.bf16.msra.mxu0 %v3111
          %3600 = vmatprep.subr.bf16.mxu0 %v3116
          %3601 = vmatpush1.bf16.msra.mxu0 %v3115
          %3602 = vmatprep.subr.bf16.mxu0 %v3120
          %3603 = vmatpush1.bf16.msra.mxu0 %v3119
          %3604 = vmatprep.subr.bf16.mxu0 %v3124
          %3605 = vmatpush1.bf16.msra.mxu0 %v3123
          %3606 = vmatprep.subr.bf16.mxu0 %v3128
          %3607 = vmatpush1.bf16.msra.mxu0 %v3127
          %3608 = vmatprep.subr.bf16.mxu0 %v3132
          %3609 = vmatpush1.bf16.msra.mxu0 %v3131
          %3610 = vmatprep.subr.bf16.mxu0 %v3136
          %3611 = vmatpush1.bf16.msra.mxu0 %v3135
          %3612 = vmatprep.subr.bf16.mxu0 %v3140
          %3613 = vmatpush1.bf16.msra.mxu0 %v3139
          %3614 = vmatprep.subr.bf16.mxu0 %v3144
          %3615 = vmatpush1.bf16.msra.mxu0 %v3143
          %3616 = vmatprep.subr.bf16.mxu0 %v3148
          %3617 = vmatpush1.bf16.msra.mxu0 %v3147
          %3618 = vmatprep.subr.bf16.mxu0 %v3152
          %3619 = vmatpush1.bf16.msra.mxu0 %v3151
          %3620 = vmatprep.subr.bf16.mxu0 %v3156
          %3621 = vmatpush1.bf16.msra.mxu0 %v3155
          %3622 = vmatprep.subr.bf16.mxu0 %v3160
          %3623 = vmatpush1.bf16.msra.mxu0 %v3159
          %3624 = vmatprep.subr.bf16.mxu0 %v3164
          %3625 = vmatpush1.bf16.msra.mxu0 %v3163
          %3626 = vmatprep.subr.bf16.mxu0 %v3168
          %3627 = vmatpush1.bf16.msra.mxu0 %v3167
          %3628 = vmatprep.subr.bf16.mxu0 %v3172
          %3629 = vmatpush1.bf16.msra.mxu0 %v3171
          %3630 = vmatprep.mubr.bf16.mxu0 %v1955
          %3631 = vmatmul.mubr.bf16.gmra.mrb[0].mxu0 %v1954
          %v3632 = vpop.f32.mrb[0].mxu0
          %v3633 = vadd.f32 %v3592, %v3632
          %v3634 = vpop.f32.mrb[0].mxu0
          %v3635 = vadd.f32 %v3594, %v3634
          %v3636 = vpop.f32.mrb[0].mxu0
          %v3637 = vpop.f32.mrb[0].mxu0
          %3638 = vdwg.mxu0
          %3639 = vmatprep.subr.bf16.mxu0 %v3176
          %3640 = vmatpush1.bf16.msra.mxu0 %v3175
          %3641 = vmatprep.subr.bf16.mxu0 %v3180
          %3642 = vmatpush1.bf16.msra.mxu0 %v3179
          %3643 = vmatprep.subr.bf16.mxu0 %v3184
          %3644 = vmatpush1.bf16.msra.mxu0 %v3183
          %3645 = vmatprep.subr.bf16.mxu0 %v3188
          %3646 = vmatpush1.bf16.msra.mxu0 %v3187
          %3647 = vmatprep.subr.bf16.mxu0 %v3192
          %3648 = vmatpush1.bf16.msra.mxu0 %v3191
          %3649 = vmatprep.subr.bf16.mxu0 %v3196
          %3650 = vmatpush1.bf16.msra.mxu0 %v3195
          %3651 = vmatprep.subr.bf16.mxu0 %v3200
          %3652 = vmatpush1.bf16.msra.mxu0 %v3199
          %3653 = vmatprep.subr.bf16.mxu0 %v3204
          %3654 = vmatpush1.bf16.msra.mxu0 %v3203
          %3655 = vmatprep.subr.bf16.mxu0 %v3208
          %3656 = vmatpush1.bf16.msra.mxu0 %v3207
          %3657 = vmatprep.subr.bf16.mxu0 %v3212
          %3658 = vmatpush1.bf16.msra.mxu0 %v3211
          %3659 = vmatprep.subr.bf16.mxu0 %v3216
          %3660 = vmatpush1.bf16.msra.mxu0 %v3215
          %3661 = vmatprep.subr.bf16.mxu0 %v3220
          %3662 = vmatpush1.bf16.msra.mxu0 %v3219
          %3663 = vmatprep.subr.bf16.mxu0 %v3224
          %3664 = vmatpush1.bf16.msra.mxu0 %v3223
          %3665 = vmatprep.subr.bf16.mxu0 %v3228
          %3666 = vmatpush1.bf16.msra.mxu0 %v3227
          %3667 = vmatprep.subr.bf16.mxu0 %v3232
          %3668 = vmatpush1.bf16.msra.mxu0 %v3231
          %3669 = vmatprep.subr.bf16.mxu0 %v3236
          %3670 = vmatpush1.bf16.msra.mxu0 %v3235
          %3671 = vmatprep.mubr.bf16.mxu0 %v1957
          %3672 = vmatmul.mubr.bf16.gmra.mrb[0].mxu0 %v1956
          %v3673 = vpop.f32.mrb[0].mxu0
          %v3674 = vadd.f32 %v3633, %v3673
          %v3675 = vpop.f32.mrb[0].mxu0
          %v3676 = vadd.f32 %v3635, %v3675
          %v3677 = vpop.f32.mrb[0].mxu0
          %v3678 = vpop.f32.mrb[0].mxu0
          %3679 = vdwg.mxu0
          %3680 = vmatprep.subr.bf16.mxu0 %v2986
          %3681 = vmatpush1.bf16.msra.mxu0 %v2985
          %3682 = vmatprep.subr.bf16.mxu0 %v2990
          %3683 = vmatpush1.bf16.msra.mxu0 %v2989
          %3684 = vmatprep.subr.bf16.mxu0 %v2994
          %3685 = vmatpush1.bf16.msra.mxu0 %v2993
          %3686 = vmatprep.subr.bf16.mxu0 %v2998
          %3687 = vmatpush1.bf16.msra.mxu0 %v2997
          %3688 = vmatprep.subr.bf16.mxu0 %v3002
          %3689 = vmatpush1.bf16.msra.mxu0 %v3001
          %3690 = vmatprep.subr.bf16.mxu0 %v3006
          %3691 = vmatpush1.bf16.msra.mxu0 %v3005
          %3692 = vmatprep.subr.bf16.mxu0 %v3010
          %3693 = vmatpush1.bf16.msra.mxu0 %v3009
          %3694 = vmatprep.subr.bf16.mxu0 %v3014
          %3695 = vmatpush1.bf16.msra.mxu0 %v3013
          %3696 = vmatprep.subr.bf16.mxu0 %v3018
          %3697 = vmatpush1.bf16.msra.mxu0 %v3017
          %3698 = vmatprep.subr.bf16.mxu0 %v3022
          %3699 = vmatpush1.bf16.msra.mxu0 %v3021
          %3700 = vmatprep.subr.bf16.mxu0 %v3026
          %3701 = vmatpush1.bf16.msra.mxu0 %v3025
          %3702 = vmatprep.subr.bf16.mxu0 %v3030
          %3703 = vmatpush1.bf16.msra.mxu0 %v3029
          %3704 = vmatprep.subr.bf16.mxu0 %v3034
          %3705 = vmatpush1.bf16.msra.mxu0 %v3033
          %3706 = vmatprep.subr.bf16.mxu0 %v3038
          %3707 = vmatpush1.bf16.msra.mxu0 %v3037
          %3708 = vmatprep.subr.bf16.mxu0 %v3042
          %3709 = vmatpush1.bf16.msra.mxu0 %v3041
          %3710 = vmatprep.subr.bf16.mxu0 %v3046
          %3711 = vmatpush1.bf16.msra.mxu0 %v3045
          %3712 = vmatprep.mubr.bf16.mxu0 %v1951
          %3713 = vmatmul.mubr.bf16.gmra.mrb[0].mxu0 %v1950
          %v3714 = vpop.f32.mrb[0].mxu0
          %v3715 = vadd.f32 %v3507, %v3714
          %v3716 = vpop.f32.mrb[0].mxu0
          %v3717 = vadd.f32 %v3511, %v3716
          %v3718 = vpop.f32.mrb[0].mxu0
          %v3719 = vpop.f32.mrb[0].mxu0
          %3720 = vdwg.mxu0
          %3721 = vmatprep.subr.bf16.mxu0 %v3050
          %3722 = vmatpush1.bf16.msra.mxu0 %v3049
          %3723 = vmatprep.subr.bf16.mxu0 %v3054
          %3724 = vmatpush1.bf16.msra.mxu0 %v3053
          %3725 = vmatprep.subr.bf16.mxu0 %v3058
          %3726 = vmatpush1.bf16.msra.mxu0 %v3057
          %3727 = vmatprep.subr.bf16.mxu0 %v3062
          %3728 = vmatpush1.bf16.msra.mxu0 %v3061
          %3729 = vmatprep.subr.bf16.mxu0 %v3066
          %3730 = vmatpush1.bf16.msra.mxu0 %v3065
          %3731 = vmatprep.subr.bf16.mxu0 %v3070
          %3732 = vmatpush1.bf16.msra.mxu0 %v3069
          %3733 = vmatprep.subr.bf16.mxu0 %v3074
          %3734 = vmatpush1.bf16.msra.mxu0 %v3073
          %3735 = vmatprep.subr.bf16.mxu0 %v3078
          %3736 = vmatpush1.bf16.msra.mxu0 %v3077
          %3737 = vmatprep.subr.bf16.mxu0 %v3082
          %3738 = vmatpush1.bf16.msra.mxu0 %v3081
          %3739 = vmatprep.subr.bf16.mxu0 %v3086
          %3740 = vmatpush1.bf16.msra.mxu0 %v3085
          %3741 = vmatprep.subr.bf16.mxu0 %v3090
          %3742 = vmatpush1.bf16.msra.mxu0 %v3089
          %3743 = vmatprep.subr.bf16.mxu0 %v3094
          %3744 = vmatpush1.bf16.msra.mxu0 %v3093
          %3745 = vmatprep.subr.bf16.mxu0 %v3098
          %3746 = vmatpush1.bf16.msra.mxu0 %v3097
          %3747 = vmatprep.subr.bf16.mxu0 %v3102
          %3748 = vmatpush1.bf16.msra.mxu0 %v3101
          %3749 = vmatprep.subr.bf16.mxu0 %v3106
          %3750 = vmatpush1.bf16.msra.mxu0 %v3105
          %3751 = vmatprep.subr.bf16.mxu0 %v3110
          %3752 = vmatpush1.bf16.msra.mxu0 %v3109
          %3753 = vmatprep.mubr.bf16.mxu0 %v1953
          %3754 = vmatmul.mubr.bf16.gmra.mrb[0].mxu0 %v1952
          %v3755 = vpop.f32.mrb[0].mxu0
          %v3756 = vadd.f32 %v3715, %v3755
          %v3757 = vpop.f32.mrb[0].mxu0
          %v3758 = vadd.f32 %v3717, %v3757
          %v3759 = vpop.f32.mrb[0].mxu0
          %v3760 = vpop.f32.mrb[0].mxu0
          %3761 = vdwg.mxu0
          %3762 = vmatprep.subr.bf16.mxu0 %v3114
          %3763 = vmatpush1.bf16.msra.mxu0 %v3113
          %3764 = vmatprep.subr.bf16.mxu0 %v3118
          %3765 = vmatpush1.bf16.msra.mxu0 %v3117
          %3766 = vmatprep.subr.bf16.mxu0 %v3122
          %3767 = vmatpush1.bf16.msra.mxu0 %v3121
          %3768 = vmatprep.subr.bf16.mxu0 %v3126
          %3769 = vmatpush1.bf16.msra.mxu0 %v3125
          %3770 = vmatprep.subr.bf16.mxu0 %v3130
          %3771 = vmatpush1.bf16.msra.mxu0 %v3129
          %3772 = vmatprep.subr.bf16.mxu0 %v3134
          %3773 = vmatpush1.bf16.msra.mxu0 %v3133
          %3774 = vmatprep.subr.bf16.mxu0 %v3138
          %3775 = vmatpush1.bf16.msra.mxu0 %v3137
          %3776 = vmatprep.subr.bf16.mxu0 %v3142
          %3777 = vmatpush1.bf16.msra.mxu0 %v3141
          %3778 = vmatprep.subr.bf16.mxu0 %v3146
          %3779 = vmatpush1.bf16.msra.mxu0 %v3145
          %3780 = vmatprep.subr.bf16.mxu0 %v3150
          %3781 = vmatpush1.bf16.msra.mxu0 %v3149
          %3782 = vmatprep.subr.bf16.mxu0 %v3154
          %3783 = vmatpush1.bf16.msra.mxu0 %v3153
          %3784 = vmatprep.subr.bf16.mxu0 %v3158
          %3785 = vmatpush1.bf16.msra.mxu0 %v3157
          %3786 = vmatprep.subr.bf16.mxu0 %v3162
          %3787 = vmatpush1.bf16.msra.mxu0 %v3161
          %3788 = vmatprep.subr.bf16.mxu0 %v3166
          %3789 = vmatpush1.bf16.msra.mxu0 %v3165
          %3790 = vmatprep.subr.bf16.mxu0 %v3170
          %3791 = vmatpush1.bf16.msra.mxu0 %v3169
          %3792 = vmatprep.subr.bf16.mxu0 %v3174
          %3793 = vmatpush1.bf16.msra.mxu0 %v3173
          %3794 = vmatprep.mubr.bf16.mxu0 %v1955
          %3795 = vmatmul.mubr.bf16.gmra.mrb[0].mxu0 %v1954
          %v3796 = vpop.f32.mrb[0].mxu0
          %v3797 = vadd.f32 %v3756, %v3796
          %v3798 = vpop.f32.mrb[0].mxu0
          %v3799 = vadd.f32 %v3758, %v3798
          %v3800 = vpop.f32.mrb[0].mxu0
          %v3801 = vpop.f32.mrb[0].mxu0
          %3802 = vdwg.mxu0
          %3803 = vmatprep.subr.bf16.mxu0 %v3178
          %3804 = vmatpush1.bf16.msra.mxu0 %v3177
          %3805 = vmatprep.subr.bf16.mxu0 %v3182
          %3806 = vmatpush1.bf16.msra.mxu0 %v3181
          %3807 = vmatprep.subr.bf16.mxu0 %v3186
          %3808 = vmatpush1.bf16.msra.mxu0 %v3185
          %3809 = vmatprep.subr.bf16.mxu0 %v3190
          %3810 = vmatpush1.bf16.msra.mxu0 %v3189
          %3811 = vmatprep.subr.bf16.mxu0 %v3194
          %3812 = vmatpush1.bf16.msra.mxu0 %v3193
          %3813 = vmatprep.subr.bf16.mxu0 %v3198
          %3814 = vmatpush1.bf16.msra.mxu0 %v3197
          %3815 = vmatprep.subr.bf16.mxu0 %v3202
          %3816 = vmatpush1.bf16.msra.mxu0 %v3201
          %3817 = vmatprep.subr.bf16.mxu0 %v3206
          %3818 = vmatpush1.bf16.msra.mxu0 %v3205
          %3819 = vmatprep.subr.bf16.mxu0 %v3210
          %3820 = vmatpush1.bf16.msra.mxu0 %v3209
          %3821 = vmatprep.subr.bf16.mxu0 %v3214
          %3822 = vmatpush1.bf16.msra.mxu0 %v3213
          %3823 = vmatprep.subr.bf16.mxu0 %v3218
          %3824 = vmatpush1.bf16.msra.mxu0 %v3217
          %3825 = vmatprep.subr.bf16.mxu0 %v3222
          %3826 = vmatpush1.bf16.msra.mxu0 %v3221
          %3827 = vmatprep.subr.bf16.mxu0 %v3226
          %3828 = vmatpush1.bf16.msra.mxu0 %v3225
          %3829 = vmatprep.subr.bf16.mxu0 %v3230
          %3830 = vmatpush1.bf16.msra.mxu0 %v3229
          %3831 = vmatprep.subr.bf16.mxu0 %v3234
          %3832 = vmatpush1.bf16.msra.mxu0 %v3233
          %3833 = vmatprep.subr.bf16.mxu0 %v3238
          %3834 = vmatpush1.bf16.msra.mxu0 %v3237
          %3835 = vmatprep.mubr.bf16.mxu0 %v1957
          %3836 = vmatmul.mubr.bf16.gmra.mrb[0].mxu0 %v1956
          %v3837 = vpop.f32.mrb[0].mxu0
          %v3838 = vadd.f32 %v3797, %v3837
          %v3839 = vpop.f32.mrb[0].mxu0
          %v3840 = vadd.f32 %v3799, %v3839
          %v3841 = vpop.f32.mrb[0].mxu0
          %v3842 = vpop.f32.mrb[0].mxu0
          %3843 = vdwg.mxu0
          %vm3844 = vcmp.ge.f32.partialorder %v3674, 0.0
          %vm3845 = vcmp.ge.f32.partialorder %v3676, 0.0
          %vm3846 = vcmp.ge.f32.partialorder %v3838, 0.0
          %vm3847 = vcmp.ge.f32.partialorder %v3840, 0.0
          %v3848 = vmul.f32 %v3674, 0.2
          %v3849 = vmul.f32 %v3676, 0.2
          %v3850 = vmul.f32 %v3838, 0.2
          %v3851 = vmul.f32 %v3840, 0.2
          %v3852 = vsel %vm3844, %v3674, %v3848
          %v3853 = vsel %vm3845, %v3676, %v3849
          %v3854 = vsel %vm3846, %v3838, %v3850
          %v3855 = vsel %vm3847, %v3840, %v3851
          %v3856 = vpack.c.bf16 %v3852, %v3852
          %v3857 = vpack.c.bf16 %v3853, %v3853
          %v3858 = vpack.c.bf16 %v3854, %v3854
          %v3859 = vpack.c.bf16 %v3855, %v3855
          %v3860 = vld [vmem:[#allocation8] sm:$0xff]
          %v3861 = vld [vmem:[#allocation8 + $0x8] sm:$0xff]
          %v3862 = vld [vmem:[#allocation8 + $0x10] sm:$0xff]
          %v3863 = vld [vmem:[#allocation8 + $0x18] sm:$0xff]
          %v3864 = vld [vmem:[#allocation8 + $0x20] sm:$0xff]
          %v3865 = vld [vmem:[#allocation8 + $0x28] sm:$0xff]
          %v3866 = vld [vmem:[#allocation8 + $0x30] sm:$0xff]
          %v3867 = vld [vmem:[#allocation8 + $0x38] sm:$0xff]
          %v3868 = vld [vmem:[#allocation8 + $0x40] sm:$0xff]
          %v3869 = vld [vmem:[#allocation8 + $0x48] sm:$0xff]
          %v3870 = vld [vmem:[#allocation8 + $0x50] sm:$0xff]
          %v3871 = vld [vmem:[#allocation8 + $0x58] sm:$0xff]
          %v3872 = vld [vmem:[#allocation8 + $0x60] sm:$0xff]
          %v3873 = vld [vmem:[#allocation8 + $0x68] sm:$0xff]
          %v3874 = vld [vmem:[#allocation8 + $0x70] sm:$0xff]
          %v3875 = vld [vmem:[#allocation8 + $0x78] sm:$0xff]
          %v3876 = vld [vmem:[#allocation8 + $0x80] sm:$0xff]
          %v3877 = vld [vmem:[#allocation8 + $0x88] sm:$0xff]
          %v3878 = vld [vmem:[#allocation8 + $0x90] sm:$0xff]
          %v3879 = vld [vmem:[#allocation8 + $0x98] sm:$0xff]
          %v3880 = vld [vmem:[#allocation8 + $0xa0] sm:$0xff]
          %v3881 = vld [vmem:[#allocation8 + $0xa8] sm:$0xff]
          %v3882 = vld [vmem:[#allocation8 + $0xb0] sm:$0xff]
          %v3883 = vld [vmem:[#allocation8 + $0xb8] sm:$0xff]
          %v3884 = vld [vmem:[#allocation8 + $0xc0] sm:$0xff]
          %v3885 = vld [vmem:[#allocation8 + $0xc8] sm:$0xff]
          %v3886 = vld [vmem:[#allocation8 + $0xd0] sm:$0xff]
          %v3887 = vld [vmem:[#allocation8 + $0xd8] sm:$0xff]
          %v3888 = vld [vmem:[#allocation8 + $0xe0] sm:$0xff]
          %v3889 = vld [vmem:[#allocation8 + $0xe8] sm:$0xff]
          %v3890 = vld [vmem:[#allocation8 + $0xf0] sm:$0xff]
          %v3891 = vld [vmem:[#allocation8 + $0xf8] sm:$0xff]
          %v3892 = vld [vmem:[#allocation8 + $0x100] sm:$0xff]
          %v3893 = vld [vmem:[#allocation8 + $0x108] sm:$0xff]
          %v3894 = vld [vmem:[#allocation8 + $0x110] sm:$0xff]
          %v3895 = vld [vmem:[#allocation8 + $0x118] sm:$0xff]
          %v3896 = vld [vmem:[#allocation8 + $0x120] sm:$0xff]
          %v3897 = vld [vmem:[#allocation8 + $0x128] sm:$0xff]
          %v3898 = vld [vmem:[#allocation8 + $0x130] sm:$0xff]
          %v3899 = vld [vmem:[#allocation8 + $0x138] sm:$0xff]
          %v3900 = vld [vmem:[#allocation8 + $0x140] sm:$0xff]
          %v3901 = vld [vmem:[#allocation8 + $0x148] sm:$0xff]
          %v3902 = vld [vmem:[#allocation8 + $0x150] sm:$0xff]
          %v3903 = vld [vmem:[#allocation8 + $0x158] sm:$0xff]
          %v3904 = vld [vmem:[#allocation8 + $0x160] sm:$0xff]
          %v3905 = vld [vmem:[#allocation8 + $0x168] sm:$0xff]
          %v3906 = vld [vmem:[#allocation8 + $0x170] sm:$0xff]
          %v3907 = vld [vmem:[#allocation8 + $0x178] sm:$0xff]
          %v3908 = vld [vmem:[#allocation8 + $0x180] sm:$0xff]
          %v3909 = vld [vmem:[#allocation8 + $0x188] sm:$0xff]
          %v3910 = vld [vmem:[#allocation8 + $0x190] sm:$0xff]
          %v3911 = vld [vmem:[#allocation8 + $0x198] sm:$0xff]
          %v3912 = vld [vmem:[#allocation8 + $0x1a0] sm:$0xff]
          %v3913 = vld [vmem:[#allocation8 + $0x1a8] sm:$0xff]
          %v3914 = vld [vmem:[#allocation8 + $0x1b0] sm:$0xff]
          %v3915 = vld [vmem:[#allocation8 + $0x1b8] sm:$0xff]
          %v3916 = vld [vmem:[#allocation8 + $0x1c0] sm:$0xff]
          %v3917 = vld [vmem:[#allocation8 + $0x1c8] sm:$0xff]
          %v3918 = vld [vmem:[#allocation8 + $0x1d0] sm:$0xff]
          %v3919 = vld [vmem:[#allocation8 + $0x1d8] sm:$0xff]
          %v3920 = vld [vmem:[#allocation8 + $0x1e0] sm:$0xff]
          %v3921 = vld [vmem:[#allocation8 + $0x1e8] sm:$0xff]
          %v3922 = vld [vmem:[#allocation8 + $0x1f0] sm:$0xff]
          %v3923 = vld [vmem:[#allocation8 + $0x1f8] sm:$0xff]
          %v3924 = vld [vmem:[%s10] sm:$0x3]
          %v3989 = vunpack.c.l.b16 %v3860
          %v3990 = vunpack.c.h.b16 %v3860
          %v3991 = vunpack.c.l.b16 %v3861
          %v3992 = vunpack.c.h.b16 %v3861
          %v3993 = vunpack.c.l.b16 %v3862
          %v3994 = vunpack.c.h.b16 %v3862
          %v3995 = vunpack.c.l.b16 %v3863
          %v3996 = vunpack.c.h.b16 %v3863
          %v3997 = vunpack.c.l.b16 %v3864
          %v3998 = vunpack.c.h.b16 %v3864
          %v3999 = vunpack.c.l.b16 %v3865
          %v4000 = vunpack.c.h.b16 %v3865
          %v4001 = vunpack.c.l.b16 %v3866
          %v4002 = vunpack.c.h.b16 %v3866
          %v4003 = vunpack.c.l.b16 %v3867
          %v4004 = vunpack.c.h.b16 %v3867
          %v4005 = vunpack.c.l.b16 %v3868
          %v4006 = vunpack.c.h.b16 %v3868
          %v4007 = vunpack.c.l.b16 %v3869
          %v4008 = vunpack.c.h.b16 %v3869
          %v4009 = vunpack.c.l.b16 %v3870
          %v4010 = vunpack.c.h.b16 %v3870
          %v4011 = vunpack.c.l.b16 %v3871
          %v4012 = vunpack.c.h.b16 %v3871
          %v4013 = vunpack.c.l.b16 %v3872
          %v4014 = vunpack.c.h.b16 %v3872
          %v4015 = vunpack.c.l.b16 %v3873
          %v4016 = vunpack.c.h.b16 %v3873
          %v4017 = vunpack.c.l.b16 %v3874
          %v4018 = vunpack.c.h.b16 %v3874
          %v4019 = vunpack.c.l.b16 %v3875
          %v4020 = vunpack.c.h.b16 %v3875
          %v4021 = vunpack.c.l.b16 %v3876
          %v4022 = vunpack.c.h.b16 %v3876
          %v4023 = vunpack.c.l.b16 %v3877
          %v4024 = vunpack.c.h.b16 %v3877
          %v4025 = vunpack.c.l.b16 %v3878
          %v4026 = vunpack.c.h.b16 %v3878
          %v4027 = vunpack.c.l.b16 %v3879
          %v4028 = vunpack.c.h.b16 %v3879
          %v4029 = vunpack.c.l.b16 %v3880
          %v4030 = vunpack.c.h.b16 %v3880
          %v4031 = vunpack.c.l.b16 %v3881
          %v4032 = vunpack.c.h.b16 %v3881
          %v4033 = vunpack.c.l.b16 %v3882
          %v4034 = vunpack.c.h.b16 %v3882
          %v4035 = vunpack.c.l.b16 %v3883
          %v4036 = vunpack.c.h.b16 %v3883
          %v4037 = vunpack.c.l.b16 %v3884
          %v4038 = vunpack.c.h.b16 %v3884
          %v4039 = vunpack.c.l.b16 %v3885
          %v4040 = vunpack.c.h.b16 %v3885
          %v4041 = vunpack.c.l.b16 %v3886
          %v4042 = vunpack.c.h.b16 %v3886
          %v4043 = vunpack.c.l.b16 %v3887
          %v4044 = vunpack.c.h.b16 %v3887
          %v4045 = vunpack.c.l.b16 %v3888
          %v4046 = vunpack.c.h.b16 %v3888
          %v4047 = vunpack.c.l.b16 %v3889
          %v4048 = vunpack.c.h.b16 %v3889
          %v4049 = vunpack.c.l.b16 %v3890
          %v4050 = vunpack.c.h.b16 %v3890
          %v4051 = vunpack.c.l.b16 %v3891
          %v4052 = vunpack.c.h.b16 %v3891
          %v4053 = vunpack.c.l.b16 %v3892
          %v4054 = vunpack.c.h.b16 %v3892
          %v4055 = vunpack.c.l.b16 %v3893
          %v4056 = vunpack.c.h.b16 %v3893
          %v4057 = vunpack.c.l.b16 %v3894
          %v4058 = vunpack.c.h.b16 %v3894
          %v4059 = vunpack.c.l.b16 %v3895
          %v4060 = vunpack.c.h.b16 %v3895
          %v4061 = vunpack.c.l.b16 %v3896
          %v4062 = vunpack.c.h.b16 %v3896
          %v4063 = vunpack.c.l.b16 %v3897
          %v4064 = vunpack.c.h.b16 %v3897
          %v4065 = vunpack.c.l.b16 %v3898
          %v4066 = vunpack.c.h.b16 %v3898
          %v4067 = vunpack.c.l.b16 %v3899
          %v4068 = vunpack.c.h.b16 %v3899
          %v4069 = vunpack.c.l.b16 %v3900
          %v4070 = vunpack.c.h.b16 %v3900
          %v4071 = vunpack.c.l.b16 %v3901
          %v4072 = vunpack.c.h.b16 %v3901
          %v4073 = vunpack.c.l.b16 %v3902
          %v4074 = vunpack.c.h.b16 %v3902
          %v4075 = vunpack.c.l.b16 %v3903
          %v4076 = vunpack.c.h.b16 %v3903
          %v4077 = vunpack.c.l.b16 %v3904
          %v4078 = vunpack.c.h.b16 %v3904
          %v4079 = vunpack.c.l.b16 %v3905
          %v4080 = vunpack.c.h.b16 %v3905
          %v4081 = vunpack.c.l.b16 %v3906
          %v4082 = vunpack.c.h.b16 %v3906
          %v4083 = vunpack.c.l.b16 %v3907
          %v4084 = vunpack.c.h.b16 %v3907
          %v4085 = vunpack.c.l.b16 %v3908
          %v4086 = vunpack.c.h.b16 %v3908
          %v4087 = vunpack.c.l.b16 %v3909
          %v4088 = vunpack.c.h.b16 %v3909
          %v4089 = vunpack.c.l.b16 %v3910
          %v4090 = vunpack.c.h.b16 %v3910
          %v4091 = vunpack.c.l.b16 %v3911
          %v4092 = vunpack.c.h.b16 %v3911
          %v4093 = vunpack.c.l.b16 %v3912
          %v4094 = vunpack.c.h.b16 %v3912
          %v4095 = vunpack.c.l.b16 %v3913
          %v4096 = vunpack.c.h.b16 %v3913
          %v4097 = vunpack.c.l.b16 %v3914
          %v4098 = vunpack.c.h.b16 %v3914
          %v4099 = vunpack.c.l.b16 %v3915
          %v4100 = vunpack.c.h.b16 %v3915
          %v4101 = vunpack.c.l.b16 %v3916
          %v4102 = vunpack.c.h.b16 %v3916
          %v4103 = vunpack.c.l.b16 %v3917
          %v4104 = vunpack.c.h.b16 %v3917
          %v4105 = vunpack.c.l.b16 %v3918
          %v4106 = vunpack.c.h.b16 %v3918
          %v4107 = vunpack.c.l.b16 %v3919
          %v4108 = vunpack.c.h.b16 %v3919
          %v4109 = vunpack.c.l.b16 %v3920
          %v4110 = vunpack.c.h.b16 %v3920
          %v4111 = vunpack.c.l.b16 %v3921
          %v4112 = vunpack.c.h.b16 %v3921
          %v4113 = vunpack.c.l.b16 %v3922
          %v4114 = vunpack.c.h.b16 %v3922
          %v4115 = vunpack.c.l.b16 %v3923
          %v4116 = vunpack.c.h.b16 %v3923
          %v4117 = vpack.c.b16 %v3991, %v3989
          %v4118 = vpack.c.b16 %v3992, %v3990
          %v4119 = vpack.c.b16 %v3995, %v3993
          %v4120 = vpack.c.b16 %v3996, %v3994
          %v4121 = vpack.c.b16 %v3999, %v3997
          %v4122 = vpack.c.b16 %v4000, %v3998
          %v4123 = vpack.c.b16 %v4003, %v4001
          %v4124 = vpack.c.b16 %v4004, %v4002
          %v4125 = vpack.c.b16 %v4007, %v4005
          %v4126 = vpack.c.b16 %v4008, %v4006
          %v4127 = vpack.c.b16 %v4011, %v4009
          %v4128 = vpack.c.b16 %v4012, %v4010
          %v4129 = vpack.c.b16 %v4015, %v4013
          %v4130 = vpack.c.b16 %v4016, %v4014
          %v4131 = vpack.c.b16 %v4019, %v4017
          %v4132 = vpack.c.b16 %v4020, %v4018
          %v4133 = vpack.c.b16 %v4023, %v4021
          %v4134 = vpack.c.b16 %v4024, %v4022
          %v4135 = vpack.c.b16 %v4027, %v4025
          %v4136 = vpack.c.b16 %v4028, %v4026
          %v4137 = vpack.c.b16 %v4031, %v4029
          %v4138 = vpack.c.b16 %v4032, %v4030
          %v4139 = vpack.c.b16 %v4035, %v4033
          %v4140 = vpack.c.b16 %v4036, %v4034
          %v4141 = vpack.c.b16 %v4039, %v4037
          %v4142 = vpack.c.b16 %v4040, %v4038
          %v4143 = vpack.c.b16 %v4043, %v4041
          %v4144 = vpack.c.b16 %v4044, %v4042
          %v4145 = vpack.c.b16 %v4047, %v4045
          %v4146 = vpack.c.b16 %v4048, %v4046
          %v4147 = vpack.c.b16 %v4051, %v4049
          %v4148 = vpack.c.b16 %v4052, %v4050
          %v4149 = vpack.c.b16 %v4055, %v4053
          %v4150 = vpack.c.b16 %v4056, %v4054
          %v4151 = vpack.c.b16 %v4059, %v4057
          %v4152 = vpack.c.b16 %v4060, %v4058
          %v4153 = vpack.c.b16 %v4063, %v4061
          %v4154 = vpack.c.b16 %v4064, %v4062
          %v4155 = vpack.c.b16 %v4067, %v4065
          %v4156 = vpack.c.b16 %v4068, %v4066
          %v4157 = vpack.c.b16 %v4071, %v4069
          %v4158 = vpack.c.b16 %v4072, %v4070
          %v4159 = vpack.c.b16 %v4075, %v4073
          %v4160 = vpack.c.b16 %v4076, %v4074
          %v4161 = vpack.c.b16 %v4079, %v4077
          %v4162 = vpack.c.b16 %v4080, %v4078
          %v4163 = vpack.c.b16 %v4083, %v4081
          %v4164 = vpack.c.b16 %v4084, %v4082
          %v4165 = vpack.c.b16 %v4087, %v4085
          %v4166 = vpack.c.b16 %v4088, %v4086
          %v4167 = vpack.c.b16 %v4091, %v4089
          %v4168 = vpack.c.b16 %v4092, %v4090
          %v4169 = vpack.c.b16 %v4095, %v4093
          %v4170 = vpack.c.b16 %v4096, %v4094
          %v4171 = vpack.c.b16 %v4099, %v4097
          %v4172 = vpack.c.b16 %v4100, %v4098
          %v4173 = vpack.c.b16 %v4103, %v4101
          %v4174 = vpack.c.b16 %v4104, %v4102
          %v4175 = vpack.c.b16 %v4107, %v4105
          %v4176 = vpack.c.b16 %v4108, %v4106
          %v4177 = vpack.c.b16 %v4111, %v4109
          %v4178 = vpack.c.b16 %v4112, %v4110
          %v4179 = vpack.c.b16 %v4115, %v4113
          %v4180 = vpack.c.b16 %v4116, %v4114
          %v4246 = vlaneseq
          %v4247 = vshrl.u32 %v4246, 7
          %v4248 = vsub.s32 0, %v4247
          %v4249 = vrot.slane %v3924, %v4248
          %v4250 = vlaneseq
          %v4251 = vshrl.u32 %v4250, 7
          %v4252 = vsub.s32 1, %v4251
          %v4253 = vrot.slane %v3924, %v4252
          %4256 = vmatprep.subr.bf16.mxu0 %v4118
          %4257 = vmatpush1.bf16.msra.mxu0 %v4117
          %4258 = vmatprep.subr.bf16.mxu0 %v4120
          %4259 = vmatpush1.bf16.msra.mxu0 %v4119
          %4260 = vmatprep.subr.bf16.mxu0 %v4122
          %4261 = vmatpush1.bf16.msra.mxu0 %v4121
          %4262 = vmatprep.subr.bf16.mxu0 %v4124
          %4263 = vmatpush1.bf16.msra.mxu0 %v4123
          %4264 = vmatprep.subr.bf16.mxu0 %v4126
          %4265 = vmatpush1.bf16.msra.mxu0 %v4125
          %4266 = vmatprep.subr.bf16.mxu0 %v4128
          %4267 = vmatpush1.bf16.msra.mxu0 %v4127
          %4268 = vmatprep.subr.bf16.mxu0 %v4130
          %4269 = vmatpush1.bf16.msra.mxu0 %v4129
          %4270 = vmatprep.subr.bf16.mxu0 %v4132
          %4271 = vmatpush1.bf16.msra.mxu0 %v4131
          %4272 = vmatprep.subr.bf16.mxu0 %v4134
          %4273 = vmatpush1.bf16.msra.mxu0 %v4133
          %4274 = vmatprep.subr.bf16.mxu0 %v4136
          %4275 = vmatpush1.bf16.msra.mxu0 %v4135
          %4276 = vmatprep.subr.bf16.mxu0 %v4138
          %4277 = vmatpush1.bf16.msra.mxu0 %v4137
          %4278 = vmatprep.subr.bf16.mxu0 %v4140
          %4279 = vmatpush1.bf16.msra.mxu0 %v4139
          %4280 = vmatprep.subr.bf16.mxu0 %v4142
          %4281 = vmatpush1.bf16.msra.mxu0 %v4141
          %4282 = vmatprep.subr.bf16.mxu0 %v4144
          %4283 = vmatpush1.bf16.msra.mxu0 %v4143
          %4284 = vmatprep.subr.bf16.mxu0 %v4146
          %4285 = vmatpush1.bf16.msra.mxu0 %v4145
          %4286 = vmatprep.subr.bf16.mxu0 %v4148
          %4287 = vmatpush1.bf16.msra.mxu0 %v4147
          %4288 = vmatprep.mubr.bf16.mxu0 %v3857
          %4289 = vmatmul.mubr.bf16.gmra.mrb[0].mxu0 %v3856
          %v4290 = vpop.f32.mrb[0].mxu0
          %v4291 = vadd.f32 %v4249, %v4290
          %v4292 = vpop.f32.mrb[0].mxu0
          %v4293 = vadd.f32 %v4253, %v4292
          %v4294 = vpop.f32.mrb[0].mxu0
          %v4295 = vpop.f32.mrb[0].mxu0
          %4296 = vdwg.mxu0
          %4297 = vmatprep.subr.bf16.mxu0 %v4150
          %4298 = vmatpush1.bf16.msra.mxu0 %v4149
          %4299 = vmatprep.subr.bf16.mxu0 %v4152
          %4300 = vmatpush1.bf16.msra.mxu0 %v4151
          %4301 = vmatprep.subr.bf16.mxu0 %v4154
          %4302 = vmatpush1.bf16.msra.mxu0 %v4153
          %4303 = vmatprep.subr.bf16.mxu0 %v4156
          %4304 = vmatpush1.bf16.msra.mxu0 %v4155
          %4305 = vmatprep.subr.bf16.mxu0 %v4158
          %4306 = vmatpush1.bf16.msra.mxu0 %v4157
          %4307 = vmatprep.subr.bf16.mxu0 %v4160
          %4308 = vmatpush1.bf16.msra.mxu0 %v4159
          %4309 = vmatprep.subr.bf16.mxu0 %v4162
          %4310 = vmatpush1.bf16.msra.mxu0 %v4161
          %4311 = vmatprep.subr.bf16.mxu0 %v4164
          %4312 = vmatpush1.bf16.msra.mxu0 %v4163
          %4313 = vmatprep.subr.bf16.mxu0 %v4166
          %4314 = vmatpush1.bf16.msra.mxu0 %v4165
          %4315 = vmatprep.subr.bf16.mxu0 %v4168
          %4316 = vmatpush1.bf16.msra.mxu0 %v4167
          %4317 = vmatprep.subr.bf16.mxu0 %v4170
          %4318 = vmatpush1.bf16.msra.mxu0 %v4169
          %4319 = vmatprep.subr.bf16.mxu0 %v4172
          %4320 = vmatpush1.bf16.msra.mxu0 %v4171
          %4321 = vmatprep.subr.bf16.mxu0 %v4174
          %4322 = vmatpush1.bf16.msra.mxu0 %v4173
          %4323 = vmatprep.subr.bf16.mxu0 %v4176
          %4324 = vmatpush1.bf16.msra.mxu0 %v4175
          %4325 = vmatprep.subr.bf16.mxu0 %v4178
          %4326 = vmatpush1.bf16.msra.mxu0 %v4177
          %4327 = vmatprep.subr.bf16.mxu0 %v4180
          %4328 = vmatpush1.bf16.msra.mxu0 %v4179
          %4329 = vmatprep.mubr.bf16.mxu0 %v3859
          %4330 = vmatmul.mubr.bf16.gmra.mrb[0].mxu0 %v3858
          %v4331 = vpop.f32.mrb[0].mxu0
          %v4332 = vadd.f32 %v4291, %v4331
          %v4333 = vpop.f32.mrb[0].mxu0
          %v4334 = vadd.f32 %v4293, %v4333
          %v4335 = vpop.f32.mrb[0].mxu0
          %v4336 = vpop.f32.mrb[0].mxu0
          %4337 = vdwg.mxu0
          %vm4338 = vcmp.ge.f32.partialorder %v4332, 0.0
          %vm4339 = vcmp.ge.f32.partialorder %v4334, 0.0
          %v4340 = vmul.f32 %v4332, 0.2
          %v4341 = vmul.f32 %v4334, 0.2
          %v4342 = vsel %vm4338, %v4332, %v4340
          %v4343 = vsel %vm4339, %v4334, %v4341
          %v4344 = vld [vmem:[%s11] sm:$0xff]
          %v4345 = vld [vmem:[%s11 + $0x8] sm:$0xff]
          %v4346 = vld [vmem:[%s11 + $0x10] sm:$0xff]
          %v4347 = vld [vmem:[%s11 + $0x18] sm:$0xff]
          %v4348 = vld [vmem:[%s11 + $0x20] sm:$0xff]
          %v4349 = vld [vmem:[%s11 + $0x28] sm:$0xff]
          %v4350 = vld [vmem:[%s11 + $0x30] sm:$0xff]
          %v4351 = vld [vmem:[%s11 + $0x38] sm:$0xff]
          %v4352 = vld [vmem:[%s11 + $0x40] sm:$0xff]
          %v4353 = vld [vmem:[%s11 + $0x48] sm:$0xff]
          %v4354 = vld [vmem:[%s11 + $0x50] sm:$0xff]
          %v4355 = vld [vmem:[%s11 + $0x58] sm:$0xff]
          %v4356 = vld [vmem:[%s11 + $0x60] sm:$0xff]
          %v4357 = vld [vmem:[%s11 + $0x68] sm:$0xff]
          %v4358 = vld [vmem:[%s11 + $0x70] sm:$0xff]
          %v4359 = vld [vmem:[%s11 + $0x78] sm:$0xff]
          %v4360 = vld [vmem:[%s11 + $0x80] sm:$0xff]
          %v4361 = vld [vmem:[%s11 + $0x88] sm:$0xff]
          %v4362 = vld [vmem:[%s11 + $0x90] sm:$0xff]
          %v4363 = vld [vmem:[%s11 + $0x98] sm:$0xff]
          %v4364 = vld [vmem:[%s11 + $0xa0] sm:$0xff]
          %v4365 = vld [vmem:[%s11 + $0xa8] sm:$0xff]
          %v4366 = vld [vmem:[%s11 + $0xb0] sm:$0xff]
          %v4367 = vld [vmem:[%s11 + $0xb8] sm:$0xff]
          %v4368 = vld [vmem:[%s11 + $0xc0] sm:$0xff]
          %v4369 = vld [vmem:[%s11 + $0xc8] sm:$0xff]
          %v4370 = vld [vmem:[%s11 + $0xd0] sm:$0xff]
          %v4371 = vld [vmem:[%s11 + $0xd8] sm:$0xff]
          %v4372 = vld [vmem:[%s11 + $0xe0] sm:$0xff]
          %v4373 = vld [vmem:[%s11 + $0xe8] sm:$0xff]
          %v4374 = vld [vmem:[%s11 + $0xf0] sm:$0xff]
          %v4375 = vld [vmem:[%s11 + $0xf8] sm:$0xff]
          %v4376 = vld [vmem:[%s12] sm:$0x1]
          %4377 = vmatprep.subr.mxu0 0.0
          %4378 = vmatpush1.msra.mxu0 %v4344
          %4379 = vmatprep.subr.mxu0 0.0
          %4380 = vmatpush1.msra.mxu0 %v4345
          %4381 = vmatprep.subr.mxu0 0.0
          %4382 = vmatpush1.msra.mxu0 %v4346
          %4383 = vmatprep.subr.mxu0 0.0
          %4384 = vmatpush1.msra.mxu0 %v4347
          %4385 = vmatprep.subr.mxu0 0.0
          %4386 = vmatpush1.msra.mxu0 %v4348
          %4387 = vmatprep.subr.mxu0 0.0
          %4388 = vmatpush1.msra.mxu0 %v4349
          %4389 = vmatprep.subr.mxu0 0.0
          %4390 = vmatpush1.msra.mxu0 %v4350
          %4391 = vmatprep.subr.mxu0 0.0
          %4392 = vmatpush1.msra.mxu0 %v4351
          %4393 = vmatprep.subr.mxu0 0.0
          %4394 = vmatpush1.msra.mxu0 %v4352
          %4395 = vmatprep.subr.mxu0 0.0
          %4396 = vmatpush1.msra.mxu0 %v4353
          %4397 = vmatprep.subr.mxu0 0.0
          %4398 = vmatpush1.msra.mxu0 %v4354
          %4399 = vmatprep.subr.mxu0 0.0
          %4400 = vmatpush1.msra.mxu0 %v4355
          %4401 = vmatprep.subr.mxu0 0.0
          %4402 = vmatpush1.msra.mxu0 %v4356
          %4403 = vmatprep.subr.mxu0 0.0
          %4404 = vmatpush1.msra.mxu0 %v4357
          %4405 = vmatprep.subr.mxu0 0.0
          %4406 = vmatpush1.msra.mxu0 %v4358
          %4407 = vmatprep.subr.mxu0 0.0
          %4408 = vmatpush1.msra.mxu0 %v4359
          %4409 = vmatprep.subr.mxu0 0.0
          %4410 = vmatpush1.msra.mxu0 %v4360
          %4411 = vmatprep.subr.mxu0 0.0
          %4412 = vmatpush1.msra.mxu0 %v4361
          %4413 = vmatprep.subr.mxu0 0.0
          %4414 = vmatpush1.msra.mxu0 %v4362
          %4415 = vmatprep.subr.mxu0 0.0
          %4416 = vmatpush1.msra.mxu0 %v4363
          %4417 = vmatprep.subr.mxu0 0.0
          %4418 = vmatpush1.msra.mxu0 %v4364
          %4419 = vmatprep.subr.mxu0 0.0
          %4420 = vmatpush1.msra.mxu0 %v4365
          %4421 = vmatprep.subr.mxu0 0.0
          %4422 = vmatpush1.msra.mxu0 %v4366
          %4423 = vmatprep.subr.mxu0 0.0
          %4424 = vmatpush1.msra.mxu0 %v4367
          %4425 = vmatprep.subr.mxu0 0.0
          %4426 = vmatpush1.msra.mxu0 %v4368
          %4427 = vmatprep.subr.mxu0 0.0
          %4428 = vmatpush1.msra.mxu0 %v4369
          %4429 = vmatprep.subr.mxu0 0.0
          %4430 = vmatpush1.msra.mxu0 %v4370
          %4431 = vmatprep.subr.mxu0 0.0
          %4432 = vmatpush1.msra.mxu0 %v4371
          %4433 = vmatprep.subr.mxu0 0.0
          %4434 = vmatpush1.msra.mxu0 %v4372
          %4435 = vmatprep.subr.mxu0 0.0
          %4436 = vmatpush1.msra.mxu0 %v4373
          %4437 = vmatprep.subr.mxu0 0.0
          %4438 = vmatpush1.msra.mxu0 %v4374
          %4439 = vmatprep.subr.mxu0 0.0
          %4440 = vmatpush1.msra.mxu0 %v4375
          %4441 = vmatprep.mubr.f32.mxu0 %v4343
          %4442 = vmatmul.mubr.f32.gmra.mrb[0].mxu0 %v4342
          %v4443 = vpop.f32.mrb[0].mxu0
          %v4444 = vadd.f32 %v4376, %v4443
          %v4445 = vpop.f32.mrb[0].mxu0
          %4446 = vdwg.mxu0
          %vm4447 = vcmask 65536
          %4448 = vst.msk [vmem:[%s496] sm:$0x1] %vm4447, %v4444
        $region92: #{tpu_custom_call.1} parent=71 // pred_fallthru
          _
        %s4449 = sand.u32 %s329, 1
        %s4450 = scalar_lea.sflag [#allocation5], %s4449
        %s4451 = sand.u32 %s329, 1
        %s4452 = scalar_lea.vmem [#allocation9], %s4451
        // Predicated region
        $region93: #{tpu_custom_call.1} parent=71 // pred_check
          %p4453 = pneg %p339
        $region94: #{tpu_custom_call.1} parent=71 // pred_check_branch
          %4455 = sbr.rel (%p4453) target = $region96
        $region95: #{tpu_custom_call.1} parent=71 // pred_region
          %s4457 = ssub.s32 16, 16
          %4458 = vsyncadd %s4450, %s4457
          %s4459 = smul.addr %s33, 16
          %s4460 = scalar_lea.hbm %s13, %s4459
          %s4462 = sshll.u32 %s4452, 4
          %s4463 = int_to_ptr.vmem [resolvable:$true] %s4462
          %4465 = dma.vmem_to_hbm [thread:$0]  %s4463, 16, %s4460, %s4450
        $region96: #{tpu_custom_call.1} parent=71 // pred_fallthru
          _
      $region72: #{tpu_custom_call.1} parent=5 // pred_fallthru
        _
      %p4466 = scmp.le.s32.totalorder 2, %s24
      // Predicated region
      $region97: #{tpu_custom_call.1} parent=5 // pred_check
        %p4467 = pneg %p4466
      $region98: #{tpu_custom_call.1} parent=5 // pred_check_branch
        %4469 = sbr.rel (%p4467) target = $region100
      $region99: #{tpu_custom_call.1} parent=5 // pred_region
        %s4470 = ssub.s32 %s24, 2
        // Predicated region
        $region101: #{tpu_custom_call.1} parent=99 // pred_check
          %p4471 = pneg %p345
        $region102: #{tpu_custom_call.1} parent=99 // pred_check_branch
          %4473 = sbr.rel (%p4471) target = $region104
        $region103: #{tpu_custom_call.1} parent=99 // pred_region
          %s4474 = sand.u32 %s330, 1
          %s4475 = scalar_lea.sflag [#allocation5], %s4474
          %s4476 = sand.u32 %s330, 1
          %s4477 = scalar_lea.vmem [#allocation9], %s4476
          %4478 = dma.done %s4475, 16
        $region104: #{tpu_custom_call.1} parent=99 // pred_fallthru
          _
      $region100: #{tpu_custom_call.1} parent=5 // pred_fallthru
        _
    $region6: #{tpu_custom_call.1} parent=1 // loop_footer
      %s28 = sadd.s32 1, %s24
    $region7: #{tpu_custom_call.1} parent=1 // loop_footer_branch
      %23 = sbr.rel target = $region3
    $region8: #{tpu_custom_call.1} parent=1 // loop_exit
      _
    %4479 = vsyncpa [#allocation4], 1
    %s4480 = scalar_lea.sflag [#allocation4], 1
    %4481 = vsyncpa %s4480, 1
    %4482 = vsyncpa [#allocation7], 1
    %4483 = vsyncpa [#allocation5], 1
    %s4484 = scalar_lea.sflag [#allocation5], 1
    %4485 = vsyncpa %s4484, 1

</llo_original>
